<compile_context>
chip_gen: v7x
topology: tpu7x:2x2x1
jax: 0.10.0
libtpu: 0.0.40
codegen_flags: <defaults>
</compile_context>

<pallas_src>
import math

import jax
import jax.numpy as jnp
from jax.experimental import pallas as pl
from jax.experimental.pallas import tpu as pltpu

# ----------------------------- hyper-params (small) -----------------------------
B = 2            # batch
S = 512          # raw mono samples per clip
FRAME = 32       # encoder stride: samples per latent frame
T = S // FRAME   # frames after encoder        = 16
D = 32           # hidden size
H = 4            # attention heads
HD = D // H      # head dim                    = 8
L = 4            # transformer layers
MLP = 4 * D      # MLP hidden                  = 128
DS = 2           # downsample stride (kernel == stride)
T_DS = T // DS   # frames after downsample     = 8
EPS = 1e-5

BF16 = jnp.bfloat16
F32 = jnp.float32


def _dot(a, b):
    """MXU matmul: bf16 inputs, f32 accumulation."""
    return jnp.dot(a.astype(BF16), b.astype(BF16), preferred_element_type=F32)


# ----------------------------- the fused kernel (one batch element / step) -------
def _fused_kernel(frames_ref, encdw_ref, qkvo_w_ref, fc1_w_ref, fc2_w_ref,
                  vecs_ref, bias_ref, misc_ref, out_ref):

    def row_layernorm(x, g, b):
        """LayerNorm over the hidden (last) dim with affine params."""
        mu = jnp.mean(x, axis=-1, keepdims=True)
        var = jnp.mean(jnp.square(x - mu), axis=-1, keepdims=True)
        return (x - mu) * jax.lax.rsqrt(var + EPS) * g + b

    # ---- constants, hoisted out of the layer loop ----
    # per-head causal mask, heads stacked along rows: (H*T, T)
    r = jax.lax.broadcasted_iota(jnp.int32, (H * T, T), 0)
    c = jax.lax.broadcasted_iota(jnp.int32, (H * T, T), 1)
    causal_ok = c <= (r % T)

    # per-head lane masks (1, D): keep q/v lane-dense instead of 8-wide slices
    lane = jax.lax.broadcasted_iota(jnp.int32, (1, D), 1)
    head_masks = [((lane >= h * HD) & (lane < (h + 1) * HD)).astype(F32)
                  for h in range(H)]

    # even/odd frame selection matrices (exact 0/1, bf16) for the stride-2 conv
    sr = jax.lax.broadcasted_iota(jnp.int32, (T_DS, T), 0)
    sc = jax.lax.broadcasted_iota(jnp.int32, (T_DS, T), 1)
    sel_even = (sc == DS * sr).astype(BF16)
    sel_odd = (sc == DS * sr + 1).astype(BF16)

    # shared weights (bf16 slab) and misc f32 vectors
    enc_w = encdw_ref[0:FRAME, :]                              # (FRAME, D)
    w_dn0 = encdw_ref[FRAME:FRAME + D, :]                      # taps for frame 2j
    w_dn1 = encdw_ref[FRAME + D:FRAME + 2 * D, :]              # taps for frame 2j+1
    misc = misc_ref[...]                                       # (1, 2D + L)
    enc_b = misc[0:1, 0:D]
    down_b = misc[0:1, D:2 * D]

    # ---- encoder stand-in: non-overlapping frame conv as one matmul ----
    x = _dot(frames_ref[0], enc_w) + enc_b                     # (T, D) f32

    acc = jnp.zeros((T_DS, D), F32)                            # weighted-sum accumulator

    for l in range(L):                                         # static unroll
        vl = vecs_ref[l]                                       # (6, D) f32
        ln1_g, ln1_b = vl[0:1], vl[1:2]
        ln2_g, ln2_b = vl[2:3], vl[3:4]
        o_b, fc2_b = vl[4:5], vl[5:6]
        bl = bias_ref[l]                                       # (2, MLP) f32
        qkv_b = bl[0:1, 0:3 * D]
        fc1_b = bl[1:2, :]
        wqo = qkvo_w_ref[l]                                    # (D, 4D) bf16
        qkv_w = wqo[:, 0:3 * D]
        o_w = wqo[:, 3 * D:4 * D]
        fc1_w = fc1_w_ref[l]                                   # (D, MLP) bf16
        fc2_w = fc2_w_ref[l]                                   # (MLP, D) bf16

        # ---- attention (pre-LN), all H heads in two MXU pushes ----
        h1 = row_layernorm(x, ln1_g, ln1_b)
        qkv = _dot(h1, qkv_w) + qkv_b                          # (T, 3D); q pre-scaled
        q = qkv[:, 0:D]
        k = qkv[:, D:2 * D]
        v = qkv[:, 2 * D:3 * D]

        # stacked masked queries: masking q alone zeroes off-head products
        q_stack = jnp.concatenate([q * m for m in head_masks], axis=0)   # (H*T, D)
        s = jax.lax.dot_general(q_stack.astype(BF16), k.astype(BF16),
                                (((1,), (1,)), ((), ())),
                                preferred_element_type=F32)    # (H*T, T)
        s = jnp.where(causal_ok, s, jnp.float32(-1e30))
        p = jnp.exp(s - jnp.max(s, axis=-1, keepdims=True))
        p = p * pl.reciprocal(jnp.sum(p, axis=-1, keepdims=True), approx=True)
        pv = _dot(p, v)                                        # (H*T, D)
        # recombine the H row-blocks into (T, D) via the lane masks
        attn = sum(pv[h * T:(h + 1) * T, :] * head_masks[h] for h in range(H))

        x = x + _dot(attn, o_w) + o_b

        # ---- MLP ----
        h2 = row_layernorm(x, ln2_g, ln2_b)
        # TODO(synk): tanh-approx GELU vs PyTorch nn.GELU's exact erf GELU.
        h2 = jax.nn.gelu(_dot(h2, fc1_w) + fc1_b, approximate=True)
        x = x + _dot(h2, fc2_w) + fc2_b

        # ---- forward hook: shared stride-2 / kernel-2 downsample conv ----
        x_bf = x.astype(BF16)
        x_even = jnp.dot(sel_even, x_bf, preferred_element_type=F32)     # (T_DS, D)
        x_odd = jnp.dot(sel_odd, x_bf, preferred_element_type=F32)
        xd = _dot(x_even, w_dn0) + _dot(x_odd, w_dn1) + down_b

        # F.layer_norm(layer_outputs, size()[2:]) over the whole (T_DS, D)
        # block per (layer, batch); softmax(layer_weights)[l] folded into the
        # normalization scale.
        wn_l = misc[0:1, 2 * D + l:2 * D + l + 1]              # (1, 1)
        mu = jnp.mean(xd, keepdims=True)
        var = jnp.mean(jnp.square(xd - mu), keepdims=True)
        acc = acc + (xd - mu) * (wn_l * jax.lax.rsqrt(var + EPS))

    # Final F.layer_norm over (D, T_DS), no affine -> permutation invariant, so
    # compute the stats in lane-dense (T_DS, D) layout; transpose in wrapper.
    mu = jnp.mean(acc, keepdims=True)
    var = jnp.mean(jnp.square(acc - mu), keepdims=True)
    out_ref[0] = (acc - mu) * jax.lax.rsqrt(var + EPS)


# ----------------------------- wrapper -------------------------------------------
def listen_feature_extractor(audio, params):
    b, _, s = audio.shape
    assert b == B and s == S
    t = s // FRAME
    # Framing is a free row-major reshape (done by XLA on the HBM buffer).
    frames = audio.reshape(b, t, FRAME)

    # Fold the 1/sqrt(HD) attention scale into the q columns (exact, free).
    scale = 1.0 / math.sqrt(HD)
    col_scale = jnp.concatenate(
        [jnp.full((D,), scale, jnp.float32), jnp.ones((2 * D,), jnp.float32)])
    qkv_w = params["qkv_w"] * col_scale
    qkv_b = params["qkv_b"] * col_scale

    # --- pack the 17 tiny parameter tensors into a handful of slabs ---
    enc_down_w = jnp.concatenate([params["enc_w"], params["down_w"]],
                                 axis=0).astype(jnp.bfloat16)            # (96, D)
    qkvo_w = jnp.concatenate([qkv_w, params["o_w"]],
                             axis=-1).astype(jnp.bfloat16)               # (L, D, 4D)
    fc1_w = params["fc1_w"].astype(jnp.bfloat16)                         # (L, D, MLP)
    fc2_w = params["fc2_w"].astype(jnp.bfloat16)                         # (L, MLP, D)
    vecs = jnp.concatenate([params["ln1_g"], params["ln1_b"],
                            params["ln2_g"], params["ln2_b"],
                            params["o_b"], params["fc2_b"]], axis=1)     # (L, 6, D)
    qkv_b_pad = jnp.pad(qkv_b, ((0, 0), (0, 0), (0, MLP - 3 * D)))
    biases = jnp.concatenate([qkv_b_pad, params["fc1_b"]], axis=1)       # (L, 2, MLP)
    # softmax over the learned layer weights, precomputed in the wrapper
    wn = jax.nn.softmax(params["layer_weights"]).reshape(1, L)
    misc = jnp.concatenate([params["enc_b"], params["down_b"], wn],
                           axis=-1)                                      # (1, 2D + L)

    args = (frames, enc_down_w, qkvo_w, fc1_w, fc2_w, vecs, biases, misc)

    def _const_spec(shape):
        nd = len(shape)
        return pl.BlockSpec(shape, lambda i, nd=nd: (0,) * nd)

    out = pl.pallas_call(
        _fused_kernel,
        out_shape=jax.ShapeDtypeStruct((b, t // DS, D), jnp.float32),
        grid=(b,),
        in_specs=[pl.BlockSpec((1, T, FRAME), lambda i: (i, 0, 0))]
                 + [_const_spec(a.shape) for a in args[1:]],
        out_specs=pl.BlockSpec((1, T_DS, D), lambda i: (i, 0, 0)),
        compiler_params=pltpu.CompilerParams(
            dimension_semantics=("parallel",)),
    )(*args)
    # Kernel writes lane-dense (B, T_DS, D); trivial transpose to (B, D, T_DS).
    return jnp.transpose(out, (0, 2, 1))


# ----------------------------- params --------------------------------------------
def init_params(key):
    def dense(k, fan_in, fan_out, extra=()):
        return jax.random.normal(k, extra + (fan_in, fan_out),
                                 jnp.float32) / math.sqrt(fan_in)

    keys = iter(jax.random.split(key, 16))
    return {
        "enc_w": dense(next(keys), FRAME, D),
        "enc_b": jnp.zeros((1, D), jnp.float32),
        "down_w": dense(next(keys), DS * D, D),
        "down_b": jnp.zeros((1, D), jnp.float32),
        "layer_weights": jnp.ones((L,), jnp.float32),          # nn.Parameter(torch.ones(L))
        "ln1_g": jnp.ones((L, 1, D), jnp.float32),
        "ln1_b": jnp.zeros((L, 1, D), jnp.float32),
        "ln2_g": jnp.ones((L, 1, D), jnp.float32),
        "ln2_b": jnp.zeros((L, 1, D), jnp.float32),
        "qkv_w": dense(next(keys), D, 3 * D, (L,)),
        "qkv_b": jnp.zeros((L, 1, 3 * D), jnp.float32),
        "o_w": dense(next(keys), D, D, (L,)),
        "o_b": jnp.zeros((L, 1, D), jnp.float32),
        "fc1_w": dense(next(keys), D, MLP, (L,)),
        "fc1_b": jnp.zeros((L, 1, MLP), jnp.float32),
        "fc2_w": dense(next(keys), MLP, D, (L,)),
        "fc2_b": jnp.zeros((L, 1, D), jnp.float32),
    }


if __name__ == "__main__":
    key = jax.random.PRNGKey(0)
    pkey, akey = jax.random.split(key)
    params = init_params(pkey)
    audio = jax.random.normal(akey, (B, 1, S), jnp.float32)     # raw waveform stand-in

    out = jax.jit(lambda a: listen_feature_extractor(a, params))(audio)
    out = jax.block_until_ready(out)

    assert out.shape == (B, D, T_DS), out.shape
    assert bool(jnp.all(jnp.isfinite(out)))
    print("KERNEL_OK")
</pallas_src>

<mosaic_0001>
module attributes {stable_mosaic.version = 11 : i64} {
  func.func @_fused_kernel(%arg0: i32, %arg1: memref<1x16x32xf32, #tpu.memory_space<vmem>>, %arg2: memref<96x32xbf16, #tpu.memory_space<vmem>>, %arg3: memref<4x32x128xbf16, #tpu.memory_space<vmem>>, %arg4: memref<4x32x128xbf16, #tpu.memory_space<vmem>>, %arg5: memref<4x128x32xbf16, #tpu.memory_space<vmem>>, %arg6: memref<4x6x32xf32, #tpu.memory_space<vmem>>, %arg7: memref<4x2x128xf32, #tpu.memory_space<vmem>>, %arg8: memref<1x68xf32, #tpu.memory_space<vmem>>, %arg9: memref<1x8x32xf32, #tpu.memory_space<vmem>>) attributes {dimension_semantics = [#tpu.dimension_semantics<parallel>], iteration_bounds = array<i64: 2>, scalar_prefetch = 0 : i64, scratch_operands = 0 : i64, tpu.core_type = #tpu.core_type<tc>, window_params = [{transform_indices = @transform_0, window_bounds = array<i64: 1, 16, 32>}, {pipeline_mode = #tpu.pipeline_mode<synchronous>, transform_indices = @transform_1, window_bounds = array<i64: 96, 32>}, {pipeline_mode = #tpu.pipeline_mode<synchronous>, transform_indices = @transform_2, window_bounds = array<i64: 4, 32, 128>}, {pipeline_mode = #tpu.pipeline_mode<synchronous>, transform_indices = @transform_3, window_bounds = array<i64: 4, 32, 128>}, {pipeline_mode = #tpu.pipeline_mode<synchronous>, transform_indices = @transform_4, window_bounds = array<i64: 4, 128, 32>}, {pipeline_mode = #tpu.pipeline_mode<synchronous>, transform_indices = @transform_5, window_bounds = array<i64: 4, 6, 32>}, {pipeline_mode = #tpu.pipeline_mode<synchronous>, transform_indices = @transform_6, window_bounds = array<i64: 4, 2, 128>}, {pipeline_mode = #tpu.pipeline_mode<synchronous>, transform_indices = @transform_7, window_bounds = array<i64: 1, 68>}, {transform_indices = @transform_8, window_bounds = array<i64: 1, 8, 32>}]} {
    %0 = tpu.iota {dimensions = array<i32: 0>} : vector<64x16xi32>
    %1 = tpu.iota {dimensions = array<i32: 1>} : vector<64x16xi32>
    %c16_i32 = arith.constant 16 : i32
    %c0_i32 = arith.constant 0 : i32
    %2 = arith.cmpi eq, %c16_i32, %c0_i32 : i32
    %c1_i32 = arith.constant 1 : i32
    %3 = arith.select %2, %c1_i32, %c16_i32 : i32
    %4 = vector.broadcast %3 : i32 to vector<64x16xi32>
    %5 = arith.remsi %0, %4 : vector<64x16xi32>
    %c0_i32_0 = arith.constant 0 : i32
    %6 = vector.broadcast %c0_i32_0 : i32 to vector<64x16xi32>
    %7 = arith.cmpi ne, %5, %6 : vector<64x16xi32>
    %c0_i32_1 = arith.constant 0 : i32
    %8 = vector.broadcast %c0_i32_1 : i32 to vector<64x16xi32>
    %9 = arith.cmpi slt, %5, %8 : vector<64x16xi32>
    %c0_i32_2 = arith.constant 0 : i32
    %10 = arith.cmpi slt, %3, %c0_i32_2 : i32
    %11 = vector.broadcast %10 : i1 to vector<64x16xi1>
    %12 = vector.broadcast %11 : vector<64x16xi1> to vector<64x16xi1>
    %13 = arith.xori %9, %12 : vector<64x16xi1>
    %14 = arith.andi %13, %7 : vector<64x16xi1>
    %15 = vector.broadcast %3 : i32 to vector<64x16xi32>
    %16 = arith.addi %5, %15 : vector<64x16xi32>
    %17 = arith.select %14, %16, %5 : vector<64x16xi1>, vector<64x16xi32>
    %18 = arith.cmpi sle, %1, %17 : vector<64x16xi32>
    %19 = tpu.iota {dimensions = array<i32: 1>} : vector<1x32xi32>
    %c0_i32_3 = arith.constant 0 : i32
    %20 = vector.broadcast %c0_i32_3 : i32 to vector<1x32xi32>
    %21 = arith.cmpi sge, %19, %20 : vector<1x32xi32>
    %c8_i32 = arith.constant 8 : i32
    %22 = vector.broadcast %c8_i32 : i32 to vector<1x32xi32>
    %23 = arith.cmpi slt, %19, %22 : vector<1x32xi32>
    %24 = arith.andi %21, %23 : vector<1x32xi1>
    %25 = arith.extui %24 : vector<1x32xi1> to vector<1x32xi32>
    %26 = arith.sitofp %25 : vector<1x32xi32> to vector<1x32xf32>
    %c8_i32_4 = arith.constant 8 : i32
    %27 = vector.broadcast %c8_i32_4 : i32 to vector<1x32xi32>
    %28 = arith.cmpi sge, %19, %27 : vector<1x32xi32>
    %c16_i32_5 = arith.constant 16 : i32
    %29 = vector.broadcast %c16_i32_5 : i32 to vector<1x32xi32>
    %30 = arith.cmpi slt, %19, %29 : vector<1x32xi32>
    %31 = arith.andi %28, %30 : vector<1x32xi1>
    %32 = arith.extui %31 : vector<1x32xi1> to vector<1x32xi32>
    %33 = arith.sitofp %32 : vector<1x32xi32> to vector<1x32xf32>
    %c16_i32_6 = arith.constant 16 : i32
    %34 = vector.broadcast %c16_i32_6 : i32 to vector<1x32xi32>
    %35 = arith.cmpi sge, %19, %34 : vector<1x32xi32>
    %c24_i32 = arith.constant 24 : i32
    %36 = vector.broadcast %c24_i32 : i32 to vector<1x32xi32>
    %37 = arith.cmpi slt, %19, %36 : vector<1x32xi32>
    %38 = arith.andi %35, %37 : vector<1x32xi1>
    %39 = arith.extui %38 : vector<1x32xi1> to vector<1x32xi32>
    %40 = arith.sitofp %39 : vector<1x32xi32> to vector<1x32xf32>
    %c24_i32_7 = arith.constant 24 : i32
    %41 = vector.broadcast %c24_i32_7 : i32 to vector<1x32xi32>
    %42 = arith.cmpi sge, %19, %41 : vector<1x32xi32>
    %c32_i32 = arith.constant 32 : i32
    %43 = vector.broadcast %c32_i32 : i32 to vector<1x32xi32>
    %44 = arith.cmpi slt, %19, %43 : vector<1x32xi32>
    %45 = arith.andi %42, %44 : vector<1x32xi1>
    %46 = arith.extui %45 : vector<1x32xi1> to vector<1x32xi32>
    %47 = arith.sitofp %46 : vector<1x32xi32> to vector<1x32xf32>
    %48 = tpu.iota {dimensions = array<i32: 0>} : vector<8x16xi32>
    %49 = tpu.iota {dimensions = array<i32: 1>} : vector<8x16xi32>
    %c2_i32 = arith.constant 2 : i32
    %50 = vector.broadcast %c2_i32 : i32 to vector<8x16xi32>
    %51 = arith.muli %50, %48 : vector<8x16xi32>
    %52 = arith.cmpi eq, %49, %51 : vector<8x16xi32>
    %53 = arith.extui %52 : vector<8x16xi1> to vector<8x16xi32>
    %54 = arith.sitofp %53 : vector<8x16xi32> to vector<8x16xf32>
    %55 = arith.truncf %54 : vector<8x16xf32> to vector<8x16xbf16>
    %c2_i32_8 = arith.constant 2 : i32
    %56 = vector.broadcast %c2_i32_8 : i32 to vector<8x16xi32>
    %57 = arith.muli %56, %48 : vector<8x16xi32>
    %c1_i32_9 = arith.constant 1 : i32
    %58 = vector.broadcast %c1_i32_9 : i32 to vector<8x16xi32>
    %59 = arith.addi %57, %58 : vector<8x16xi32>
    %60 = arith.cmpi eq, %49, %59 : vector<8x16xi32>
    %61 = arith.extui %60 : vector<8x16xi1> to vector<8x16xi32>
    %62 = arith.sitofp %61 : vector<8x16xi32> to vector<8x16xf32>
    %63 = arith.truncf %62 : vector<8x16xf32> to vector<8x16xbf16>
    %c0 = arith.constant 0 : index
    %c0_10 = arith.constant 0 : index
    %64 = vector.load %arg2[%c0, %c0_10] : memref<96x32xbf16, #tpu.memory_space<vmem>>, vector<32x32xbf16>
    %c32 = arith.constant 32 : index
    %c0_11 = arith.constant 0 : index
    %65 = vector.load %arg2[%c32, %c0_11] : memref<96x32xbf16, #tpu.memory_space<vmem>>, vector<32x32xbf16>
    %c64 = arith.constant 64 : index
    %c0_12 = arith.constant 0 : index
    %66 = vector.load %arg2[%c64, %c0_12] : memref<96x32xbf16, #tpu.memory_space<vmem>>, vector<32x32xbf16>
    %c0_13 = arith.constant 0 : index
    %c0_14 = arith.constant 0 : index
    %67 = vector.load %arg8[%c0_13, %c0_14] : memref<1x68xf32, #tpu.memory_space<vmem>>, vector<1x68xf32>
    %68 = vector.extract_strided_slice %67 {offsets = [0, 0], sizes = [1, 32], strides = [1, 1]} : vector<1x68xf32> to vector<1x32xf32>
    %69 = vector.extract_strided_slice %67 {offsets = [0, 32], sizes = [1, 32], strides = [1, 1]} : vector<1x68xf32> to vector<1x32xf32>
    %c0_15 = arith.constant 0 : index
    %c0_16 = arith.constant 0 : index
    %c0_17 = arith.constant 0 : index
    %70 = vector.load %arg1[%c0_15, %c0_16, %c0_17] : memref<1x16x32xf32, #tpu.memory_space<vmem>>, vector<1x16x32xf32>
    %71 = vector.shape_cast %70 : vector<1x16x32xf32> to vector<16x32xf32>
    %72 = arith.truncf %71 : vector<16x32xf32> to vector<16x32xbf16>
    %cst = arith.constant dense<0.000000e+00> : vector<16x32xf32>
    %73 = tpu.matmul %72, %64, %cst {dimension_numbers = #tpu.dot_dimension_numbers<[1], [0], [0], [1], [0, 0, 1, 1], [], []>} : vector<16x32xbf16>, vector<32x32xbf16>, vector<16x32xf32> -> vector<16x32xf32>
    %74 = vector.broadcast %68 : vector<1x32xf32> to vector<16x32xf32>
    %75 = arith.addf %73, %74 : vector<16x32xf32>
    %cst_18 = arith.constant 0.000000e+00 : f32
    %76 = vector.broadcast %cst_18 : f32 to vector<8x32xf32>
    %c0_19 = arith.constant 0 : index
    %c0_20 = arith.constant 0 : index
    %c0_21 = arith.constant 0 : index
    %77 = vector.load %arg6[%c0_19, %c0_20, %c0_21] : memref<4x6x32xf32, #tpu.memory_space<vmem>>, vector<1x6x32xf32>
    %78 = vector.shape_cast %77 : vector<1x6x32xf32> to vector<6x32xf32>
    %79 = vector.extract_strided_slice %78 {offsets = [0, 0], sizes = [1, 32], strides = [1, 1]} : vector<6x32xf32> to vector<1x32xf32>
    %80 = vector.extract_strided_slice %78 {offsets = [1, 0], sizes = [1, 32], strides = [1, 1]} : vector<6x32xf32> to vector<1x32xf32>
    %81 = vector.extract_strided_slice %78 {offsets = [2, 0], sizes = [1, 32], strides = [1, 1]} : vector<6x32xf32> to vector<1x32xf32>
    %82 = vector.extract_strided_slice %78 {offsets = [3, 0], sizes = [1, 32], strides = [1, 1]} : vector<6x32xf32> to vector<1x32xf32>
    %83 = vector.extract_strided_slice %78 {offsets = [4, 0], sizes = [1, 32], strides = [1, 1]} : vector<6x32xf32> to vector<1x32xf32>
    %84 = vector.extract_strided_slice %78 {offsets = [5, 0], sizes = [1, 32], strides = [1, 1]} : vector<6x32xf32> to vector<1x32xf32>
    %c0_22 = arith.constant 0 : index
    %c0_23 = arith.constant 0 : index
    %c0_24 = arith.constant 0 : index
    %85 = vector.load %arg7[%c0_22, %c0_23, %c0_24] : memref<4x2x128xf32, #tpu.memory_space<vmem>>, vector<1x2x128xf32>
    %86 = vector.shape_cast %85 : vector<1x2x128xf32> to vector<2x128xf32>
    %87 = vector.extract_strided_slice %86 {offsets = [0, 0], sizes = [1, 96], strides = [1, 1]} : vector<2x128xf32> to vector<1x96xf32>
    %88 = vector.extract_strided_slice %86 {offsets = [1, 0], sizes = [1, 128], strides = [1, 1]} : vector<2x128xf32> to vector<1x128xf32>
    %c0_25 = arith.constant 0 : index
    %c0_26 = arith.constant 0 : index
    %c0_27 = arith.constant 0 : index
    %89 = vector.load %arg3[%c0_25, %c0_26, %c0_27] : memref<4x32x128xbf16, #tpu.memory_space<vmem>>, vector<1x32x128xbf16>
    %90 = vector.shape_cast %89 : vector<1x32x128xbf16> to vector<32x128xbf16>
    %91 = vector.extract_strided_slice %90 {offsets = [0, 0], sizes = [32, 96], strides = [1, 1]} : vector<32x128xbf16> to vector<32x96xbf16>
    %92 = vector.extract_strided_slice %90 {offsets = [0, 96], sizes = [32, 32], strides = [1, 1]} : vector<32x128xbf16> to vector<32x32xbf16>
    %c0_28 = arith.constant 0 : index
    %c0_29 = arith.constant 0 : index
    %c0_30 = arith.constant 0 : index
    %93 = vector.load %arg4[%c0_28, %c0_29, %c0_30] : memref<4x32x128xbf16, #tpu.memory_space<vmem>>, vector<1x32x128xbf16>
    %94 = vector.shape_cast %93 : vector<1x32x128xbf16> to vector<32x128xbf16>
    %c0_31 = arith.constant 0 : index
    %c0_32 = arith.constant 0 : index
    %c0_33 = arith.constant 0 : index
    %95 = vector.load %arg5[%c0_31, %c0_32, %c0_33] : memref<4x128x32xbf16, #tpu.memory_space<vmem>>, vector<1x128x32xbf16>
    %96 = vector.shape_cast %95 : vector<1x128x32xbf16> to vector<128x32xbf16>
    %cst_34 = arith.constant dense<0.000000e+00> : vector<16xf32>
    %97 = vector.multi_reduction <add>, %75, %cst_34 [1] : vector<16x32xf32> to vector<16xf32>
    %98 = vector.shape_cast %97 : vector<16xf32> to vector<16x1xf32>
    %cst_35 = arith.constant 3.200000e+01 : f32
    %99 = vector.broadcast %cst_35 : f32 to vector<16x1xf32>
    %100 = arith.divf %98, %99 : vector<16x1xf32>
    %101 = vector.broadcast %100 : vector<16x1xf32> to vector<16x32xf32>
    %102 = arith.subf %75, %101 : vector<16x32xf32>
    %103 = arith.mulf %102, %102 : vector<16x32xf32>
    %cst_36 = arith.constant dense<0.000000e+00> : vector<16xf32>
    %104 = vector.multi_reduction <add>, %103, %cst_36 [1] : vector<16x32xf32> to vector<16xf32>
    %105 = vector.shape_cast %104 : vector<16xf32> to vector<16x1xf32>
    %cst_37 = arith.constant 3.200000e+01 : f32
    %106 = vector.broadcast %cst_37 : f32 to vector<16x1xf32>
    %107 = arith.divf %105, %106 : vector<16x1xf32>
    %108 = vector.broadcast %100 : vector<16x1xf32> to vector<16x32xf32>
    %109 = arith.subf %75, %108 : vector<16x32xf32>
    %cst_38 = arith.constant 9.99999974E-6 : f32
    %110 = vector.broadcast %cst_38 : f32 to vector<16x1xf32>
    %111 = arith.addf %107, %110 : vector<16x1xf32>
    %112 = math.rsqrt %111 : vector<16x1xf32>
    %113 = vector.broadcast %112 : vector<16x1xf32> to vector<16x32xf32>
    %114 = arith.mulf %109, %113 : vector<16x32xf32>
    %115 = vector.broadcast %79 : vector<1x32xf32> to vector<16x32xf32>
    %116 = arith.mulf %114, %115 : vector<16x32xf32>
    %117 = vector.broadcast %80 : vector<1x32xf32> to vector<16x32xf32>
    %118 = arith.addf %116, %117 : vector<16x32xf32>
    %119 = arith.truncf %118 : vector<16x32xf32> to vector<16x32xbf16>
    %cst_39 = arith.constant dense<0.000000e+00> : vector<16x96xf32>
    %120 = tpu.matmul %119, %91, %cst_39 {dimension_numbers = #tpu.dot_dimension_numbers<[1], [0], [0], [1], [0, 0, 1, 1], [], []>} : vector<16x32xbf16>, vector<32x96xbf16>, vector<16x96xf32> -> vector<16x96xf32>
    %121 = vector.broadcast %87 : vector<1x96xf32> to vector<16x96xf32>
    %122 = arith.addf %120, %121 : vector<16x96xf32>
    %123 = vector.extract_strided_slice %122 {offsets = [0, 0], sizes = [16, 32], strides = [1, 1]} : vector<16x96xf32> to vector<16x32xf32>
    %124 = vector.extract_strided_slice %122 {offsets = [0, 32], sizes = [16, 32], strides = [1, 1]} : vector<16x96xf32> to vector<16x32xf32>
    %125 = vector.extract_strided_slice %122 {offsets = [0, 64], sizes = [16, 32], strides = [1, 1]} : vector<16x96xf32> to vector<16x32xf32>
    %126 = vector.broadcast %26 : vector<1x32xf32> to vector<16x32xf32>
    %127 = arith.mulf %123, %126 : vector<16x32xf32>
    %128 = vector.broadcast %33 : vector<1x32xf32> to vector<16x32xf32>
    %129 = arith.mulf %123, %128 : vector<16x32xf32>
    %130 = vector.broadcast %40 : vector<1x32xf32> to vector<16x32xf32>
    %131 = arith.mulf %123, %130 : vector<16x32xf32>
    %132 = vector.broadcast %47 : vector<1x32xf32> to vector<16x32xf32>
    %133 = arith.mulf %123, %132 : vector<16x32xf32>
    %134 = tpu.concatenate %127, %129, %131, %133 in 0 : vector<16x32xf32>, vector<16x32xf32>, vector<16x32xf32>, vector<16x32xf32> -> vector<64x32xf32>
    %135 = arith.truncf %134 : vector<64x32xf32> to vector<64x32xbf16>
    %136 = arith.truncf %124 : vector<16x32xf32> to vector<16x32xbf16>
    %cst_40 = arith.constant dense<0.000000e+00> : vector<64x16xf32>
    %137 = tpu.matmul %135, %136, %cst_40 {dimension_numbers = #tpu.dot_dimension_numbers<[1], [1], [0], [0], [0, 0, 1, 0], [], []>} : vector<64x32xbf16>, vector<16x32xbf16>, vector<64x16xf32> -> vector<64x16xf32>
    %cst_41 = arith.constant -1.000000e+30 : f32
    %138 = vector.broadcast %cst_41 : f32 to vector<64x16xf32>
    %139 = arith.select %18, %137, %138 : vector<64x16xi1>, vector<64x16xf32>
    %cst_42 = arith.constant dense<0xFF800000> : vector<64xf32>
    %140 = vector.multi_reduction <maximumf>, %139, %cst_42 [1] : vector<64x16xf32> to vector<64xf32>
    %141 = vector.shape_cast %140 : vector<64xf32> to vector<64x1xf32>
    %142 = vector.broadcast %141 : vector<64x1xf32> to vector<64x16xf32>
    %143 = arith.subf %139, %142 : vector<64x16xf32>
    %144 = math.exp %143 : vector<64x16xf32>
    %cst_43 = arith.constant dense<0.000000e+00> : vector<64xf32>
    %145 = vector.multi_reduction <add>, %144, %cst_43 [1] : vector<64x16xf32> to vector<64xf32>
    %146 = vector.shape_cast %145 : vector<64xf32> to vector<64x1xf32>
    %147 = tpu.reciprocal %146 {approx = true} : vector<64x1xf32> -> vector<64x1xf32>
    %148 = vector.broadcast %147 : vector<64x1xf32> to vector<64x16xf32>
    %149 = arith.mulf %144, %148 : vector<64x16xf32>
    %150 = arith.truncf %149 : vector<64x16xf32> to vector<64x16xbf16>
    %151 = arith.truncf %125 : vector<16x32xf32> to vector<16x32xbf16>
    %cst_44 = arith.constant dense<0.000000e+00> : vector<64x32xf32>
    %152 = tpu.matmul %150, %151, %cst_44 {dimension_numbers = #tpu.dot_dimension_numbers<[1], [0], [0], [1], [0, 0, 1, 1], [], []>} : vector<64x16xbf16>, vector<16x32xbf16>, vector<64x32xf32> -> vector<64x32xf32>
    %153 = vector.extract_strided_slice %152 {offsets = [0, 0], sizes = [16, 32], strides = [1, 1]} : vector<64x32xf32> to vector<16x32xf32>
    %154 = vector.broadcast %26 : vector<1x32xf32> to vector<16x32xf32>
    %155 = arith.mulf %153, %154 : vector<16x32xf32>
    %cst_45 = arith.constant 0.000000e+00 : f32
    %156 = vector.broadcast %cst_45 : f32 to vector<16x32xf32>
    %157 = arith.addf %156, %155 : vector<16x32xf32>
    %158 = vector.extract_strided_slice %152 {offsets = [16, 0], sizes = [16, 32], strides = [1, 1]} : vector<64x32xf32> to vector<16x32xf32>
    %159 = vector.broadcast %33 : vector<1x32xf32> to vector<16x32xf32>
    %160 = arith.mulf %158, %159 : vector<16x32xf32>
    %161 = arith.addf %157, %160 : vector<16x32xf32>
    %162 = vector.extract_strided_slice %152 {offsets = [32, 0], sizes = [16, 32], strides = [1, 1]} : vector<64x32xf32> to vector<16x32xf32>
    %163 = vector.broadcast %40 : vector<1x32xf32> to vector<16x32xf32>
    %164 = arith.mulf %162, %163 : vector<16x32xf32>
    %165 = arith.addf %161, %164 : vector<16x32xf32>
    %166 = vector.extract_strided_slice %152 {offsets = [48, 0], sizes = [16, 32], strides = [1, 1]} : vector<64x32xf32> to vector<16x32xf32>
    %167 = vector.broadcast %47 : vector<1x32xf32> to vector<16x32xf32>
    %168 = arith.mulf %166, %167 : vector<16x32xf32>
    %169 = arith.addf %165, %168 : vector<16x32xf32>
    %170 = arith.truncf %169 : vector<16x32xf32> to vector<16x32xbf16>
    %cst_46 = arith.constant dense<0.000000e+00> : vector<16x32xf32>
    %171 = tpu.matmul %170, %92, %cst_46 {dimension_numbers = #tpu.dot_dimension_numbers<[1], [0], [0], [1], [0, 0, 1, 1], [], []>} : vector<16x32xbf16>, vector<32x32xbf16>, vector<16x32xf32> -> vector<16x32xf32>
    %172 = arith.addf %75, %171 : vector<16x32xf32>
    %173 = vector.broadcast %83 : vector<1x32xf32> to vector<16x32xf32>
    %174 = arith.addf %172, %173 : vector<16x32xf32>
    %cst_47 = arith.constant dense<0.000000e+00> : vector<16xf32>
    %175 = vector.multi_reduction <add>, %174, %cst_47 [1] : vector<16x32xf32> to vector<16xf32>
    %176 = vector.shape_cast %175 : vector<16xf32> to vector<16x1xf32>
    %cst_48 = arith.constant 3.200000e+01 : f32
    %177 = vector.broadcast %cst_48 : f32 to vector<16x1xf32>
    %178 = arith.divf %176, %177 : vector<16x1xf32>
    %179 = vector.broadcast %178 : vector<16x1xf32> to vector<16x32xf32>
    %180 = arith.subf %174, %179 : vector<16x32xf32>
    %181 = arith.mulf %180, %180 : vector<16x32xf32>
    %cst_49 = arith.constant dense<0.000000e+00> : vector<16xf32>
    %182 = vector.multi_reduction <add>, %181, %cst_49 [1] : vector<16x32xf32> to vector<16xf32>
    %183 = vector.shape_cast %182 : vector<16xf32> to vector<16x1xf32>
    %cst_50 = arith.constant 3.200000e+01 : f32
    %184 = vector.broadcast %cst_50 : f32 to vector<16x1xf32>
    %185 = arith.divf %183, %184 : vector<16x1xf32>
    %186 = vector.broadcast %178 : vector<16x1xf32> to vector<16x32xf32>
    %187 = arith.subf %174, %186 : vector<16x32xf32>
    %cst_51 = arith.constant 9.99999974E-6 : f32
    %188 = vector.broadcast %cst_51 : f32 to vector<16x1xf32>
    %189 = arith.addf %185, %188 : vector<16x1xf32>
    %190 = math.rsqrt %189 : vector<16x1xf32>
    %191 = vector.broadcast %190 : vector<16x1xf32> to vector<16x32xf32>
    %192 = arith.mulf %187, %191 : vector<16x32xf32>
    %193 = vector.broadcast %81 : vector<1x32xf32> to vector<16x32xf32>
    %194 = arith.mulf %192, %193 : vector<16x32xf32>
    %195 = vector.broadcast %82 : vector<1x32xf32> to vector<16x32xf32>
    %196 = arith.addf %194, %195 : vector<16x32xf32>
    %197 = arith.truncf %196 : vector<16x32xf32> to vector<16x32xbf16>
    %cst_52 = arith.constant dense<0.000000e+00> : vector<16x128xf32>
    %198 = tpu.matmul %197, %94, %cst_52 {dimension_numbers = #tpu.dot_dimension_numbers<[1], [0], [0], [1], [0, 0, 1, 1], [], []>} : vector<16x32xbf16>, vector<32x128xbf16>, vector<16x128xf32> -> vector<16x128xf32>
    %199 = vector.broadcast %88 : vector<1x128xf32> to vector<16x128xf32>
    %200 = arith.addf %198, %199 : vector<16x128xf32>
    %201 = arith.mulf %200, %200 : vector<16x128xf32>
    %202 = arith.mulf %200, %201 : vector<16x128xf32>
    %cst_53 = arith.constant 4.471500e-02 : f32
    %203 = vector.broadcast %cst_53 : f32 to vector<16x128xf32>
    %204 = arith.mulf %203, %202 : vector<16x128xf32>
    %205 = arith.addf %200, %204 : vector<16x128xf32>
    %cst_54 = arith.constant 0.797884583 : f32
    %206 = vector.broadcast %cst_54 : f32 to vector<16x128xf32>
    %207 = arith.mulf %206, %205 : vector<16x128xf32>
    %208 = math.tanh %207 : vector<16x128xf32>
    %cst_55 = arith.constant 1.000000e+00 : f32
    %209 = vector.broadcast %cst_55 : f32 to vector<16x128xf32>
    %210 = arith.addf %209, %208 : vector<16x128xf32>
    %cst_56 = arith.constant 5.000000e-01 : f32
    %211 = vector.broadcast %cst_56 : f32 to vector<16x128xf32>
    %212 = arith.mulf %211, %210 : vector<16x128xf32>
    %213 = arith.mulf %200, %212 : vector<16x128xf32>
    %214 = arith.truncf %213 : vector<16x128xf32> to vector<16x128xbf16>
    %cst_57 = arith.constant dense<0.000000e+00> : vector<16x32xf32>
    %215 = tpu.matmul %214, %96, %cst_57 {dimension_numbers = #tpu.dot_dimension_numbers<[1], [0], [0], [1], [0, 0, 1, 1], [], []>} : vector<16x128xbf16>, vector<128x32xbf16>, vector<16x32xf32> -> vector<16x32xf32>
    %216 = arith.addf %174, %215 : vector<16x32xf32>
    %217 = vector.broadcast %84 : vector<1x32xf32> to vector<16x32xf32>
    %218 = arith.addf %216, %217 : vector<16x32xf32>
    %219 = arith.truncf %218 : vector<16x32xf32> to vector<16x32xbf16>
    %cst_58 = arith.constant dense<0.000000e+00> : vector<8x32xf32>
    %220 = tpu.matmul %55, %219, %cst_58 {dimension_numbers = #tpu.dot_dimension_numbers<[1], [0], [0], [1], [0, 0, 1, 1], [], []>} : vector<8x16xbf16>, vector<16x32xbf16>, vector<8x32xf32> -> vector<8x32xf32>
    %cst_59 = arith.constant dense<0.000000e+00> : vector<8x32xf32>
    %221 = tpu.matmul %63, %219, %cst_59 {dimension_numbers = #tpu.dot_dimension_numbers<[1], [0], [0], [1], [0, 0, 1, 1], [], []>} : vector<8x16xbf16>, vector<16x32xbf16>, vector<8x32xf32> -> vector<8x32xf32>
    %222 = arith.truncf %220 : vector<8x32xf32> to vector<8x32xbf16>
    %cst_60 = arith.constant dense<0.000000e+00> : vector<8x32xf32>
    %223 = tpu.matmul %222, %65, %cst_60 {dimension_numbers = #tpu.dot_dimension_numbers<[1], [0], [0], [1], [0, 0, 1, 1], [], []>} : vector<8x32xbf16>, vector<32x32xbf16>, vector<8x32xf32> -> vector<8x32xf32>
    %224 = arith.truncf %221 : vector<8x32xf32> to vector<8x32xbf16>
    %cst_61 = arith.constant dense<0.000000e+00> : vector<8x32xf32>
    %225 = tpu.matmul %224, %66, %cst_61 {dimension_numbers = #tpu.dot_dimension_numbers<[1], [0], [0], [1], [0, 0, 1, 1], [], []>} : vector<8x32xbf16>, vector<32x32xbf16>, vector<8x32xf32> -> vector<8x32xf32>
    %226 = arith.addf %223, %225 : vector<8x32xf32>
    %227 = vector.broadcast %69 : vector<1x32xf32> to vector<8x32xf32>
    %228 = arith.addf %226, %227 : vector<8x32xf32>
    %229 = vector.extract_strided_slice %67 {offsets = [0, 64], sizes = [1, 1], strides = [1, 1]} : vector<1x68xf32> to vector<1x1xf32>
    %230 = vector.shape_cast %228 : vector<8x32xf32> to vector<1x8x32xf32>
    %cst_62 = arith.constant dense<0.000000e+00> : vector<1xf32>
    %231 = vector.multi_reduction <add>, %230, %cst_62 [1, 2] : vector<1x8x32xf32> to vector<1xf32>
    %232 = vector.shape_cast %231 : vector<1xf32> to vector<1x1x1xf32>
    %233 = vector.extract %232[0, 0, 0] : f32 from vector<1x1x1xf32>
    %234 = vector.broadcast %233 : f32 to vector<1x1xf32>
    %cst_63 = arith.constant 2.560000e+02 : f32
    %235 = vector.broadcast %cst_63 : f32 to vector<1x1xf32>
    %236 = arith.divf %234, %235 : vector<1x1xf32>
    %237 = vector.broadcast %236 : vector<1x1xf32> to vector<8x32xf32>
    %238 = arith.subf %228, %237 : vector<8x32xf32>
    %239 = arith.mulf %238, %238 : vector<8x32xf32>
    %240 = vector.shape_cast %239 : vector<8x32xf32> to vector<1x8x32xf32>
    %cst_64 = arith.constant dense<0.000000e+00> : vector<1xf32>
    %241 = vector.multi_reduction <add>, %240, %cst_64 [1, 2] : vector<1x8x32xf32> to vector<1xf32>
    %242 = vector.shape_cast %241 : vector<1xf32> to vector<1x1x1xf32>
    %243 = vector.extract %242[0, 0, 0] : f32 from vector<1x1x1xf32>
    %244 = vector.broadcast %243 : f32 to vector<1x1xf32>
    %cst_65 = arith.constant 2.560000e+02 : f32
    %245 = vector.broadcast %cst_65 : f32 to vector<1x1xf32>
    %246 = arith.divf %244, %245 : vector<1x1xf32>
    %247 = vector.broadcast %236 : vector<1x1xf32> to vector<8x32xf32>
    %248 = arith.subf %228, %247 : vector<8x32xf32>
    %cst_66 = arith.constant 9.99999974E-6 : f32
    %249 = vector.broadcast %cst_66 : f32 to vector<1x1xf32>
    %250 = arith.addf %246, %249 : vector<1x1xf32>
    %251 = math.rsqrt %250 : vector<1x1xf32>
    %252 = arith.mulf %229, %251 : vector<1x1xf32>
    %253 = vector.broadcast %252 : vector<1x1xf32> to vector<8x32xf32>
    %254 = arith.mulf %248, %253 : vector<8x32xf32>
    %255 = arith.addf %76, %254 : vector<8x32xf32>
    %c1 = arith.constant 1 : index
    %c0_67 = arith.constant 0 : index
    %c0_68 = arith.constant 0 : index
    %256 = vector.load %arg6[%c1, %c0_67, %c0_68] : memref<4x6x32xf32, #tpu.memory_space<vmem>>, vector<1x6x32xf32>
    %257 = vector.shape_cast %256 : vector<1x6x32xf32> to vector<6x32xf32>
    %258 = vector.extract_strided_slice %257 {offsets = [0, 0], sizes = [1, 32], strides = [1, 1]} : vector<6x32xf32> to vector<1x32xf32>
    %259 = vector.extract_strided_slice %257 {offsets = [1, 0], sizes = [1, 32], strides = [1, 1]} : vector<6x32xf32> to vector<1x32xf32>
    %260 = vector.extract_strided_slice %257 {offsets = [2, 0], sizes = [1, 32], strides = [1, 1]} : vector<6x32xf32> to vector<1x32xf32>
    %261 = vector.extract_strided_slice %257 {offsets = [3, 0], sizes = [1, 32], strides = [1, 1]} : vector<6x32xf32> to vector<1x32xf32>
    %262 = vector.extract_strided_slice %257 {offsets = [4, 0], sizes = [1, 32], strides = [1, 1]} : vector<6x32xf32> to vector<1x32xf32>
    %263 = vector.extract_strided_slice %257 {offsets = [5, 0], sizes = [1, 32], strides = [1, 1]} : vector<6x32xf32> to vector<1x32xf32>
    %c1_69 = arith.constant 1 : index
    %c0_70 = arith.constant 0 : index
    %c0_71 = arith.constant 0 : index
    %264 = vector.load %arg7[%c1_69, %c0_70, %c0_71] : memref<4x2x128xf32, #tpu.memory_space<vmem>>, vector<1x2x128xf32>
    %265 = vector.shape_cast %264 : vector<1x2x128xf32> to vector<2x128xf32>
    %266 = vector.extract_strided_slice %265 {offsets = [0, 0], sizes = [1, 96], strides = [1, 1]} : vector<2x128xf32> to vector<1x96xf32>
    %267 = vector.extract_strided_slice %265 {offsets = [1, 0], sizes = [1, 128], strides = [1, 1]} : vector<2x128xf32> to vector<1x128xf32>
    %c1_72 = arith.constant 1 : index
    %c0_73 = arith.constant 0 : index
    %c0_74 = arith.constant 0 : index
    %268 = vector.load %arg3[%c1_72, %c0_73, %c0_74] : memref<4x32x128xbf16, #tpu.memory_space<vmem>>, vector<1x32x128xbf16>
    %269 = vector.shape_cast %268 : vector<1x32x128xbf16> to vector<32x128xbf16>
    %270 = vector.extract_strided_slice %269 {offsets = [0, 0], sizes = [32, 96], strides = [1, 1]} : vector<32x128xbf16> to vector<32x96xbf16>
    %271 = vector.extract_strided_slice %269 {offsets = [0, 96], sizes = [32, 32], strides = [1, 1]} : vector<32x128xbf16> to vector<32x32xbf16>
    %c1_75 = arith.constant 1 : index
    %c0_76 = arith.constant 0 : index
    %c0_77 = arith.constant 0 : index
    %272 = vector.load %arg4[%c1_75, %c0_76, %c0_77] : memref<4x32x128xbf16, #tpu.memory_space<vmem>>, vector<1x32x128xbf16>
    %273 = vector.shape_cast %272 : vector<1x32x128xbf16> to vector<32x128xbf16>
    %c1_78 = arith.constant 1 : index
    %c0_79 = arith.constant 0 : index
    %c0_80 = arith.constant 0 : index
    %274 = vector.load %arg5[%c1_78, %c0_79, %c0_80] : memref<4x128x32xbf16, #tpu.memory_space<vmem>>, vector<1x128x32xbf16>
    %275 = vector.shape_cast %274 : vector<1x128x32xbf16> to vector<128x32xbf16>
    %cst_81 = arith.constant dense<0.000000e+00> : vector<16xf32>
    %276 = vector.multi_reduction <add>, %218, %cst_81 [1] : vector<16x32xf32> to vector<16xf32>
    %277 = vector.shape_cast %276 : vector<16xf32> to vector<16x1xf32>
    %cst_82 = arith.constant 3.200000e+01 : f32
    %278 = vector.broadcast %cst_82 : f32 to vector<16x1xf32>
    %279 = arith.divf %277, %278 : vector<16x1xf32>
    %280 = vector.broadcast %279 : vector<16x1xf32> to vector<16x32xf32>
    %281 = arith.subf %218, %280 : vector<16x32xf32>
    %282 = arith.mulf %281, %281 : vector<16x32xf32>
    %cst_83 = arith.constant dense<0.000000e+00> : vector<16xf32>
    %283 = vector.multi_reduction <add>, %282, %cst_83 [1] : vector<16x32xf32> to vector<16xf32>
    %284 = vector.shape_cast %283 : vector<16xf32> to vector<16x1xf32>
    %cst_84 = arith.constant 3.200000e+01 : f32
    %285 = vector.broadcast %cst_84 : f32 to vector<16x1xf32>
    %286 = arith.divf %284, %285 : vector<16x1xf32>
    %287 = vector.broadcast %279 : vector<16x1xf32> to vector<16x32xf32>
    %288 = arith.subf %218, %287 : vector<16x32xf32>
    %cst_85 = arith.constant 9.99999974E-6 : f32
    %289 = vector.broadcast %cst_85 : f32 to vector<16x1xf32>
    %290 = arith.addf %286, %289 : vector<16x1xf32>
    %291 = math.rsqrt %290 : vector<16x1xf32>
    %292 = vector.broadcast %291 : vector<16x1xf32> to vector<16x32xf32>
    %293 = arith.mulf %288, %292 : vector<16x32xf32>
    %294 = vector.broadcast %258 : vector<1x32xf32> to vector<16x32xf32>
    %295 = arith.mulf %293, %294 : vector<16x32xf32>
    %296 = vector.broadcast %259 : vector<1x32xf32> to vector<16x32xf32>
    %297 = arith.addf %295, %296 : vector<16x32xf32>
    %298 = arith.truncf %297 : vector<16x32xf32> to vector<16x32xbf16>
    %cst_86 = arith.constant dense<0.000000e+00> : vector<16x96xf32>
    %299 = tpu.matmul %298, %270, %cst_86 {dimension_numbers = #tpu.dot_dimension_numbers<[1], [0], [0], [1], [0, 0, 1, 1], [], []>} : vector<16x32xbf16>, vector<32x96xbf16>, vector<16x96xf32> -> vector<16x96xf32>
    %300 = vector.broadcast %266 : vector<1x96xf32> to vector<16x96xf32>
    %301 = arith.addf %299, %300 : vector<16x96xf32>
    %302 = vector.extract_strided_slice %301 {offsets = [0, 0], sizes = [16, 32], strides = [1, 1]} : vector<16x96xf32> to vector<16x32xf32>
    %303 = vector.extract_strided_slice %301 {offsets = [0, 32], sizes = [16, 32], strides = [1, 1]} : vector<16x96xf32> to vector<16x32xf32>
    %304 = vector.extract_strided_slice %301 {offsets = [0, 64], sizes = [16, 32], strides = [1, 1]} : vector<16x96xf32> to vector<16x32xf32>
    %305 = vector.broadcast %26 : vector<1x32xf32> to vector<16x32xf32>
    %306 = arith.mulf %302, %305 : vector<16x32xf32>
    %307 = vector.broadcast %33 : vector<1x32xf32> to vector<16x32xf32>
    %308 = arith.mulf %302, %307 : vector<16x32xf32>
    %309 = vector.broadcast %40 : vector<1x32xf32> to vector<16x32xf32>
    %310 = arith.mulf %302, %309 : vector<16x32xf32>
    %311 = vector.broadcast %47 : vector<1x32xf32> to vector<16x32xf32>
    %312 = arith.mulf %302, %311 : vector<16x32xf32>
    %313 = tpu.concatenate %306, %308, %310, %312 in 0 : vector<16x32xf32>, vector<16x32xf32>, vector<16x32xf32>, vector<16x32xf32> -> vector<64x32xf32>
    %314 = arith.truncf %313 : vector<64x32xf32> to vector<64x32xbf16>
    %315 = arith.truncf %303 : vector<16x32xf32> to vector<16x32xbf16>
    %cst_87 = arith.constant dense<0.000000e+00> : vector<64x16xf32>
    %316 = tpu.matmul %314, %315, %cst_87 {dimension_numbers = #tpu.dot_dimension_numbers<[1], [1], [0], [0], [0, 0, 1, 0], [], []>} : vector<64x32xbf16>, vector<16x32xbf16>, vector<64x16xf32> -> vector<64x16xf32>
    %cst_88 = arith.constant -1.000000e+30 : f32
    %317 = vector.broadcast %cst_88 : f32 to vector<64x16xf32>
    %318 = arith.select %18, %316, %317 : vector<64x16xi1>, vector<64x16xf32>
    %cst_89 = arith.constant dense<0xFF800000> : vector<64xf32>
    %319 = vector.multi_reduction <maximumf>, %318, %cst_89 [1] : vector<64x16xf32> to vector<64xf32>
    %320 = vector.shape_cast %319 : vector<64xf32> to vector<64x1xf32>
    %321 = vector.broadcast %320 : vector<64x1xf32> to vector<64x16xf32>
    %322 = arith.subf %318, %321 : vector<64x16xf32>
    %323 = math.exp %322 : vector<64x16xf32>
    %cst_90 = arith.constant dense<0.000000e+00> : vector<64xf32>
    %324 = vector.multi_reduction <add>, %323, %cst_90 [1] : vector<64x16xf32> to vector<64xf32>
    %325 = vector.shape_cast %324 : vector<64xf32> to vector<64x1xf32>
    %326 = tpu.reciprocal %325 {approx = true} : vector<64x1xf32> -> vector<64x1xf32>
    %327 = vector.broadcast %326 : vector<64x1xf32> to vector<64x16xf32>
    %328 = arith.mulf %323, %327 : vector<64x16xf32>
    %329 = arith.truncf %328 : vector<64x16xf32> to vector<64x16xbf16>
    %330 = arith.truncf %304 : vector<16x32xf32> to vector<16x32xbf16>
    %cst_91 = arith.constant dense<0.000000e+00> : vector<64x32xf32>
    %331 = tpu.matmul %329, %330, %cst_91 {dimension_numbers = #tpu.dot_dimension_numbers<[1], [0], [0], [1], [0, 0, 1, 1], [], []>} : vector<64x16xbf16>, vector<16x32xbf16>, vector<64x32xf32> -> vector<64x32xf32>
    %332 = vector.extract_strided_slice %331 {offsets = [0, 0], sizes = [16, 32], strides = [1, 1]} : vector<64x32xf32> to vector<16x32xf32>
    %333 = vector.broadcast %26 : vector<1x32xf32> to vector<16x32xf32>
    %334 = arith.mulf %332, %333 : vector<16x32xf32>
    %cst_92 = arith.constant 0.000000e+00 : f32
    %335 = vector.broadcast %cst_92 : f32 to vector<16x32xf32>
    %336 = arith.addf %335, %334 : vector<16x32xf32>
    %337 = vector.extract_strided_slice %331 {offsets = [16, 0], sizes = [16, 32], strides = [1, 1]} : vector<64x32xf32> to vector<16x32xf32>
    %338 = vector.broadcast %33 : vector<1x32xf32> to vector<16x32xf32>
    %339 = arith.mulf %337, %338 : vector<16x32xf32>
    %340 = arith.addf %336, %339 : vector<16x32xf32>
    %341 = vector.extract_strided_slice %331 {offsets = [32, 0], sizes = [16, 32], strides = [1, 1]} : vector<64x32xf32> to vector<16x32xf32>
    %342 = vector.broadcast %40 : vector<1x32xf32> to vector<16x32xf32>
    %343 = arith.mulf %341, %342 : vector<16x32xf32>
    %344 = arith.addf %340, %343 : vector<16x32xf32>
    %345 = vector.extract_strided_slice %331 {offsets = [48, 0], sizes = [16, 32], strides = [1, 1]} : vector<64x32xf32> to vector<16x32xf32>
    %346 = vector.broadcast %47 : vector<1x32xf32> to vector<16x32xf32>
    %347 = arith.mulf %345, %346 : vector<16x32xf32>
    %348 = arith.addf %344, %347 : vector<16x32xf32>
    %349 = arith.truncf %348 : vector<16x32xf32> to vector<16x32xbf16>
    %cst_93 = arith.constant dense<0.000000e+00> : vector<16x32xf32>
    %350 = tpu.matmul %349, %271, %cst_93 {dimension_numbers = #tpu.dot_dimension_numbers<[1], [0], [0], [1], [0, 0, 1, 1], [], []>} : vector<16x32xbf16>, vector<32x32xbf16>, vector<16x32xf32> -> vector<16x32xf32>
    %351 = arith.addf %218, %350 : vector<16x32xf32>
    %352 = vector.broadcast %262 : vector<1x32xf32> to vector<16x32xf32>
    %353 = arith.addf %351, %352 : vector<16x32xf32>
    %cst_94 = arith.constant dense<0.000000e+00> : vector<16xf32>
    %354 = vector.multi_reduction <add>, %353, %cst_94 [1] : vector<16x32xf32> to vector<16xf32>
    %355 = vector.shape_cast %354 : vector<16xf32> to vector<16x1xf32>
    %cst_95 = arith.constant 3.200000e+01 : f32
    %356 = vector.broadcast %cst_95 : f32 to vector<16x1xf32>
    %357 = arith.divf %355, %356 : vector<16x1xf32>
    %358 = vector.broadcast %357 : vector<16x1xf32> to vector<16x32xf32>
    %359 = arith.subf %353, %358 : vector<16x32xf32>
    %360 = arith.mulf %359, %359 : vector<16x32xf32>
    %cst_96 = arith.constant dense<0.000000e+00> : vector<16xf32>
    %361 = vector.multi_reduction <add>, %360, %cst_96 [1] : vector<16x32xf32> to vector<16xf32>
    %362 = vector.shape_cast %361 : vector<16xf32> to vector<16x1xf32>
    %cst_97 = arith.constant 3.200000e+01 : f32
    %363 = vector.broadcast %cst_97 : f32 to vector<16x1xf32>
    %364 = arith.divf %362, %363 : vector<16x1xf32>
    %365 = vector.broadcast %357 : vector<16x1xf32> to vector<16x32xf32>
    %366 = arith.subf %353, %365 : vector<16x32xf32>
    %cst_98 = arith.constant 9.99999974E-6 : f32
    %367 = vector.broadcast %cst_98 : f32 to vector<16x1xf32>
    %368 = arith.addf %364, %367 : vector<16x1xf32>
    %369 = math.rsqrt %368 : vector<16x1xf32>
    %370 = vector.broadcast %369 : vector<16x1xf32> to vector<16x32xf32>
    %371 = arith.mulf %366, %370 : vector<16x32xf32>
    %372 = vector.broadcast %260 : vector<1x32xf32> to vector<16x32xf32>
    %373 = arith.mulf %371, %372 : vector<16x32xf32>
    %374 = vector.broadcast %261 : vector<1x32xf32> to vector<16x32xf32>
    %375 = arith.addf %373, %374 : vector<16x32xf32>
    %376 = arith.truncf %375 : vector<16x32xf32> to vector<16x32xbf16>
    %cst_99 = arith.constant dense<0.000000e+00> : vector<16x128xf32>
    %377 = tpu.matmul %376, %273, %cst_99 {dimension_numbers = #tpu.dot_dimension_numbers<[1], [0], [0], [1], [0, 0, 1, 1], [], []>} : vector<16x32xbf16>, vector<32x128xbf16>, vector<16x128xf32> -> vector<16x128xf32>
    %378 = vector.broadcast %267 : vector<1x128xf32> to vector<16x128xf32>
    %379 = arith.addf %377, %378 : vector<16x128xf32>
    %380 = arith.mulf %379, %379 : vector<16x128xf32>
    %381 = arith.mulf %379, %380 : vector<16x128xf32>
    %cst_100 = arith.constant 4.471500e-02 : f32
    %382 = vector.broadcast %cst_100 : f32 to vector<16x128xf32>
    %383 = arith.mulf %382, %381 : vector<16x128xf32>
    %384 = arith.addf %379, %383 : vector<16x128xf32>
    %cst_101 = arith.constant 0.797884583 : f32
    %385 = vector.broadcast %cst_101 : f32 to vector<16x128xf32>
    %386 = arith.mulf %385, %384 : vector<16x128xf32>
    %387 = math.tanh %386 : vector<16x128xf32>
    %cst_102 = arith.constant 1.000000e+00 : f32
    %388 = vector.broadcast %cst_102 : f32 to vector<16x128xf32>
    %389 = arith.addf %388, %387 : vector<16x128xf32>
    %cst_103 = arith.constant 5.000000e-01 : f32
    %390 = vector.broadcast %cst_103 : f32 to vector<16x128xf32>
    %391 = arith.mulf %390, %389 : vector<16x128xf32>
    %392 = arith.mulf %379, %391 : vector<16x128xf32>
    %393 = arith.truncf %392 : vector<16x128xf32> to vector<16x128xbf16>
    %cst_104 = arith.constant dense<0.000000e+00> : vector<16x32xf32>
    %394 = tpu.matmul %393, %275, %cst_104 {dimension_numbers = #tpu.dot_dimension_numbers<[1], [0], [0], [1], [0, 0, 1, 1], [], []>} : vector<16x128xbf16>, vector<128x32xbf16>, vector<16x32xf32> -> vector<16x32xf32>
    %395 = arith.addf %353, %394 : vector<16x32xf32>
    %396 = vector.broadcast %263 : vector<1x32xf32> to vector<16x32xf32>
    %397 = arith.addf %395, %396 : vector<16x32xf32>
    %398 = arith.truncf %397 : vector<16x32xf32> to vector<16x32xbf16>
    %cst_105 = arith.constant dense<0.000000e+00> : vector<8x32xf32>
    %399 = tpu.matmul %55, %398, %cst_105 {dimension_numbers = #tpu.dot_dimension_numbers<[1], [0], [0], [1], [0, 0, 1, 1], [], []>} : vector<8x16xbf16>, vector<16x32xbf16>, vector<8x32xf32> -> vector<8x32xf32>
    %cst_106 = arith.constant dense<0.000000e+00> : vector<8x32xf32>
    %400 = tpu.matmul %63, %398, %cst_106 {dimension_numbers = #tpu.dot_dimension_numbers<[1], [0], [0], [1], [0, 0, 1, 1], [], []>} : vector<8x16xbf16>, vector<16x32xbf16>, vector<8x32xf32> -> vector<8x32xf32>
    %401 = arith.truncf %399 : vector<8x32xf32> to vector<8x32xbf16>
    %cst_107 = arith.constant dense<0.000000e+00> : vector<8x32xf32>
    %402 = tpu.matmul %401, %65, %cst_107 {dimension_numbers = #tpu.dot_dimension_numbers<[1], [0], [0], [1], [0, 0, 1, 1], [], []>} : vector<8x32xbf16>, vector<32x32xbf16>, vector<8x32xf32> -> vector<8x32xf32>
    %403 = arith.truncf %400 : vector<8x32xf32> to vector<8x32xbf16>
    %cst_108 = arith.constant dense<0.000000e+00> : vector<8x32xf32>
    %404 = tpu.matmul %403, %66, %cst_108 {dimension_numbers = #tpu.dot_dimension_numbers<[1], [0], [0], [1], [0, 0, 1, 1], [], []>} : vector<8x32xbf16>, vector<32x32xbf16>, vector<8x32xf32> -> vector<8x32xf32>
    %405 = arith.addf %402, %404 : vector<8x32xf32>
    %406 = vector.broadcast %69 : vector<1x32xf32> to vector<8x32xf32>
    %407 = arith.addf %405, %406 : vector<8x32xf32>
    %408 = vector.extract_strided_slice %67 {offsets = [0, 65], sizes = [1, 1], strides = [1, 1]} : vector<1x68xf32> to vector<1x1xf32>
    %409 = vector.shape_cast %407 : vector<8x32xf32> to vector<1x8x32xf32>
    %cst_109 = arith.constant dense<0.000000e+00> : vector<1xf32>
    %410 = vector.multi_reduction <add>, %409, %cst_109 [1, 2] : vector<1x8x32xf32> to vector<1xf32>
    %411 = vector.shape_cast %410 : vector<1xf32> to vector<1x1x1xf32>
    %412 = vector.extract %411[0, 0, 0] : f32 from vector<1x1x1xf32>
    %413 = vector.broadcast %412 : f32 to vector<1x1xf32>
    %cst_110 = arith.constant 2.560000e+02 : f32
    %414 = vector.broadcast %cst_110 : f32 to vector<1x1xf32>
    %415 = arith.divf %413, %414 : vector<1x1xf32>
    %416 = vector.broadcast %415 : vector<1x1xf32> to vector<8x32xf32>
    %417 = arith.subf %407, %416 : vector<8x32xf32>
    %418 = arith.mulf %417, %417 : vector<8x32xf32>
    %419 = vector.shape_cast %418 : vector<8x32xf32> to vector<1x8x32xf32>
    %cst_111 = arith.constant dense<0.000000e+00> : vector<1xf32>
    %420 = vector.multi_reduction <add>, %419, %cst_111 [1, 2] : vector<1x8x32xf32> to vector<1xf32>
    %421 = vector.shape_cast %420 : vector<1xf32> to vector<1x1x1xf32>
    %422 = vector.extract %421[0, 0, 0] : f32 from vector<1x1x1xf32>
    %423 = vector.broadcast %422 : f32 to vector<1x1xf32>
    %cst_112 = arith.constant 2.560000e+02 : f32
    %424 = vector.broadcast %cst_112 : f32 to vector<1x1xf32>
    %425 = arith.divf %423, %424 : vector<1x1xf32>
    %426 = vector.broadcast %415 : vector<1x1xf32> to vector<8x32xf32>
    %427 = arith.subf %407, %426 : vector<8x32xf32>
    %cst_113 = arith.constant 9.99999974E-6 : f32
    %428 = vector.broadcast %cst_113 : f32 to vector<1x1xf32>
    %429 = arith.addf %425, %428 : vector<1x1xf32>
    %430 = math.rsqrt %429 : vector<1x1xf32>
    %431 = arith.mulf %408, %430 : vector<1x1xf32>
    %432 = vector.broadcast %431 : vector<1x1xf32> to vector<8x32xf32>
    %433 = arith.mulf %427, %432 : vector<8x32xf32>
    %434 = arith.addf %255, %433 : vector<8x32xf32>
    %c2 = arith.constant 2 : index
    %c0_114 = arith.constant 0 : index
    %c0_115 = arith.constant 0 : index
    %435 = vector.load %arg6[%c2, %c0_114, %c0_115] : memref<4x6x32xf32, #tpu.memory_space<vmem>>, vector<1x6x32xf32>
    %436 = vector.shape_cast %435 : vector<1x6x32xf32> to vector<6x32xf32>
    %437 = vector.extract_strided_slice %436 {offsets = [0, 0], sizes = [1, 32], strides = [1, 1]} : vector<6x32xf32> to vector<1x32xf32>
    %438 = vector.extract_strided_slice %436 {offsets = [1, 0], sizes = [1, 32], strides = [1, 1]} : vector<6x32xf32> to vector<1x32xf32>
    %439 = vector.extract_strided_slice %436 {offsets = [2, 0], sizes = [1, 32], strides = [1, 1]} : vector<6x32xf32> to vector<1x32xf32>
    %440 = vector.extract_strided_slice %436 {offsets = [3, 0], sizes = [1, 32], strides = [1, 1]} : vector<6x32xf32> to vector<1x32xf32>
    %441 = vector.extract_strided_slice %436 {offsets = [4, 0], sizes = [1, 32], strides = [1, 1]} : vector<6x32xf32> to vector<1x32xf32>
    %442 = vector.extract_strided_slice %436 {offsets = [5, 0], sizes = [1, 32], strides = [1, 1]} : vector<6x32xf32> to vector<1x32xf32>
    %c2_116 = arith.constant 2 : index
    %c0_117 = arith.constant 0 : index
    %c0_118 = arith.constant 0 : index
    %443 = vector.load %arg7[%c2_116, %c0_117, %c0_118] : memref<4x2x128xf32, #tpu.memory_space<vmem>>, vector<1x2x128xf32>
    %444 = vector.shape_cast %443 : vector<1x2x128xf32> to vector<2x128xf32>
    %445 = vector.extract_strided_slice %444 {offsets = [0, 0], sizes = [1, 96], strides = [1, 1]} : vector<2x128xf32> to vector<1x96xf32>
    %446 = vector.extract_strided_slice %444 {offsets = [1, 0], sizes = [1, 128], strides = [1, 1]} : vector<2x128xf32> to vector<1x128xf32>
    %c2_119 = arith.constant 2 : index
    %c0_120 = arith.constant 0 : index
    %c0_121 = arith.constant 0 : index
    %447 = vector.load %arg3[%c2_119, %c0_120, %c0_121] : memref<4x32x128xbf16, #tpu.memory_space<vmem>>, vector<1x32x128xbf16>
    %448 = vector.shape_cast %447 : vector<1x32x128xbf16> to vector<32x128xbf16>
    %449 = vector.extract_strided_slice %448 {offsets = [0, 0], sizes = [32, 96], strides = [1, 1]} : vector<32x128xbf16> to vector<32x96xbf16>
    %450 = vector.extract_strided_slice %448 {offsets = [0, 96], sizes = [32, 32], strides = [1, 1]} : vector<32x128xbf16> to vector<32x32xbf16>
    %c2_122 = arith.constant 2 : index
    %c0_123 = arith.constant 0 : index
    %c0_124 = arith.constant 0 : index
    %451 = vector.load %arg4[%c2_122, %c0_123, %c0_124] : memref<4x32x128xbf16, #tpu.memory_space<vmem>>, vector<1x32x128xbf16>
    %452 = vector.shape_cast %451 : vector<1x32x128xbf16> to vector<32x128xbf16>
    %c2_125 = arith.constant 2 : index
    %c0_126 = arith.constant 0 : index
    %c0_127 = arith.constant 0 : index
    %453 = vector.load %arg5[%c2_125, %c0_126, %c0_127] : memref<4x128x32xbf16, #tpu.memory_space<vmem>>, vector<1x128x32xbf16>
    %454 = vector.shape_cast %453 : vector<1x128x32xbf16> to vector<128x32xbf16>
    %cst_128 = arith.constant dense<0.000000e+00> : vector<16xf32>
    %455 = vector.multi_reduction <add>, %397, %cst_128 [1] : vector<16x32xf32> to vector<16xf32>
    %456 = vector.shape_cast %455 : vector<16xf32> to vector<16x1xf32>
    %cst_129 = arith.constant 3.200000e+01 : f32
    %457 = vector.broadcast %cst_129 : f32 to vector<16x1xf32>
    %458 = arith.divf %456, %457 : vector<16x1xf32>
    %459 = vector.broadcast %458 : vector<16x1xf32> to vector<16x32xf32>
    %460 = arith.subf %397, %459 : vector<16x32xf32>
    %461 = arith.mulf %460, %460 : vector<16x32xf32>
    %cst_130 = arith.constant dense<0.000000e+00> : vector<16xf32>
    %462 = vector.multi_reduction <add>, %461, %cst_130 [1] : vector<16x32xf32> to vector<16xf32>
    %463 = vector.shape_cast %462 : vector<16xf32> to vector<16x1xf32>
    %cst_131 = arith.constant 3.200000e+01 : f32
    %464 = vector.broadcast %cst_131 : f32 to vector<16x1xf32>
    %465 = arith.divf %463, %464 : vector<16x1xf32>
    %466 = vector.broadcast %458 : vector<16x1xf32> to vector<16x32xf32>
    %467 = arith.subf %397, %466 : vector<16x32xf32>
    %cst_132 = arith.constant 9.99999974E-6 : f32
    %468 = vector.broadcast %cst_132 : f32 to vector<16x1xf32>
    %469 = arith.addf %465, %468 : vector<16x1xf32>
    %470 = math.rsqrt %469 : vector<16x1xf32>
    %471 = vector.broadcast %470 : vector<16x1xf32> to vector<16x32xf32>
    %472 = arith.mulf %467, %471 : vector<16x32xf32>
    %473 = vector.broadcast %437 : vector<1x32xf32> to vector<16x32xf32>
    %474 = arith.mulf %472, %473 : vector<16x32xf32>
    %475 = vector.broadcast %438 : vector<1x32xf32> to vector<16x32xf32>
    %476 = arith.addf %474, %475 : vector<16x32xf32>
    %477 = arith.truncf %476 : vector<16x32xf32> to vector<16x32xbf16>
    %cst_133 = arith.constant dense<0.000000e+00> : vector<16x96xf32>
    %478 = tpu.matmul %477, %449, %cst_133 {dimension_numbers = #tpu.dot_dimension_numbers<[1], [0], [0], [1], [0, 0, 1, 1], [], []>} : vector<16x32xbf16>, vector<32x96xbf16>, vector<16x96xf32> -> vector<16x96xf32>
    %479 = vector.broadcast %445 : vector<1x96xf32> to vector<16x96xf32>
    %480 = arith.addf %478, %479 : vector<16x96xf32>
    %481 = vector.extract_strided_slice %480 {offsets = [0, 0], sizes = [16, 32], strides = [1, 1]} : vector<16x96xf32> to vector<16x32xf32>
    %482 = vector.extract_strided_slice %480 {offsets = [0, 32], sizes = [16, 32], strides = [1, 1]} : vector<16x96xf32> to vector<16x32xf32>
    %483 = vector.extract_strided_slice %480 {offsets = [0, 64], sizes = [16, 32], strides = [1, 1]} : vector<16x96xf32> to vector<16x32xf32>
    %484 = vector.broadcast %26 : vector<1x32xf32> to vector<16x32xf32>
    %485 = arith.mulf %481, %484 : vector<16x32xf32>
    %486 = vector.broadcast %33 : vector<1x32xf32> to vector<16x32xf32>
    %487 = arith.mulf %481, %486 : vector<16x32xf32>
    %488 = vector.broadcast %40 : vector<1x32xf32> to vector<16x32xf32>
    %489 = arith.mulf %481, %488 : vector<16x32xf32>
    %490 = vector.broadcast %47 : vector<1x32xf32> to vector<16x32xf32>
    %491 = arith.mulf %481, %490 : vector<16x32xf32>
    %492 = tpu.concatenate %485, %487, %489, %491 in 0 : vector<16x32xf32>, vector<16x32xf32>, vector<16x32xf32>, vector<16x32xf32> -> vector<64x32xf32>
    %493 = arith.truncf %492 : vector<64x32xf32> to vector<64x32xbf16>
    %494 = arith.truncf %482 : vector<16x32xf32> to vector<16x32xbf16>
    %cst_134 = arith.constant dense<0.000000e+00> : vector<64x16xf32>
    %495 = tpu.matmul %493, %494, %cst_134 {dimension_numbers = #tpu.dot_dimension_numbers<[1], [1], [0], [0], [0, 0, 1, 0], [], []>} : vector<64x32xbf16>, vector<16x32xbf16>, vector<64x16xf32> -> vector<64x16xf32>
    %cst_135 = arith.constant -1.000000e+30 : f32
    %496 = vector.broadcast %cst_135 : f32 to vector<64x16xf32>
    %497 = arith.select %18, %495, %496 : vector<64x16xi1>, vector<64x16xf32>
    %cst_136 = arith.constant dense<0xFF800000> : vector<64xf32>
    %498 = vector.multi_reduction <maximumf>, %497, %cst_136 [1] : vector<64x16xf32> to vector<64xf32>
    %499 = vector.shape_cast %498 : vector<64xf32> to vector<64x1xf32>
    %500 = vector.broadcast %499 : vector<64x1xf32> to vector<64x16xf32>
    %501 = arith.subf %497, %500 : vector<64x16xf32>
    %502 = math.exp %501 : vector<64x16xf32>
    %cst_137 = arith.constant dense<0.000000e+00> : vector<64xf32>
    %503 = vector.multi_reduction <add>, %502, %cst_137 [1] : vector<64x16xf32> to vector<64xf32>
    %504 = vector.shape_cast %503 : vector<64xf32> to vector<64x1xf32>
    %505 = tpu.reciprocal %504 {approx = true} : vector<64x1xf32> -> vector<64x1xf32>
    %506 = vector.broadcast %505 : vector<64x1xf32> to vector<64x16xf32>
    %507 = arith.mulf %502, %506 : vector<64x16xf32>
    %508 = arith.truncf %507 : vector<64x16xf32> to vector<64x16xbf16>
    %509 = arith.truncf %483 : vector<16x32xf32> to vector<16x32xbf16>
    %cst_138 = arith.constant dense<0.000000e+00> : vector<64x32xf32>
    %510 = tpu.matmul %508, %509, %cst_138 {dimension_numbers = #tpu.dot_dimension_numbers<[1], [0], [0], [1], [0, 0, 1, 1], [], []>} : vector<64x16xbf16>, vector<16x32xbf16>, vector<64x32xf32> -> vector<64x32xf32>
    %511 = vector.extract_strided_slice %510 {offsets = [0, 0], sizes = [16, 32], strides = [1, 1]} : vector<64x32xf32> to vector<16x32xf32>
    %512 = vector.broadcast %26 : vector<1x32xf32> to vector<16x32xf32>
    %513 = arith.mulf %511, %512 : vector<16x32xf32>
    %cst_139 = arith.constant 0.000000e+00 : f32
    %514 = vector.broadcast %cst_139 : f32 to vector<16x32xf32>
    %515 = arith.addf %514, %513 : vector<16x32xf32>
    %516 = vector.extract_strided_slice %510 {offsets = [16, 0], sizes = [16, 32], strides = [1, 1]} : vector<64x32xf32> to vector<16x32xf32>
    %517 = vector.broadcast %33 : vector<1x32xf32> to vector<16x32xf32>
    %518 = arith.mulf %516, %517 : vector<16x32xf32>
    %519 = arith.addf %515, %518 : vector<16x32xf32>
    %520 = vector.extract_strided_slice %510 {offsets = [32, 0], sizes = [16, 32], strides = [1, 1]} : vector<64x32xf32> to vector<16x32xf32>
    %521 = vector.broadcast %40 : vector<1x32xf32> to vector<16x32xf32>
    %522 = arith.mulf %520, %521 : vector<16x32xf32>
    %523 = arith.addf %519, %522 : vector<16x32xf32>
    %524 = vector.extract_strided_slice %510 {offsets = [48, 0], sizes = [16, 32], strides = [1, 1]} : vector<64x32xf32> to vector<16x32xf32>
    %525 = vector.broadcast %47 : vector<1x32xf32> to vector<16x32xf32>
    %526 = arith.mulf %524, %525 : vector<16x32xf32>
    %527 = arith.addf %523, %526 : vector<16x32xf32>
    %528 = arith.truncf %527 : vector<16x32xf32> to vector<16x32xbf16>
    %cst_140 = arith.constant dense<0.000000e+00> : vector<16x32xf32>
    %529 = tpu.matmul %528, %450, %cst_140 {dimension_numbers = #tpu.dot_dimension_numbers<[1], [0], [0], [1], [0, 0, 1, 1], [], []>} : vector<16x32xbf16>, vector<32x32xbf16>, vector<16x32xf32> -> vector<16x32xf32>
    %530 = arith.addf %397, %529 : vector<16x32xf32>
    %531 = vector.broadcast %441 : vector<1x32xf32> to vector<16x32xf32>
    %532 = arith.addf %530, %531 : vector<16x32xf32>
    %cst_141 = arith.constant dense<0.000000e+00> : vector<16xf32>
    %533 = vector.multi_reduction <add>, %532, %cst_141 [1] : vector<16x32xf32> to vector<16xf32>
    %534 = vector.shape_cast %533 : vector<16xf32> to vector<16x1xf32>
    %cst_142 = arith.constant 3.200000e+01 : f32
    %535 = vector.broadcast %cst_142 : f32 to vector<16x1xf32>
    %536 = arith.divf %534, %535 : vector<16x1xf32>
    %537 = vector.broadcast %536 : vector<16x1xf32> to vector<16x32xf32>
    %538 = arith.subf %532, %537 : vector<16x32xf32>
    %539 = arith.mulf %538, %538 : vector<16x32xf32>
    %cst_143 = arith.constant dense<0.000000e+00> : vector<16xf32>
    %540 = vector.multi_reduction <add>, %539, %cst_143 [1] : vector<16x32xf32> to vector<16xf32>
    %541 = vector.shape_cast %540 : vector<16xf32> to vector<16x1xf32>
    %cst_144 = arith.constant 3.200000e+01 : f32
    %542 = vector.broadcast %cst_144 : f32 to vector<16x1xf32>
    %543 = arith.divf %541, %542 : vector<16x1xf32>
    %544 = vector.broadcast %536 : vector<16x1xf32> to vector<16x32xf32>
    %545 = arith.subf %532, %544 : vector<16x32xf32>
    %cst_145 = arith.constant 9.99999974E-6 : f32
    %546 = vector.broadcast %cst_145 : f32 to vector<16x1xf32>
    %547 = arith.addf %543, %546 : vector<16x1xf32>
    %548 = math.rsqrt %547 : vector<16x1xf32>
    %549 = vector.broadcast %548 : vector<16x1xf32> to vector<16x32xf32>
    %550 = arith.mulf %545, %549 : vector<16x32xf32>
    %551 = vector.broadcast %439 : vector<1x32xf32> to vector<16x32xf32>
    %552 = arith.mulf %550, %551 : vector<16x32xf32>
    %553 = vector.broadcast %440 : vector<1x32xf32> to vector<16x32xf32>
    %554 = arith.addf %552, %553 : vector<16x32xf32>
    %555 = arith.truncf %554 : vector<16x32xf32> to vector<16x32xbf16>
    %cst_146 = arith.constant dense<0.000000e+00> : vector<16x128xf32>
    %556 = tpu.matmul %555, %452, %cst_146 {dimension_numbers = #tpu.dot_dimension_numbers<[1], [0], [0], [1], [0, 0, 1, 1], [], []>} : vector<16x32xbf16>, vector<32x128xbf16>, vector<16x128xf32> -> vector<16x128xf32>
    %557 = vector.broadcast %446 : vector<1x128xf32> to vector<16x128xf32>
    %558 = arith.addf %556, %557 : vector<16x128xf32>
    %559 = arith.mulf %558, %558 : vector<16x128xf32>
    %560 = arith.mulf %558, %559 : vector<16x128xf32>
    %cst_147 = arith.constant 4.471500e-02 : f32
    %561 = vector.broadcast %cst_147 : f32 to vector<16x128xf32>
    %562 = arith.mulf %561, %560 : vector<16x128xf32>
    %563 = arith.addf %558, %562 : vector<16x128xf32>
    %cst_148 = arith.constant 0.797884583 : f32
    %564 = vector.broadcast %cst_148 : f32 to vector<16x128xf32>
    %565 = arith.mulf %564, %563 : vector<16x128xf32>
    %566 = math.tanh %565 : vector<16x128xf32>
    %cst_149 = arith.constant 1.000000e+00 : f32
    %567 = vector.broadcast %cst_149 : f32 to vector<16x128xf32>
    %568 = arith.addf %567, %566 : vector<16x128xf32>
    %cst_150 = arith.constant 5.000000e-01 : f32
    %569 = vector.broadcast %cst_150 : f32 to vector<16x128xf32>
    %570 = arith.mulf %569, %568 : vector<16x128xf32>
    %571 = arith.mulf %558, %570 : vector<16x128xf32>
    %572 = arith.truncf %571 : vector<16x128xf32> to vector<16x128xbf16>
    %cst_151 = arith.constant dense<0.000000e+00> : vector<16x32xf32>
    %573 = tpu.matmul %572, %454, %cst_151 {dimension_numbers = #tpu.dot_dimension_numbers<[1], [0], [0], [1], [0, 0, 1, 1], [], []>} : vector<16x128xbf16>, vector<128x32xbf16>, vector<16x32xf32> -> vector<16x32xf32>
    %574 = arith.addf %532, %573 : vector<16x32xf32>
    %575 = vector.broadcast %442 : vector<1x32xf32> to vector<16x32xf32>
    %576 = arith.addf %574, %575 : vector<16x32xf32>
    %577 = arith.truncf %576 : vector<16x32xf32> to vector<16x32xbf16>
    %cst_152 = arith.constant dense<0.000000e+00> : vector<8x32xf32>
    %578 = tpu.matmul %55, %577, %cst_152 {dimension_numbers = #tpu.dot_dimension_numbers<[1], [0], [0], [1], [0, 0, 1, 1], [], []>} : vector<8x16xbf16>, vector<16x32xbf16>, vector<8x32xf32> -> vector<8x32xf32>
    %cst_153 = arith.constant dense<0.000000e+00> : vector<8x32xf32>
    %579 = tpu.matmul %63, %577, %cst_153 {dimension_numbers = #tpu.dot_dimension_numbers<[1], [0], [0], [1], [0, 0, 1, 1], [], []>} : vector<8x16xbf16>, vector<16x32xbf16>, vector<8x32xf32> -> vector<8x32xf32>
    %580 = arith.truncf %578 : vector<8x32xf32> to vector<8x32xbf16>
    %cst_154 = arith.constant dense<0.000000e+00> : vector<8x32xf32>
    %581 = tpu.matmul %580, %65, %cst_154 {dimension_numbers = #tpu.dot_dimension_numbers<[1], [0], [0], [1], [0, 0, 1, 1], [], []>} : vector<8x32xbf16>, vector<32x32xbf16>, vector<8x32xf32> -> vector<8x32xf32>
    %582 = arith.truncf %579 : vector<8x32xf32> to vector<8x32xbf16>
    %cst_155 = arith.constant dense<0.000000e+00> : vector<8x32xf32>
    %583 = tpu.matmul %582, %66, %cst_155 {dimension_numbers = #tpu.dot_dimension_numbers<[1], [0], [0], [1], [0, 0, 1, 1], [], []>} : vector<8x32xbf16>, vector<32x32xbf16>, vector<8x32xf32> -> vector<8x32xf32>
    %584 = arith.addf %581, %583 : vector<8x32xf32>
    %585 = vector.broadcast %69 : vector<1x32xf32> to vector<8x32xf32>
    %586 = arith.addf %584, %585 : vector<8x32xf32>
    %587 = vector.extract_strided_slice %67 {offsets = [0, 66], sizes = [1, 1], strides = [1, 1]} : vector<1x68xf32> to vector<1x1xf32>
    %588 = vector.shape_cast %586 : vector<8x32xf32> to vector<1x8x32xf32>
    %cst_156 = arith.constant dense<0.000000e+00> : vector<1xf32>
    %589 = vector.multi_reduction <add>, %588, %cst_156 [1, 2] : vector<1x8x32xf32> to vector<1xf32>
    %590 = vector.shape_cast %589 : vector<1xf32> to vector<1x1x1xf32>
    %591 = vector.extract %590[0, 0, 0] : f32 from vector<1x1x1xf32>
    %592 = vector.broadcast %591 : f32 to vector<1x1xf32>
    %cst_157 = arith.constant 2.560000e+02 : f32
    %593 = vector.broadcast %cst_157 : f32 to vector<1x1xf32>
    %594 = arith.divf %592, %593 : vector<1x1xf32>
    %595 = vector.broadcast %594 : vector<1x1xf32> to vector<8x32xf32>
    %596 = arith.subf %586, %595 : vector<8x32xf32>
    %597 = arith.mulf %596, %596 : vector<8x32xf32>
    %598 = vector.shape_cast %597 : vector<8x32xf32> to vector<1x8x32xf32>
    %cst_158 = arith.constant dense<0.000000e+00> : vector<1xf32>
    %599 = vector.multi_reduction <add>, %598, %cst_158 [1, 2] : vector<1x8x32xf32> to vector<1xf32>
    %600 = vector.shape_cast %599 : vector<1xf32> to vector<1x1x1xf32>
    %601 = vector.extract %600[0, 0, 0] : f32 from vector<1x1x1xf32>
    %602 = vector.broadcast %601 : f32 to vector<1x1xf32>
    %cst_159 = arith.constant 2.560000e+02 : f32
    %603 = vector.broadcast %cst_159 : f32 to vector<1x1xf32>
    %604 = arith.divf %602, %603 : vector<1x1xf32>
    %605 = vector.broadcast %594 : vector<1x1xf32> to vector<8x32xf32>
    %606 = arith.subf %586, %605 : vector<8x32xf32>
    %cst_160 = arith.constant 9.99999974E-6 : f32
    %607 = vector.broadcast %cst_160 : f32 to vector<1x1xf32>
    %608 = arith.addf %604, %607 : vector<1x1xf32>
    %609 = math.rsqrt %608 : vector<1x1xf32>
    %610 = arith.mulf %587, %609 : vector<1x1xf32>
    %611 = vector.broadcast %610 : vector<1x1xf32> to vector<8x32xf32>
    %612 = arith.mulf %606, %611 : vector<8x32xf32>
    %613 = arith.addf %434, %612 : vector<8x32xf32>
    %c3 = arith.constant 3 : index
    %c0_161 = arith.constant 0 : index
    %c0_162 = arith.constant 0 : index
    %614 = vector.load %arg6[%c3, %c0_161, %c0_162] : memref<4x6x32xf32, #tpu.memory_space<vmem>>, vector<1x6x32xf32>
    %615 = vector.shape_cast %614 : vector<1x6x32xf32> to vector<6x32xf32>
    %616 = vector.extract_strided_slice %615 {offsets = [0, 0], sizes = [1, 32], strides = [1, 1]} : vector<6x32xf32> to vector<1x32xf32>
    %617 = vector.extract_strided_slice %615 {offsets = [1, 0], sizes = [1, 32], strides = [1, 1]} : vector<6x32xf32> to vector<1x32xf32>
    %618 = vector.extract_strided_slice %615 {offsets = [2, 0], sizes = [1, 32], strides = [1, 1]} : vector<6x32xf32> to vector<1x32xf32>
    %619 = vector.extract_strided_slice %615 {offsets = [3, 0], sizes = [1, 32], strides = [1, 1]} : vector<6x32xf32> to vector<1x32xf32>
    %620 = vector.extract_strided_slice %615 {offsets = [4, 0], sizes = [1, 32], strides = [1, 1]} : vector<6x32xf32> to vector<1x32xf32>
    %621 = vector.extract_strided_slice %615 {offsets = [5, 0], sizes = [1, 32], strides = [1, 1]} : vector<6x32xf32> to vector<1x32xf32>
    %c3_163 = arith.constant 3 : index
    %c0_164 = arith.constant 0 : index
    %c0_165 = arith.constant 0 : index
    %622 = vector.load %arg7[%c3_163, %c0_164, %c0_165] : memref<4x2x128xf32, #tpu.memory_space<vmem>>, vector<1x2x128xf32>
    %623 = vector.shape_cast %622 : vector<1x2x128xf32> to vector<2x128xf32>
    %624 = vector.extract_strided_slice %623 {offsets = [0, 0], sizes = [1, 96], strides = [1, 1]} : vector<2x128xf32> to vector<1x96xf32>
    %625 = vector.extract_strided_slice %623 {offsets = [1, 0], sizes = [1, 128], strides = [1, 1]} : vector<2x128xf32> to vector<1x128xf32>
    %c3_166 = arith.constant 3 : index
    %c0_167 = arith.constant 0 : index
    %c0_168 = arith.constant 0 : index
    %626 = vector.load %arg3[%c3_166, %c0_167, %c0_168] : memref<4x32x128xbf16, #tpu.memory_space<vmem>>, vector<1x32x128xbf16>
    %627 = vector.shape_cast %626 : vector<1x32x128xbf16> to vector<32x128xbf16>
    %628 = vector.extract_strided_slice %627 {offsets = [0, 0], sizes = [32, 96], strides = [1, 1]} : vector<32x128xbf16> to vector<32x96xbf16>
    %629 = vector.extract_strided_slice %627 {offsets = [0, 96], sizes = [32, 32], strides = [1, 1]} : vector<32x128xbf16> to vector<32x32xbf16>
    %c3_169 = arith.constant 3 : index
    %c0_170 = arith.constant 0 : index
    %c0_171 = arith.constant 0 : index
    %630 = vector.load %arg4[%c3_169, %c0_170, %c0_171] : memref<4x32x128xbf16, #tpu.memory_space<vmem>>, vector<1x32x128xbf16>
    %631 = vector.shape_cast %630 : vector<1x32x128xbf16> to vector<32x128xbf16>
    %c3_172 = arith.constant 3 : index
    %c0_173 = arith.constant 0 : index
    %c0_174 = arith.constant 0 : index
    %632 = vector.load %arg5[%c3_172, %c0_173, %c0_174] : memref<4x128x32xbf16, #tpu.memory_space<vmem>>, vector<1x128x32xbf16>
    %633 = vector.shape_cast %632 : vector<1x128x32xbf16> to vector<128x32xbf16>
    %cst_175 = arith.constant dense<0.000000e+00> : vector<16xf32>
    %634 = vector.multi_reduction <add>, %576, %cst_175 [1] : vector<16x32xf32> to vector<16xf32>
    %635 = vector.shape_cast %634 : vector<16xf32> to vector<16x1xf32>
    %cst_176 = arith.constant 3.200000e+01 : f32
    %636 = vector.broadcast %cst_176 : f32 to vector<16x1xf32>
    %637 = arith.divf %635, %636 : vector<16x1xf32>
    %638 = vector.broadcast %637 : vector<16x1xf32> to vector<16x32xf32>
    %639 = arith.subf %576, %638 : vector<16x32xf32>
    %640 = arith.mulf %639, %639 : vector<16x32xf32>
    %cst_177 = arith.constant dense<0.000000e+00> : vector<16xf32>
    %641 = vector.multi_reduction <add>, %640, %cst_177 [1] : vector<16x32xf32> to vector<16xf32>
    %642 = vector.shape_cast %641 : vector<16xf32> to vector<16x1xf32>
    %cst_178 = arith.constant 3.200000e+01 : f32
    %643 = vector.broadcast %cst_178 : f32 to vector<16x1xf32>
    %644 = arith.divf %642, %643 : vector<16x1xf32>
    %645 = vector.broadcast %637 : vector<16x1xf32> to vector<16x32xf32>
    %646 = arith.subf %576, %645 : vector<16x32xf32>
    %cst_179 = arith.constant 9.99999974E-6 : f32
    %647 = vector.broadcast %cst_179 : f32 to vector<16x1xf32>
    %648 = arith.addf %644, %647 : vector<16x1xf32>
    %649 = math.rsqrt %648 : vector<16x1xf32>
    %650 = vector.broadcast %649 : vector<16x1xf32> to vector<16x32xf32>
    %651 = arith.mulf %646, %650 : vector<16x32xf32>
    %652 = vector.broadcast %616 : vector<1x32xf32> to vector<16x32xf32>
    %653 = arith.mulf %651, %652 : vector<16x32xf32>
    %654 = vector.broadcast %617 : vector<1x32xf32> to vector<16x32xf32>
    %655 = arith.addf %653, %654 : vector<16x32xf32>
    %656 = arith.truncf %655 : vector<16x32xf32> to vector<16x32xbf16>
    %cst_180 = arith.constant dense<0.000000e+00> : vector<16x96xf32>
    %657 = tpu.matmul %656, %628, %cst_180 {dimension_numbers = #tpu.dot_dimension_numbers<[1], [0], [0], [1], [0, 0, 1, 1], [], []>} : vector<16x32xbf16>, vector<32x96xbf16>, vector<16x96xf32> -> vector<16x96xf32>
    %658 = vector.broadcast %624 : vector<1x96xf32> to vector<16x96xf32>
    %659 = arith.addf %657, %658 : vector<16x96xf32>
    %660 = vector.extract_strided_slice %659 {offsets = [0, 0], sizes = [16, 32], strides = [1, 1]} : vector<16x96xf32> to vector<16x32xf32>
    %661 = vector.extract_strided_slice %659 {offsets = [0, 32], sizes = [16, 32], strides = [1, 1]} : vector<16x96xf32> to vector<16x32xf32>
    %662 = vector.extract_strided_slice %659 {offsets = [0, 64], sizes = [16, 32], strides = [1, 1]} : vector<16x96xf32> to vector<16x32xf32>
    %663 = vector.broadcast %26 : vector<1x32xf32> to vector<16x32xf32>
    %664 = arith.mulf %660, %663 : vector<16x32xf32>
    %665 = vector.broadcast %33 : vector<1x32xf32> to vector<16x32xf32>
    %666 = arith.mulf %660, %665 : vector<16x32xf32>
    %667 = vector.broadcast %40 : vector<1x32xf32> to vector<16x32xf32>
    %668 = arith.mulf %660, %667 : vector<16x32xf32>
    %669 = vector.broadcast %47 : vector<1x32xf32> to vector<16x32xf32>
    %670 = arith.mulf %660, %669 : vector<16x32xf32>
    %671 = tpu.concatenate %664, %666, %668, %670 in 0 : vector<16x32xf32>, vector<16x32xf32>, vector<16x32xf32>, vector<16x32xf32> -> vector<64x32xf32>
    %672 = arith.truncf %671 : vector<64x32xf32> to vector<64x32xbf16>
    %673 = arith.truncf %661 : vector<16x32xf32> to vector<16x32xbf16>
    %cst_181 = arith.constant dense<0.000000e+00> : vector<64x16xf32>
    %674 = tpu.matmul %672, %673, %cst_181 {dimension_numbers = #tpu.dot_dimension_numbers<[1], [1], [0], [0], [0, 0, 1, 0], [], []>} : vector<64x32xbf16>, vector<16x32xbf16>, vector<64x16xf32> -> vector<64x16xf32>
    %cst_182 = arith.constant -1.000000e+30 : f32
    %675 = vector.broadcast %cst_182 : f32 to vector<64x16xf32>
    %676 = arith.select %18, %674, %675 : vector<64x16xi1>, vector<64x16xf32>
    %cst_183 = arith.constant dense<0xFF800000> : vector<64xf32>
    %677 = vector.multi_reduction <maximumf>, %676, %cst_183 [1] : vector<64x16xf32> to vector<64xf32>
    %678 = vector.shape_cast %677 : vector<64xf32> to vector<64x1xf32>
    %679 = vector.broadcast %678 : vector<64x1xf32> to vector<64x16xf32>
    %680 = arith.subf %676, %679 : vector<64x16xf32>
    %681 = math.exp %680 : vector<64x16xf32>
    %cst_184 = arith.constant dense<0.000000e+00> : vector<64xf32>
    %682 = vector.multi_reduction <add>, %681, %cst_184 [1] : vector<64x16xf32> to vector<64xf32>
    %683 = vector.shape_cast %682 : vector<64xf32> to vector<64x1xf32>
    %684 = tpu.reciprocal %683 {approx = true} : vector<64x1xf32> -> vector<64x1xf32>
    %685 = vector.broadcast %684 : vector<64x1xf32> to vector<64x16xf32>
    %686 = arith.mulf %681, %685 : vector<64x16xf32>
    %687 = arith.truncf %686 : vector<64x16xf32> to vector<64x16xbf16>
    %688 = arith.truncf %662 : vector<16x32xf32> to vector<16x32xbf16>
    %cst_185 = arith.constant dense<0.000000e+00> : vector<64x32xf32>
    %689 = tpu.matmul %687, %688, %cst_185 {dimension_numbers = #tpu.dot_dimension_numbers<[1], [0], [0], [1], [0, 0, 1, 1], [], []>} : vector<64x16xbf16>, vector<16x32xbf16>, vector<64x32xf32> -> vector<64x32xf32>
    %690 = vector.extract_strided_slice %689 {offsets = [0, 0], sizes = [16, 32], strides = [1, 1]} : vector<64x32xf32> to vector<16x32xf32>
    %691 = vector.broadcast %26 : vector<1x32xf32> to vector<16x32xf32>
    %692 = arith.mulf %690, %691 : vector<16x32xf32>
    %cst_186 = arith.constant 0.000000e+00 : f32
    %693 = vector.broadcast %cst_186 : f32 to vector<16x32xf32>
    %694 = arith.addf %693, %692 : vector<16x32xf32>
    %695 = vector.extract_strided_slice %689 {offsets = [16, 0], sizes = [16, 32], strides = [1, 1]} : vector<64x32xf32> to vector<16x32xf32>
    %696 = vector.broadcast %33 : vector<1x32xf32> to vector<16x32xf32>
    %697 = arith.mulf %695, %696 : vector<16x32xf32>
    %698 = arith.addf %694, %697 : vector<16x32xf32>
    %699 = vector.extract_strided_slice %689 {offsets = [32, 0], sizes = [16, 32], strides = [1, 1]} : vector<64x32xf32> to vector<16x32xf32>
    %700 = vector.broadcast %40 : vector<1x32xf32> to vector<16x32xf32>
    %701 = arith.mulf %699, %700 : vector<16x32xf32>
    %702 = arith.addf %698, %701 : vector<16x32xf32>
    %703 = vector.extract_strided_slice %689 {offsets = [48, 0], sizes = [16, 32], strides = [1, 1]} : vector<64x32xf32> to vector<16x32xf32>
    %704 = vector.broadcast %47 : vector<1x32xf32> to vector<16x32xf32>
    %705 = arith.mulf %703, %704 : vector<16x32xf32>
    %706 = arith.addf %702, %705 : vector<16x32xf32>
    %707 = arith.truncf %706 : vector<16x32xf32> to vector<16x32xbf16>
    %cst_187 = arith.constant dense<0.000000e+00> : vector<16x32xf32>
    %708 = tpu.matmul %707, %629, %cst_187 {dimension_numbers = #tpu.dot_dimension_numbers<[1], [0], [0], [1], [0, 0, 1, 1], [], []>} : vector<16x32xbf16>, vector<32x32xbf16>, vector<16x32xf32> -> vector<16x32xf32>
    %709 = arith.addf %576, %708 : vector<16x32xf32>
    %710 = vector.broadcast %620 : vector<1x32xf32> to vector<16x32xf32>
    %711 = arith.addf %709, %710 : vector<16x32xf32>
    %cst_188 = arith.constant dense<0.000000e+00> : vector<16xf32>
    %712 = vector.multi_reduction <add>, %711, %cst_188 [1] : vector<16x32xf32> to vector<16xf32>
    %713 = vector.shape_cast %712 : vector<16xf32> to vector<16x1xf32>
    %cst_189 = arith.constant 3.200000e+01 : f32
    %714 = vector.broadcast %cst_189 : f32 to vector<16x1xf32>
    %715 = arith.divf %713, %714 : vector<16x1xf32>
    %716 = vector.broadcast %715 : vector<16x1xf32> to vector<16x32xf32>
    %717 = arith.subf %711, %716 : vector<16x32xf32>
    %718 = arith.mulf %717, %717 : vector<16x32xf32>
    %cst_190 = arith.constant dense<0.000000e+00> : vector<16xf32>
    %719 = vector.multi_reduction <add>, %718, %cst_190 [1] : vector<16x32xf32> to vector<16xf32>
    %720 = vector.shape_cast %719 : vector<16xf32> to vector<16x1xf32>
    %cst_191 = arith.constant 3.200000e+01 : f32
    %721 = vector.broadcast %cst_191 : f32 to vector<16x1xf32>
    %722 = arith.divf %720, %721 : vector<16x1xf32>
    %723 = vector.broadcast %715 : vector<16x1xf32> to vector<16x32xf32>
    %724 = arith.subf %711, %723 : vector<16x32xf32>
    %cst_192 = arith.constant 9.99999974E-6 : f32
    %725 = vector.broadcast %cst_192 : f32 to vector<16x1xf32>
    %726 = arith.addf %722, %725 : vector<16x1xf32>
    %727 = math.rsqrt %726 : vector<16x1xf32>
    %728 = vector.broadcast %727 : vector<16x1xf32> to vector<16x32xf32>
    %729 = arith.mulf %724, %728 : vector<16x32xf32>
    %730 = vector.broadcast %618 : vector<1x32xf32> to vector<16x32xf32>
    %731 = arith.mulf %729, %730 : vector<16x32xf32>
    %732 = vector.broadcast %619 : vector<1x32xf32> to vector<16x32xf32>
    %733 = arith.addf %731, %732 : vector<16x32xf32>
    %734 = arith.truncf %733 : vector<16x32xf32> to vector<16x32xbf16>
    %cst_193 = arith.constant dense<0.000000e+00> : vector<16x128xf32>
    %735 = tpu.matmul %734, %631, %cst_193 {dimension_numbers = #tpu.dot_dimension_numbers<[1], [0], [0], [1], [0, 0, 1, 1], [], []>} : vector<16x32xbf16>, vector<32x128xbf16>, vector<16x128xf32> -> vector<16x128xf32>
    %736 = vector.broadcast %625 : vector<1x128xf32> to vector<16x128xf32>
    %737 = arith.addf %735, %736 : vector<16x128xf32>
    %738 = arith.mulf %737, %737 : vector<16x128xf32>
    %739 = arith.mulf %737, %738 : vector<16x128xf32>
    %cst_194 = arith.constant 4.471500e-02 : f32
    %740 = vector.broadcast %cst_194 : f32 to vector<16x128xf32>
    %741 = arith.mulf %740, %739 : vector<16x128xf32>
    %742 = arith.addf %737, %741 : vector<16x128xf32>
    %cst_195 = arith.constant 0.797884583 : f32
    %743 = vector.broadcast %cst_195 : f32 to vector<16x128xf32>
    %744 = arith.mulf %743, %742 : vector<16x128xf32>
    %745 = math.tanh %744 : vector<16x128xf32>
    %cst_196 = arith.constant 1.000000e+00 : f32
    %746 = vector.broadcast %cst_196 : f32 to vector<16x128xf32>
    %747 = arith.addf %746, %745 : vector<16x128xf32>
    %cst_197 = arith.constant 5.000000e-01 : f32
    %748 = vector.broadcast %cst_197 : f32 to vector<16x128xf32>
    %749 = arith.mulf %748, %747 : vector<16x128xf32>
    %750 = arith.mulf %737, %749 : vector<16x128xf32>
    %751 = arith.truncf %750 : vector<16x128xf32> to vector<16x128xbf16>
    %cst_198 = arith.constant dense<0.000000e+00> : vector<16x32xf32>
    %752 = tpu.matmul %751, %633, %cst_198 {dimension_numbers = #tpu.dot_dimension_numbers<[1], [0], [0], [1], [0, 0, 1, 1], [], []>} : vector<16x128xbf16>, vector<128x32xbf16>, vector<16x32xf32> -> vector<16x32xf32>
    %753 = arith.addf %711, %752 : vector<16x32xf32>
    %754 = vector.broadcast %621 : vector<1x32xf32> to vector<16x32xf32>
    %755 = arith.addf %753, %754 : vector<16x32xf32>
    %756 = arith.truncf %755 : vector<16x32xf32> to vector<16x32xbf16>
    %cst_199 = arith.constant dense<0.000000e+00> : vector<8x32xf32>
    %757 = tpu.matmul %55, %756, %cst_199 {dimension_numbers = #tpu.dot_dimension_numbers<[1], [0], [0], [1], [0, 0, 1, 1], [], []>} : vector<8x16xbf16>, vector<16x32xbf16>, vector<8x32xf32> -> vector<8x32xf32>
    %cst_200 = arith.constant dense<0.000000e+00> : vector<8x32xf32>
    %758 = tpu.matmul %63, %756, %cst_200 {dimension_numbers = #tpu.dot_dimension_numbers<[1], [0], [0], [1], [0, 0, 1, 1], [], []>} : vector<8x16xbf16>, vector<16x32xbf16>, vector<8x32xf32> -> vector<8x32xf32>
    %759 = arith.truncf %757 : vector<8x32xf32> to vector<8x32xbf16>
    %cst_201 = arith.constant dense<0.000000e+00> : vector<8x32xf32>
    %760 = tpu.matmul %759, %65, %cst_201 {dimension_numbers = #tpu.dot_dimension_numbers<[1], [0], [0], [1], [0, 0, 1, 1], [], []>} : vector<8x32xbf16>, vector<32x32xbf16>, vector<8x32xf32> -> vector<8x32xf32>
    %761 = arith.truncf %758 : vector<8x32xf32> to vector<8x32xbf16>
    %cst_202 = arith.constant dense<0.000000e+00> : vector<8x32xf32>
    %762 = tpu.matmul %761, %66, %cst_202 {dimension_numbers = #tpu.dot_dimension_numbers<[1], [0], [0], [1], [0, 0, 1, 1], [], []>} : vector<8x32xbf16>, vector<32x32xbf16>, vector<8x32xf32> -> vector<8x32xf32>
    %763 = arith.addf %760, %762 : vector<8x32xf32>
    %764 = vector.broadcast %69 : vector<1x32xf32> to vector<8x32xf32>
    %765 = arith.addf %763, %764 : vector<8x32xf32>
    %766 = vector.extract_strided_slice %67 {offsets = [0, 67], sizes = [1, 1], strides = [1, 1]} : vector<1x68xf32> to vector<1x1xf32>
    %767 = vector.shape_cast %765 : vector<8x32xf32> to vector<1x8x32xf32>
    %cst_203 = arith.constant dense<0.000000e+00> : vector<1xf32>
    %768 = vector.multi_reduction <add>, %767, %cst_203 [1, 2] : vector<1x8x32xf32> to vector<1xf32>
    %769 = vector.shape_cast %768 : vector<1xf32> to vector<1x1x1xf32>
    %770 = vector.extract %769[0, 0, 0] : f32 from vector<1x1x1xf32>
    %771 = vector.broadcast %770 : f32 to vector<1x1xf32>
    %cst_204 = arith.constant 2.560000e+02 : f32
    %772 = vector.broadcast %cst_204 : f32 to vector<1x1xf32>
    %773 = arith.divf %771, %772 : vector<1x1xf32>
    %774 = vector.broadcast %773 : vector<1x1xf32> to vector<8x32xf32>
    %775 = arith.subf %765, %774 : vector<8x32xf32>
    %776 = arith.mulf %775, %775 : vector<8x32xf32>
    %777 = vector.shape_cast %776 : vector<8x32xf32> to vector<1x8x32xf32>
    %cst_205 = arith.constant dense<0.000000e+00> : vector<1xf32>
    %778 = vector.multi_reduction <add>, %777, %cst_205 [1, 2] : vector<1x8x32xf32> to vector<1xf32>
    %779 = vector.shape_cast %778 : vector<1xf32> to vector<1x1x1xf32>
    %780 = vector.extract %779[0, 0, 0] : f32 from vector<1x1x1xf32>
    %781 = vector.broadcast %780 : f32 to vector<1x1xf32>
    %cst_206 = arith.constant 2.560000e+02 : f32
    %782 = vector.broadcast %cst_206 : f32 to vector<1x1xf32>
    %783 = arith.divf %781, %782 : vector<1x1xf32>
    %784 = vector.broadcast %773 : vector<1x1xf32> to vector<8x32xf32>
    %785 = arith.subf %765, %784 : vector<8x32xf32>
    %cst_207 = arith.constant 9.99999974E-6 : f32
    %786 = vector.broadcast %cst_207 : f32 to vector<1x1xf32>
    %787 = arith.addf %783, %786 : vector<1x1xf32>
    %788 = math.rsqrt %787 : vector<1x1xf32>
    %789 = arith.mulf %766, %788 : vector<1x1xf32>
    %790 = vector.broadcast %789 : vector<1x1xf32> to vector<8x32xf32>
    %791 = arith.mulf %785, %790 : vector<8x32xf32>
    %792 = arith.addf %613, %791 : vector<8x32xf32>
    %793 = vector.shape_cast %792 : vector<8x32xf32> to vector<1x8x32xf32>
    %cst_208 = arith.constant dense<0.000000e+00> : vector<1xf32>
    %794 = vector.multi_reduction <add>, %793, %cst_208 [1, 2] : vector<1x8x32xf32> to vector<1xf32>
    %795 = vector.shape_cast %794 : vector<1xf32> to vector<1x1x1xf32>
    %796 = vector.extract %795[0, 0, 0] : f32 from vector<1x1x1xf32>
    %797 = vector.broadcast %796 : f32 to vector<1x1xf32>
    %cst_209 = arith.constant 2.560000e+02 : f32
    %798 = vector.broadcast %cst_209 : f32 to vector<1x1xf32>
    %799 = arith.divf %797, %798 : vector<1x1xf32>
    %800 = vector.broadcast %799 : vector<1x1xf32> to vector<8x32xf32>
    %801 = arith.subf %792, %800 : vector<8x32xf32>
    %802 = arith.mulf %801, %801 : vector<8x32xf32>
    %803 = vector.shape_cast %802 : vector<8x32xf32> to vector<1x8x32xf32>
    %cst_210 = arith.constant dense<0.000000e+00> : vector<1xf32>
    %804 = vector.multi_reduction <add>, %803, %cst_210 [1, 2] : vector<1x8x32xf32> to vector<1xf32>
    %805 = vector.shape_cast %804 : vector<1xf32> to vector<1x1x1xf32>
    %806 = vector.extract %805[0, 0, 0] : f32 from vector<1x1x1xf32>
    %807 = vector.broadcast %806 : f32 to vector<1x1xf32>
    %cst_211 = arith.constant 2.560000e+02 : f32
    %808 = vector.broadcast %cst_211 : f32 to vector<1x1xf32>
    %809 = arith.divf %807, %808 : vector<1x1xf32>
    %810 = vector.broadcast %799 : vector<1x1xf32> to vector<8x32xf32>
    %811 = arith.subf %792, %810 : vector<8x32xf32>
    %cst_212 = arith.constant 9.99999974E-6 : f32
    %812 = vector.broadcast %cst_212 : f32 to vector<1x1xf32>
    %813 = arith.addf %809, %812 : vector<1x1xf32>
    %814 = math.rsqrt %813 : vector<1x1xf32>
    %815 = vector.broadcast %814 : vector<1x1xf32> to vector<8x32xf32>
    %816 = arith.mulf %811, %815 : vector<8x32xf32>
    %c0_213 = arith.constant 0 : index
    %c0_214 = arith.constant 0 : index
    %c0_215 = arith.constant 0 : index
    %817 = vector.load %arg9[%c0_213, %c0_214, %c0_215] : memref<1x8x32xf32, #tpu.memory_space<vmem>>, vector<1x8x32xf32>
    %818 = vector.shape_cast %817 : vector<1x8x32xf32> to vector<8x32xf32>
    %819 = vector.shape_cast %816 : vector<8x32xf32> to vector<1x8x32xf32>
    tpu.vector_store %arg9[%c0_213, %c0_214, %c0_215], %819 {strides = array<i32>} : memref<1x8x32xf32, #tpu.memory_space<vmem>>, vector<1x8x32xf32>,
    return
  }
  func.func @transform_0(%arg0: i32) -> (i32, i32, i32) {
    %c0_i32 = arith.constant 0 : i32
    %c0_i32_0 = arith.constant 0 : i32
    %c0_i32_1 = arith.constant 0 : i32
    return %arg0, %c0_i32, %c0_i32_0 : i32, i32, i32
  }
  func.func @transform_1(%arg0: i32) -> (i32, i32) {
    %c0_i32 = arith.constant 0 : i32
    %c0_i32_0 = arith.constant 0 : i32
    %c0_i32_1 = arith.constant 0 : i32
    return %c0_i32, %c0_i32_0 : i32, i32
  }
  func.func @transform_2(%arg0: i32) -> (i32, i32, i32) {
    %c0_i32 = arith.constant 0 : i32
    %c0_i32_0 = arith.constant 0 : i32
    %c0_i32_1 = arith.constant 0 : i32
    %c0_i32_2 = arith.constant 0 : i32
    return %c0_i32, %c0_i32_0, %c0_i32_1 : i32, i32, i32
  }
  func.func @transform_3(%arg0: i32) -> (i32, i32, i32) {
    %c0_i32 = arith.constant 0 : i32
    %c0_i32_0 = arith.constant 0 : i32
    %c0_i32_1 = arith.constant 0 : i32
    %c0_i32_2 = arith.constant 0 : i32
    return %c0_i32, %c0_i32_0, %c0_i32_1 : i32, i32, i32
  }
  func.func @transform_4(%arg0: i32) -> (i32, i32, i32) {
    %c0_i32 = arith.constant 0 : i32
    %c0_i32_0 = arith.constant 0 : i32
    %c0_i32_1 = arith.constant 0 : i32
    %c0_i32_2 = arith.constant 0 : i32
    return %c0_i32, %c0_i32_0, %c0_i32_1 : i32, i32, i32
  }
  func.func @transform_5(%arg0: i32) -> (i32, i32, i32) {
    %c0_i32 = arith.constant 0 : i32
    %c0_i32_0 = arith.constant 0 : i32
    %c0_i32_1 = arith.constant 0 : i32
    %c0_i32_2 = arith.constant 0 : i32
    return %c0_i32, %c0_i32_0, %c0_i32_1 : i32, i32, i32
  }
  func.func @transform_6(%arg0: i32) -> (i32, i32, i32) {
    %c0_i32 = arith.constant 0 : i32
    %c0_i32_0 = arith.constant 0 : i32
    %c0_i32_1 = arith.constant 0 : i32
    %c0_i32_2 = arith.constant 0 : i32
    return %c0_i32, %c0_i32_0, %c0_i32_1 : i32, i32, i32
  }
  func.func @transform_7(%arg0: i32) -> (i32, i32) {
    %c0_i32 = arith.constant 0 : i32
    %c0_i32_0 = arith.constant 0 : i32
    %c0_i32_1 = arith.constant 0 : i32
    return %c0_i32, %c0_i32_0 : i32, i32
  }
  func.func @transform_8(%arg0: i32) -> (i32, i32, i32) {
    %c0_i32 = arith.constant 0 : i32
    %c0_i32_0 = arith.constant 0 : i32
    %c0_i32_1 = arith.constant 0 : i32
    return %arg0, %c0_i32, %c0_i32_0 : i32, i32, i32
  }
}

</mosaic_0001>

<llo_original>
// kernel: _lambda_.1
$region0: #{_lambda_.1}
  #allocation0 [shape = 'u32[]', space=smem, size = 0x4, offset = 0x4, fixed_abs, tag = 'smem constant byte address 0x4 - core index']
  #allocation1 [shape = 'u32[144,128]{1,0:T(1,128)}', space=vmem, size = 0x12000, scoped, tag = 'internal scratch']
  %s0 = inlined_call_operand.vmem [shape: f32[2,16,32], index: 0, kind: input, shape index: {}]
  %s1 = inlined_call_operand.vmem [shape: bf16[96,32], index: 1, kind: input, shape index: {}]
  %s2 = inlined_call_operand.vmem [shape: bf16[4,32,128], index: 2, kind: input, shape index: {}]
  %s3 = inlined_call_operand.hbm [shape: bf16[4,32,128], index: 3, kind: input, shape index: {}]
  %s4 = inlined_call_operand.hbm [shape: bf16[4,128,32], index: 4, kind: input, shape index: {}]
  %s5 = inlined_call_operand.hbm [shape: f32[4,6,32], index: 5, kind: input, shape index: {}]
  %s6 = inlined_call_operand.vmem [shape: f32[4,2,128], index: 6, kind: input, shape index: {}]
  %s7 = inlined_call_operand.vmem [shape: f32[1,68], index: 7, kind: input, shape index: {}]
  %s8 = inlined_call_operand.hbm [shape: f32[2,8,32], index: 8, kind: output, shape index: {}]
  %s9 = sld [smem:[#allocation0]]
  $region77: #{_lambda_.1} parent=0
    _
  %s11 = ssub.s32 1, %s9
  %s12 = scalar_select 0, %s11, %s9
  $region1: #{_lambda_.1} parent=0
    #allocation2 [shape = 'u8[32768]{0}', space=vmem, size = 0x8000, scoped, tag = 'input window, operand 3, single buffered']
    #allocation3 [shape = 's32[2]{0}', space=sflag, size = 0x8, scoped, tag = 'scoped memory for _lambda_.1']
    #allocation4 [shape = 's32[2]{0}', space=sflag, size = 0x8, scoped, tag = 'scoped memory for _lambda_.1']
    #allocation5 [shape = 'u8[131072]{0}', space=vmem, size = 0x20000, scoped, tag = 'input window, operand 4, single buffered']
    #allocation6 [shape = 's32[1]{0}', space=sflag, size = 0x4, scoped, tag = 'scoped memory for _lambda_.1']
    #allocation7 [shape = 'u8[16384]{0}', space=vmem, size = 0x4000, scoped, tag = 'input window, operand 5, single buffered']
    #allocation8 [shape = 'u8[8192]{0}', space=vmem, size = 0x2000, scoped, tag = 'output window, operand 0']
    %13 = vsyncpa [#allocation3], 0
    %14 = vsyncpa [#allocation6], 0
    %15 = vsyncpa [#allocation4], 0
    %s16 = scalar_lea.sflag [#allocation4], 1
    %17 = vsyncpa %s16, 0
    loop: start=0, step=1, limit=4
    $region2: #{_lambda_.1} parent=1 // loop_pre_header
      _
    $region3: #{_lambda_.1} parent=1 // loop_header
      %s19 = sphi 0, %s23
      %p20 = scmp.ge.s32.totalorder %s19, 4
      %s29 = sphi 0, %s31
      %s32 = sphi 0, %s29
      %s33 = sphi 0, %s32
      %s49 = sphi 0, %s33
      %s53 = sphi 0, %s53
      %s55 = sphi 0, %s53
      %s56 = sphi 0, %s55
      %s70 = sphi 0, %s56
      %s74 = sphi 0, %s74
      %s76 = sphi 0, %s74
      %s77 = sphi 0, %s76
      %s91 = sphi 0, %s77
      %s95 = sphi 0, %s95
      %s97 = sphi 0, %s95
      %s98 = sphi 0, %s97
      %s112 = sphi 0, %s98
      %s116 = sphi 0, %s116
      %s118 = sphi 0, %s116
      %s119 = sphi 0, %s118
      %s133 = sphi 0, %s119
      %s137 = sphi 0, %s137
      %s139 = sphi 0, %s137
      %s140 = sphi 0, %s139
      %s154 = sphi 0, %s140
      %s158 = sphi 0, %s158
      %s160 = sphi 0, %s158
      %s161 = sphi 0, %s160
      %s175 = sphi 0, %s161
      %s179 = sphi 0, %s179
      %s181 = sphi 0, %s179
      %s182 = sphi 0, %s181
      %s196 = sphi 0, %s182
      %s202 = sphi 0, %s204
      %s205 = sphi 0, %s202
      %s206 = sphi 0, %s205
      %s222 = sphi 0, %s206
    $region4: #{_lambda_.1} parent=1 // loop_header_branch
      %22 = sbr.rel (%p20) target = $region8
    $region5: #{_lambda_.1} parent=1 // loop_body
      %s24 = ssub.s32 %s19, 1
      %s25 = ssub.s32 %s19, 2
      %s26 = sadd.s32 %s19, 1
      %s27 = ssub.s32 %s19, %s26
      %p28 = scmp.eq.s32.totalorder %s27, 0
      %s30 = sadd.s32 %s29, 1
      %s31 = scalar_select %p28, %s29, %s30
      %p34 = pneg %p28
      %p35 = scmp.eq.s32.totalorder %s19, 1
      %p36 = por %p34, %p35
      %p37 = scmp.ne.s32.totalorder %s29, %s32
      %p38 = scmp.eq.s32.totalorder %s19, 0
      %p39 = por %p37, %p38
      %p40 = scmp.ne.s32.totalorder %s29, %s32
      %p41 = scmp.eq.s32.totalorder %s24, 1
      %p42 = por %p40, %p41
      %p43 = scmp.ne.s32.totalorder %s32, %s33
      %p44 = scmp.eq.s32.totalorder %s24, 0
      %p45 = por %p43, %p44
      %p46 = scmp.ne.s32.totalorder %s32, %s33
      %p47 = scmp.eq.s32.totalorder %s25, 1
      %p48 = por %p46, %p47
      %p50 = scmp.ne.s32.totalorder %s33, %s49
      %p51 = scmp.eq.s32.totalorder %s25, 0
      %p52 = por %p50, %p51
      %s54 = sadd.s32 %s53, 1
      %p57 = scmp.eq.s32.totalorder %s19, 1
      %p58 = scmp.ne.s32.totalorder %s53, %s55
      %p59 = scmp.eq.s32.totalorder %s19, 0
      %p60 = por %p58, %p59
      %p61 = scmp.ne.s32.totalorder %s53, %s55
      %p62 = scmp.eq.s32.totalorder %s24, 1
      %p63 = por %p61, %p62
      %p64 = scmp.ne.s32.totalorder %s55, %s56
      %p65 = scmp.eq.s32.totalorder %s24, 0
      %p66 = por %p64, %p65
      %p67 = scmp.ne.s32.totalorder %s55, %s56
      %p68 = scmp.eq.s32.totalorder %s25, 1
      %p69 = por %p67, %p68
      %p71 = scmp.ne.s32.totalorder %s56, %s70
      %p72 = scmp.eq.s32.totalorder %s25, 0
      %p73 = por %p71, %p72
      %s75 = sadd.s32 %s74, 1
      %p78 = scmp.eq.s32.totalorder %s19, 1
      %p79 = scmp.ne.s32.totalorder %s74, %s76
      %p80 = scmp.eq.s32.totalorder %s19, 0
      %p81 = por %p79, %p80
      %p82 = scmp.ne.s32.totalorder %s74, %s76
      %p83 = scmp.eq.s32.totalorder %s24, 1
      %p84 = por %p82, %p83
      %p85 = scmp.ne.s32.totalorder %s76, %s77
      %p86 = scmp.eq.s32.totalorder %s24, 0
      %p87 = por %p85, %p86
      %p88 = scmp.ne.s32.totalorder %s76, %s77
      %p89 = scmp.eq.s32.totalorder %s25, 1
      %p90 = por %p88, %p89
      %p92 = scmp.ne.s32.totalorder %s77, %s91
      %p93 = scmp.eq.s32.totalorder %s25, 0
      %p94 = por %p92, %p93
      %s96 = sadd.s32 %s95, 1
      %p99 = scmp.eq.s32.totalorder %s19, 1
      %p100 = scmp.ne.s32.totalorder %s95, %s97
      %p101 = scmp.eq.s32.totalorder %s19, 0
      %p102 = por %p100, %p101
      %p103 = scmp.ne.s32.totalorder %s95, %s97
      %p104 = scmp.eq.s32.totalorder %s24, 1
      %p105 = por %p103, %p104
      %p106 = scmp.ne.s32.totalorder %s97, %s98
      %p107 = scmp.eq.s32.totalorder %s24, 0
      %p108 = por %p106, %p107
      %p109 = scmp.ne.s32.totalorder %s97, %s98
      %p110 = scmp.eq.s32.totalorder %s25, 1
      %p111 = por %p109, %p110
      %p113 = scmp.ne.s32.totalorder %s98, %s112
      %p114 = scmp.eq.s32.totalorder %s25, 0
      %p115 = por %p113, %p114
      %s117 = sadd.s32 %s116, 1
      %p120 = scmp.eq.s32.totalorder %s19, 1
      %p121 = scmp.ne.s32.totalorder %s116, %s118
      %p122 = scmp.eq.s32.totalorder %s19, 0
      %p123 = por %p121, %p122
      %p124 = scmp.ne.s32.totalorder %s116, %s118
      %p125 = scmp.eq.s32.totalorder %s24, 1
      %p126 = por %p124, %p125
      %p127 = scmp.ne.s32.totalorder %s118, %s119
      %p128 = scmp.eq.s32.totalorder %s24, 0
      %p129 = por %p127, %p128
      %p130 = scmp.ne.s32.totalorder %s118, %s119
      %p131 = scmp.eq.s32.totalorder %s25, 1
      %p132 = por %p130, %p131
      %p134 = scmp.ne.s32.totalorder %s119, %s133
      %p135 = scmp.eq.s32.totalorder %s25, 0
      %p136 = por %p134, %p135
      %s138 = sadd.s32 %s137, 1
      %p141 = scmp.eq.s32.totalorder %s19, 1
      %p142 = scmp.ne.s32.totalorder %s137, %s139
      %p143 = scmp.eq.s32.totalorder %s19, 0
      %p144 = por %p142, %p143
      %p145 = scmp.ne.s32.totalorder %s137, %s139
      %p146 = scmp.eq.s32.totalorder %s24, 1
      %p147 = por %p145, %p146
      %p148 = scmp.ne.s32.totalorder %s139, %s140
      %p149 = scmp.eq.s32.totalorder %s24, 0
      %p150 = por %p148, %p149
      %p151 = scmp.ne.s32.totalorder %s139, %s140
      %p152 = scmp.eq.s32.totalorder %s25, 1
      %p153 = por %p151, %p152
      %p155 = scmp.ne.s32.totalorder %s140, %s154
      %p156 = scmp.eq.s32.totalorder %s25, 0
      %p157 = por %p155, %p156
      %s159 = sadd.s32 %s158, 1
      %p162 = scmp.eq.s32.totalorder %s19, 1
      %p163 = scmp.ne.s32.totalorder %s158, %s160
      %p164 = scmp.eq.s32.totalorder %s19, 0
      %p165 = por %p163, %p164
      %p166 = scmp.ne.s32.totalorder %s158, %s160
      %p167 = scmp.eq.s32.totalorder %s24, 1
      %p168 = por %p166, %p167
      %p169 = scmp.ne.s32.totalorder %s160, %s161
      %p170 = scmp.eq.s32.totalorder %s24, 0
      %p171 = por %p169, %p170
      %p172 = scmp.ne.s32.totalorder %s160, %s161
      %p173 = scmp.eq.s32.totalorder %s25, 1
      %p174 = por %p172, %p173
      %p176 = scmp.ne.s32.totalorder %s161, %s175
      %p177 = scmp.eq.s32.totalorder %s25, 0
      %p178 = por %p176, %p177
      %s180 = sadd.s32 %s179, 1
      %p183 = scmp.eq.s32.totalorder %s19, 1
      %p184 = scmp.ne.s32.totalorder %s179, %s181
      %p185 = scmp.eq.s32.totalorder %s19, 0
      %p186 = por %p184, %p185
      %p187 = scmp.ne.s32.totalorder %s179, %s181
      %p188 = scmp.eq.s32.totalorder %s24, 1
      %p189 = por %p187, %p188
      %p190 = scmp.ne.s32.totalorder %s181, %s182
      %p191 = scmp.eq.s32.totalorder %s24, 0
      %p192 = por %p190, %p191
      %p193 = scmp.ne.s32.totalorder %s181, %s182
      %p194 = scmp.eq.s32.totalorder %s25, 1
      %p195 = por %p193, %p194
      %p197 = scmp.ne.s32.totalorder %s182, %s196
      %p198 = scmp.eq.s32.totalorder %s25, 0
      %p199 = por %p197, %p198
      %s200 = ssub.s32 %s19, %s26
      %p201 = scmp.eq.s32.totalorder %s200, 0
      %s203 = sadd.s32 %s202, 1
      %s204 = scalar_select %p201, %s202, %s203
      %p207 = pneg %p201
      %p208 = scmp.eq.s32.totalorder %s19, 1
      %p209 = por %p207, %p208
      %p210 = scmp.ne.s32.totalorder %s202, %s205
      %p211 = scmp.eq.s32.totalorder %s19, 0
      %p212 = por %p210, %p211
      %p213 = scmp.ne.s32.totalorder %s202, %s205
      %p214 = scmp.eq.s32.totalorder %s24, 1
      %p215 = por %p213, %p214
      %p216 = scmp.ne.s32.totalorder %s205, %s206
      %p217 = scmp.eq.s32.totalorder %s24, 0
      %p218 = por %p216, %p217
      %p219 = scmp.ne.s32.totalorder %s205, %s206
      %p220 = scmp.eq.s32.totalorder %s25, 1
      %p221 = por %p219, %p220
      %p223 = scmp.ne.s32.totalorder %s206, %s222
      %p224 = scmp.eq.s32.totalorder %s25, 0
      %p225 = por %p223, %p224
      %p226 = scmp.le.s32.totalorder 1, %s19
      %p227 = scmp.lt.s32.totalorder %s19, 3
      %p228 = pnand %p226, %p227
      %p229 = pneg %p228
      // Predicated region
      $region9: #{_lambda_.1} parent=5 // pred_check
        _
      $region10: #{_lambda_.1} parent=5 // pred_check_branch
        %231 = sbr.rel (%p228) target = $region12
      $region11: #{_lambda_.1} parent=5 // pred_region
        %s232 = ssub.s32 %s19, 1
        // Predicated region
        $region13: #{_lambda_.1} parent=11 // pred_check
          %p233 = pneg %p66
        $region14: #{_lambda_.1} parent=11 // pred_check_branch
          %235 = sbr.rel (%p233) target = $region16
        $region15: #{_lambda_.1} parent=11 // pred_region
          _
        $region16: #{_lambda_.1} parent=11 // pred_fallthru
          _
        // Predicated region
        $region17: #{_lambda_.1} parent=11 // pred_check
          %p236 = pneg %p87
        $region18: #{_lambda_.1} parent=11 // pred_check_branch
          %238 = sbr.rel (%p236) target = $region20
        $region19: #{_lambda_.1} parent=11 // pred_region
          _
        $region20: #{_lambda_.1} parent=11 // pred_fallthru
          _
        // Predicated region
        $region21: #{_lambda_.1} parent=11 // pred_check
          %p239 = pneg %p108
        $region22: #{_lambda_.1} parent=11 // pred_check_branch
          %241 = sbr.rel (%p239) target = $region24
        $region23: #{_lambda_.1} parent=11 // pred_region
          %s243 = ssub.s32 1024, 1024
          %244 = vsyncadd [#allocation3], %s243
          %s245 = sshll.u32 [#allocation2], 4
          %s246 = int_to_ptr.vmem [resolvable:$true] %s245
          %251 = dma.hbm_to_vmem [thread:$0]  %s3, 1024, %s246, [#allocation3], 64, 64, 4
        $region24: #{_lambda_.1} parent=11 // pred_fallthru
          _
        // Predicated region
        $region25: #{_lambda_.1} parent=11 // pred_check
          %p252 = pneg %p129
        $region26: #{_lambda_.1} parent=11 // pred_check_branch
          %254 = sbr.rel (%p252) target = $region28
        $region27: #{_lambda_.1} parent=11 // pred_region
          %s256 = ssub.s32 4096, 4096
          %257 = vsyncadd [#allocation6], %s256
          %s258 = sshll.u32 [#allocation5], 4
          %s259 = int_to_ptr.vmem [resolvable:$true] %s258
          %264 = dma.hbm_to_vmem [thread:$0]  %s4, 4096, %s259, [#allocation6], 64, 64, 4
        $region28: #{_lambda_.1} parent=11 // pred_fallthru
          _
        // Predicated region
        $region29: #{_lambda_.1} parent=11 // pred_check
          %p265 = pneg %p150
        $region30: #{_lambda_.1} parent=11 // pred_check_branch
          %267 = sbr.rel (%p265) target = $region32
        $region31: #{_lambda_.1} parent=11 // pred_region
          %s269 = ssub.s32 512, 512
          %270 = vsyncadd [#allocation6], %s269
          %s271 = sshll.u32 [#allocation7], 4
          %s272 = int_to_ptr.vmem [resolvable:$true] %s271
          %277 = dma.hbm_to_vmem [thread:$0]  %s5, 512, %s272, [#allocation6], 128, 128, 8
        $region32: #{_lambda_.1} parent=11 // pred_fallthru
          _
        // Predicated region
        $region33: #{_lambda_.1} parent=11 // pred_check
          %p278 = pneg %p171
        $region34: #{_lambda_.1} parent=11 // pred_check_branch
          %280 = sbr.rel (%p278) target = $region36
        $region35: #{_lambda_.1} parent=11 // pred_region
          _
        $region36: #{_lambda_.1} parent=11 // pred_fallthru
          _
        // Predicated region
        $region37: #{_lambda_.1} parent=11 // pred_check
          %p281 = pneg %p192
        $region38: #{_lambda_.1} parent=11 // pred_check_branch
          %283 = sbr.rel (%p281) target = $region40
        $region39: #{_lambda_.1} parent=11 // pred_region
          _
        $region40: #{_lambda_.1} parent=11 // pred_fallthru
          _
      $region12: #{_lambda_.1} parent=5 // pred_fallthru
        _
      %p284 = scmp.lt.s32.totalorder %s19, 2
      // Predicated region
      $region41: #{_lambda_.1} parent=5 // pred_check
        %p285 = pneg %p284
      $region42: #{_lambda_.1} parent=5 // pred_check_branch
        %287 = sbr.rel (%p285) target = $region44
      $region43: #{_lambda_.1} parent=5 // pred_region
        // Predicated region
        $region45: #{_lambda_.1} parent=43 // pred_check
          %p288 = pneg %p39
        $region46: #{_lambda_.1} parent=43 // pred_check_branch
          %290 = sbr.rel (%p288) target = $region48
        $region47: #{_lambda_.1} parent=43 // pred_region
          %p291 = scmp.lt.s32.totalorder %s19, 1
          %s292 = scalar_select %p291, %s19, 1
          %s293 = smul.addr %s292, 2
          %s294 = smul.addr %s293, 8
          %s295 = scalar_lea.vmem %s0, %s294
        $region48: #{_lambda_.1} parent=43 // pred_fallthru
          _
      $region44: #{_lambda_.1} parent=5 // pred_fallthru
        _
      %p296 = scmp.le.s32.totalorder 1, %s19
      %p297 = scmp.lt.s32.totalorder %s19, 3
      %p298 = pnand %p296, %p297
      %p299 = pneg %p298
      // Predicated region
      $region49: #{_lambda_.1} parent=5 // pred_check
        _
      $region50: #{_lambda_.1} parent=5 // pred_check_branch
        %301 = sbr.rel (%p298) target = $region52
      $region51: #{_lambda_.1} parent=5 // pred_region
        %s302 = ssub.s32 %s19, 1
        // Predicated region
        $region53: #{_lambda_.1} parent=51 // pred_check
          %p303 = pneg %p108
        $region54: #{_lambda_.1} parent=51 // pred_check_branch
          %305 = sbr.rel (%p303) target = $region56
        $region55: #{_lambda_.1} parent=51 // pred_region
          %306 = dma.done [#allocation3], 1024
        $region56: #{_lambda_.1} parent=51 // pred_fallthru
          _
        // Predicated region
        $region57: #{_lambda_.1} parent=51 // pred_check
          %p307 = pneg %p129
        $region58: #{_lambda_.1} parent=51 // pred_check_branch
          %309 = sbr.rel (%p307) target = $region60
        $region59: #{_lambda_.1} parent=51 // pred_region
          %310 = dma.done [#allocation6], 4096
        $region60: #{_lambda_.1} parent=51 // pred_fallthru
          _
        // Predicated region
        $region61: #{_lambda_.1} parent=51 // pred_check
          %p311 = pneg %p150
        $region62: #{_lambda_.1} parent=51 // pred_check_branch
          %313 = sbr.rel (%p311) target = $region64
        $region63: #{_lambda_.1} parent=51 // pred_region
          %314 = dma.done [#allocation6], 512
        $region64: #{_lambda_.1} parent=51 // pred_fallthru
          _
        %p315 = scmp.lt.s32.totalorder %s24, 1
        %s316 = scalar_select %p315, %s24, 1
        %s317 = smul.addr %s316, 2
        %s318 = smul.addr %s317, 8
        %s319 = scalar_lea.vmem %s0, %s318
        %p320 = pneg %p45
        %p321 = pneg %p42
        %p322 = pneg %p66
        %p323 = pneg %p63
        %p324 = pneg %p87
        %p325 = pneg %p84
        %p326 = pneg %p108
        %p327 = pneg %p105
        %p328 = pneg %p129
        %p329 = pneg %p126
        %p330 = pneg %p150
        %p331 = pneg %p147
        %p332 = pneg %p171
        %p333 = pneg %p168
        %p334 = pneg %p192
        %p335 = pneg %p189
        %p336 = pneg %p218
        %p337 = pneg %p215
        %s338 = sand.u32 %s205, 1
        %s339 = scalar_lea.sflag [#allocation4], %s338
        %s340 = sand.u32 %s205, 1
        %s341 = smul.addr %s340, 8
        %s342 = scalar_lea.vmem [#allocation8], %s341
        %p343 = scmp.lt.s32.totalorder %s24, 1
        %s344 = scalar_select %p343, %s24, 1
        %s345 = smul.addr %s344, 2
        %s346 = smul.addr %s345, 8
        %s347 = scalar_lea.vmem %s0, %s346
        %v349 = vlaneseq
        %v350 = vshrl.u32 %v349, 7
        %v351 = vadd.s32 %v350, 8
        %v352 = vadd.s32 %v350, 16
        %v353 = vadd.s32 %v350, 24
        %v354 = vadd.s32 %v350, 32
        %v355 = vadd.s32 %v350, 40
        %v356 = vadd.s32 %v350, 48
        %v357 = vadd.s32 %v350, 56
        %v358 = vlaneseq
        %v359 = vand.u32 %v358, 127
        %vm360 = vcmp.lt.s32.totalorder %v350, 0
        %v361 = vsub.s32 0, %v350
        %v362 = vsel %vm360, %v361, %v350
        %v363 = vshrl.u32 %v362, 4
        %v364 = vand.u32 %v362, 15
        %v365 = vsub.s32 0, %v364
        %v366 = vsel %vm360, %v365, %v364
        %vm367 = vcmp.lt.s32.totalorder %v351, 0
        %v368 = vsub.s32 0, %v351
        %v369 = vsel %vm367, %v368, %v351
        %v370 = vshrl.u32 %v369, 4
        %v371 = vand.u32 %v369, 15
        %v372 = vsub.s32 0, %v371
        %v373 = vsel %vm367, %v372, %v371
        %vm374 = vcmp.lt.s32.totalorder %v352, 0
        %v375 = vsub.s32 0, %v352
        %v376 = vsel %vm374, %v375, %v352
        %v377 = vshrl.u32 %v376, 4
        %v378 = vand.u32 %v376, 15
        %v379 = vsub.s32 0, %v378
        %v380 = vsel %vm374, %v379, %v378
        %vm381 = vcmp.lt.s32.totalorder %v353, 0
        %v382 = vsub.s32 0, %v353
        %v383 = vsel %vm381, %v382, %v353
        %v384 = vshrl.u32 %v383, 4
        %v385 = vand.u32 %v383, 15
        %v386 = vsub.s32 0, %v385
        %v387 = vsel %vm381, %v386, %v385
        %vm388 = vcmp.lt.s32.totalorder %v354, 0
        %v389 = vsub.s32 0, %v354
        %v390 = vsel %vm388, %v389, %v354
        %v391 = vshrl.u32 %v390, 4
        %v392 = vand.u32 %v390, 15
        %v393 = vsub.s32 0, %v392
        %v394 = vsel %vm388, %v393, %v392
        %vm395 = vcmp.lt.s32.totalorder %v355, 0
        %v396 = vsub.s32 0, %v355
        %v397 = vsel %vm395, %v396, %v355
        %v398 = vshrl.u32 %v397, 4
        %v399 = vand.u32 %v397, 15
        %v400 = vsub.s32 0, %v399
        %v401 = vsel %vm395, %v400, %v399
        %vm402 = vcmp.lt.s32.totalorder %v356, 0
        %v403 = vsub.s32 0, %v356
        %v404 = vsel %vm402, %v403, %v356
        %v405 = vshrl.u32 %v404, 4
        %v406 = vand.u32 %v404, 15
        %v407 = vsub.s32 0, %v406
        %v408 = vsel %vm402, %v407, %v406
        %vm409 = vcmp.lt.s32.totalorder %v357, 0
        %v410 = vsub.s32 0, %v357
        %v411 = vsel %vm409, %v410, %v357
        %v412 = vshrl.u32 %v411, 4
        %v413 = vand.u32 %v411, 15
        %v414 = vsub.s32 0, %v413
        %v415 = vsel %vm409, %v414, %v413
        %vm416 = vcmp.ne.s32.totalorder %v366, 0
        %vm417 = vcmp.ne.s32.totalorder %v373, 0
        %vm418 = vcmp.ne.s32.totalorder %v380, 0
        %vm419 = vcmp.ne.s32.totalorder %v387, 0
        %vm420 = vcmp.ne.s32.totalorder %v394, 0
        %vm421 = vcmp.ne.s32.totalorder %v401, 0
        %vm422 = vcmp.ne.s32.totalorder %v408, 0
        %vm423 = vcmp.ne.s32.totalorder %v415, 0
        %vm424 = vcmp.lt.s32.totalorder %v366, 0
        %vm425 = vcmp.lt.s32.totalorder %v373, 0
        %vm426 = vcmp.lt.s32.totalorder %v380, 0
        %vm427 = vcmp.lt.s32.totalorder %v387, 0
        %vm428 = vcmp.lt.s32.totalorder %v394, 0
        %vm429 = vcmp.lt.s32.totalorder %v401, 0
        %vm430 = vcmp.lt.s32.totalorder %v408, 0
        %vm431 = vcmp.lt.s32.totalorder %v415, 0
        %vm432 = vmand %vm424, %vm416
        %vm433 = vmand %vm425, %vm417
        %vm434 = vmand %vm426, %vm418
        %vm435 = vmand %vm427, %vm419
        %vm436 = vmand %vm428, %vm420
        %vm437 = vmand %vm429, %vm421
        %vm438 = vmand %vm430, %vm422
        %vm439 = vmand %vm431, %vm423
        %v440 = vadd.s32 %v366, 16
        %v441 = vadd.s32 %v373, 16
        %v442 = vadd.s32 %v380, 16
        %v443 = vadd.s32 %v387, 16
        %v444 = vadd.s32 %v394, 16
        %v445 = vadd.s32 %v401, 16
        %v446 = vadd.s32 %v408, 16
        %v447 = vadd.s32 %v415, 16
        %v448 = vsel %vm432, %v440, %v366
        %v449 = vsel %vm433, %v441, %v373
        %v450 = vsel %vm434, %v442, %v380
        %v451 = vsel %vm435, %v443, %v387
        %v452 = vsel %vm436, %v444, %v394
        %v453 = vsel %vm437, %v445, %v401
        %v454 = vsel %vm438, %v446, %v408
        %v455 = vsel %vm439, %v447, %v415
        %vm456 = vcmp.le.s32.totalorder %v359, %v448
        %vm457 = vcmp.le.s32.totalorder %v359, %v449
        %vm458 = vcmp.le.s32.totalorder %v359, %v450
        %vm459 = vcmp.le.s32.totalorder %v359, %v451
        %vm460 = vcmp.le.s32.totalorder %v359, %v452
        %vm461 = vcmp.le.s32.totalorder %v359, %v453
        %vm462 = vcmp.le.s32.totalorder %v359, %v454
        %vm463 = vcmp.le.s32.totalorder %v359, %v455
        %vm464 = vcmp.ge.s32.totalorder %v359, 0
        %vm465 = vcmp.lt.s32.totalorder %v359, 8
        %vm466 = vmand %vm464, %vm465
        %v467 = vsel %vm466, 1, 0
        %v468 = vcvt.s32.f32 %v467
        %vm469 = vcmp.ge.s32.totalorder %v359, 8
        %vm470 = vcmp.lt.s32.totalorder %v359, 16
        %vm471 = vmand %vm469, %vm470
        %v472 = vsel %vm471, 1, 0
        %v473 = vcvt.s32.f32 %v472
        %vm474 = vcmp.ge.s32.totalorder %v359, 16
        %vm475 = vcmp.lt.s32.totalorder %v359, 24
        %vm476 = vmand %vm474, %vm475
        %v477 = vsel %vm476, 1, 0
        %v478 = vcvt.s32.f32 %v477
        %vm479 = vcmp.ge.s32.totalorder %v359, 24
        %vm480 = vcmp.lt.s32.totalorder %v359, 32
        %vm481 = vmand %vm479, %vm480
        %v482 = vsel %vm481, 1, 0
        %v483 = vcvt.s32.f32 %v482
        %v484 = vmul.u32 %v350, 2
        %vm485 = vcmp.eq.s32.totalorder %v359, %v484
        %v486 = vsel %vm485, 1, 0
        %v487 = vcvt.s32.f32 %v486
        %v488 = vpack.c.bf16 %v487, %v487
        %v489 = vadd.s32 %v484, 1
        %vm490 = vcmp.eq.s32.totalorder %v359, %v489
        %v491 = vsel %vm490, 1, 0
        %v492 = vcvt.s32.f32 %v491
        %v493 = vpack.c.bf16 %v492, %v492
        %v494 = vld [vmem:[%s1] sm:$0xf]
        %v495 = vld [vmem:[%s1 + $0x4] sm:$0xf]
        %v496 = vld [vmem:[%s1 + $0x8] sm:$0xf]
        %v497 = vld [vmem:[%s1 + $0xc] sm:$0xf]
        %v498 = vld [vmem:[%s1 + $0x10] sm:$0xf]
        %v499 = vld [vmem:[%s1 + $0x14] sm:$0xf]
        %v500 = vld [vmem:[%s1 + $0x18] sm:$0xf]
        %v501 = vld [vmem:[%s1 + $0x1c] sm:$0xf]
        %v502 = vld [vmem:[%s1 + $0x20] sm:$0xf]
        %v503 = vld [vmem:[%s1 + $0x24] sm:$0xf]
        %v504 = vld [vmem:[%s1 + $0x28] sm:$0xf]
        %v505 = vld [vmem:[%s1 + $0x2c] sm:$0xf]
        %v506 = vld [vmem:[%s7] sm:$0x1]
        %v507 = vld [vmem:[%s347] sm:$0xff]
        %v508 = vld [vmem:[%s347 + $0x8] sm:$0xff]
        %v509 = vpack.c.bf16 %v508, %v507
        %v511 = vlaneseq
        %v512 = vshrl.u32 %v511, 7
        %v513 = vsub.s32 0, %v512
        %v514 = vrot.slane %v506, %v513
        %v520 = vunpack.c.l.b16 %v494
        %v521 = vunpack.c.l.b16 %v495
        %v522 = vunpack.c.l.b16 %v496
        %v523 = vunpack.c.l.b16 %v497
        %v524 = vpack.c.b16 %v521, %v520
        %v525 = vpack.c.b16 %v523, %v522
        %vm528 = vcmask 261120
        %v530 = vsel %vm528, %v509, 0
        %532 = vmatprep.subr.bf16.mxu0 0
        %533 = vmatpush1.bf16.msra.mxu0 %v524
        %534 = vmatprep.subr.bf16.mxu0 0
        %535 = vmatpush1.bf16.msra.mxu0 %v525
        %536 = vmatprep.subr.bf16.mxu0 0
        %537 = vmatpush1.bf16.msra.mxu0 0
        %538 = vmatprep.subr.bf16.mxu0 0
        %539 = vmatpush1.bf16.msra.mxu0 0
        %540 = vmatprep.subr.bf16.mxu0 0
        %541 = vmatpush1.bf16.msra.mxu0 0
        %542 = vmatprep.subr.bf16.mxu0 0
        %543 = vmatpush1.bf16.msra.mxu0 0
        %544 = vmatprep.subr.bf16.mxu0 0
        %545 = vmatpush1.bf16.msra.mxu0 0
        %546 = vmatprep.subr.bf16.mxu0 0
        %547 = vmatpush1.bf16.msra.mxu0 0
        %548 = vmatprep.subr.bf16.mxu0 0
        %549 = vmatpush1.bf16.msra.mxu0 0
        %550 = vmatprep.subr.bf16.mxu0 0
        %551 = vmatpush1.bf16.msra.mxu0 0
        %552 = vmatprep.subr.bf16.mxu0 0
        %553 = vmatpush1.bf16.msra.mxu0 0
        %554 = vmatprep.subr.bf16.mxu0 0
        %555 = vmatpush1.bf16.msra.mxu0 0
        %556 = vmatprep.subr.bf16.mxu0 0
        %557 = vmatpush1.bf16.msra.mxu0 0
        %558 = vmatprep.subr.bf16.mxu0 0
        %559 = vmatpush1.bf16.msra.mxu0 0
        %560 = vmatprep.subr.bf16.mxu0 0
        %561 = vmatpush1.bf16.msra.mxu0 0
        %562 = vmatprep.subr.bf16.mxu0 0
        %563 = vmatpush1.bf16.msra.mxu0 0
        %564 = vmatprep.mubr.bf16.mxu0 0
        %565 = vmatmul.mubr.bf16.gmra.mrb[0].mxu0 %v530
        %v566 = vpop.f32.mrb[0].mxu0
        %v567 = vadd.f32 %v514, %v566
        %v568 = vpop.f32.mrb[0].mxu0
        %v569 = vpop.f32.mrb[0].mxu0
        %v570 = vadd.f32 %v514, %v569
        %v571 = vpop.f32.mrb[0].mxu0
        %572 = vdwg.mxu0
        %v573 = vld [vmem:[#allocation7] sm:$0x3f]
        %v574 = vld [vmem:[%s6] sm:$0x3]
        %v575 = vld [vmem:[%s2] sm:$0xf]
        %v576 = vld [vmem:[%s2 + $0x4] sm:$0xf]
        %v577 = vld [vmem:[%s2 + $0x8] sm:$0xf]
        %v578 = vld [vmem:[%s2 + $0xc] sm:$0xf]
        %v579 = vld [vmem:[#allocation2] sm:$0xf]
        %v580 = vld [vmem:[#allocation2 + $0x4] sm:$0xf]
        %v581 = vld [vmem:[#allocation2 + $0x8] sm:$0xf]
        %v582 = vld [vmem:[#allocation2 + $0xc] sm:$0xf]
        %v583 = vld [vmem:[#allocation5] sm:$0xf]
        %v584 = vld [vmem:[#allocation5 + $0x4] sm:$0xf]
        %v585 = vld [vmem:[#allocation5 + $0x8] sm:$0xf]
        %v586 = vld [vmem:[#allocation5 + $0xc] sm:$0xf]
        %v587 = vld [vmem:[#allocation5 + $0x10] sm:$0xf]
        %v588 = vld [vmem:[#allocation5 + $0x14] sm:$0xf]
        %v589 = vld [vmem:[#allocation5 + $0x18] sm:$0xf]
        %v590 = vld [vmem:[#allocation5 + $0x1c] sm:$0xf]
        %v591 = vld [vmem:[#allocation5 + $0x20] sm:$0xf]
        %v592 = vld [vmem:[#allocation5 + $0x24] sm:$0xf]
        %v593 = vld [vmem:[#allocation5 + $0x28] sm:$0xf]
        %v594 = vld [vmem:[#allocation5 + $0x2c] sm:$0xf]
        %v595 = vld [vmem:[#allocation5 + $0x30] sm:$0xf]
        %v596 = vld [vmem:[#allocation5 + $0x34] sm:$0xf]
        %v597 = vld [vmem:[#allocation5 + $0x38] sm:$0xf]
        %v598 = vld [vmem:[#allocation5 + $0x3c] sm:$0xf]
        %v599 = vsel %vm528, %v567, 0.0
        %600 = vadd.xlane.f32.xlu0 %v599
        %v601 = vpop.xlane.xlu0 %600
        %v602 = vsel %vm528, %v570, 0.0
        %603 = vadd.xlane.f32.xlu0 %v602
        %v604 = vpop.xlane.xlu0 %603
        %v605 = vrcp.pop 32.0
        %v606 = vmul.f32 %v601, %v605
        %v607 = vmul.f32 %v604, %v605
        %v608 = vsub.f32 %v567, %v606
        %v609 = vsub.f32 %v570, %v607
        %v610 = vmul.f32 %v608, %v608
        %v611 = vmul.f32 %v609, %v609
        %v612 = vsel %vm528, %v610, 0.0
        %613 = vadd.xlane.f32.xlu0 %v612
        %v614 = vpop.xlane.xlu0 %613
        %v615 = vsel %vm528, %v611, 0.0
        %616 = vadd.xlane.f32.xlu0 %v615
        %v617 = vpop.xlane.xlu0 %616
        %v618 = vmul.f32 %v614, %v605
        %v619 = vmul.f32 %v617, %v605
        %v620 = vadd.f32 %v618, 1e-05
        %v621 = vadd.f32 %v619, 1e-05
        %v622 = vrsqrt.pop %v620
        %v623 = vrsqrt.pop %v621
        %v624 = vmul.f32 %v608, %v622
        %v625 = vmul.f32 %v609, %v623
        %v626 = vlaneseq
        %v627 = vshrl.u32 %v626, 7
        %v628 = vsub.s32 0, %v627
        %v629 = vrot.slane %v573, %v628
        %v630 = vmul.f32 %v624, %v629
        %v631 = vmul.f32 %v625, %v629
        %v632 = vlaneseq
        %v633 = vshrl.u32 %v632, 7
        %v634 = vsub.s32 1, %v633
        %v635 = vrot.slane %v573, %v634
        %v636 = vadd.f32 %v630, %v635
        %v637 = vadd.f32 %v631, %v635
        %v638 = vpack.c.bf16 %v637, %v636
        %v639 = vlaneseq
        %v640 = vshrl.u32 %v639, 7
        %v641 = vsub.s32 0, %v640
        %v642 = vrot.slane %v574, %v641
        %v647 = vunpack.c.l.b16 %v575
        %v648 = vunpack.c.l.b16 %v576
        %v649 = vunpack.c.l.b16 %v577
        %v650 = vunpack.c.l.b16 %v578
        %v651 = vpack.c.b16 %v648, %v647
        %v652 = vpack.c.b16 %v650, %v649
        %v656 = vsel %vm528, %v638, 0
        %658 = vmatprep.subr.bf16.mxu0 0
        %659 = vmatpush1.bf16.msra.mxu0 %v651
        %660 = vmatprep.subr.bf16.mxu0 0
        %661 = vmatpush1.bf16.msra.mxu0 %v652
        %662 = vmatprep.subr.bf16.mxu0 0
        %663 = vmatpush1.bf16.msra.mxu0 0
        %664 = vmatprep.subr.bf16.mxu0 0
        %665 = vmatpush1.bf16.msra.mxu0 0
        %666 = vmatprep.subr.bf16.mxu0 0
        %667 = vmatpush1.bf16.msra.mxu0 0
        %668 = vmatprep.subr.bf16.mxu0 0
        %669 = vmatpush1.bf16.msra.mxu0 0
        %670 = vmatprep.subr.bf16.mxu0 0
        %671 = vmatpush1.bf16.msra.mxu0 0
        %672 = vmatprep.subr.bf16.mxu0 0
        %673 = vmatpush1.bf16.msra.mxu0 0
        %674 = vmatprep.subr.bf16.mxu0 0
        %675 = vmatpush1.bf16.msra.mxu0 0
        %676 = vmatprep.subr.bf16.mxu0 0
        %677 = vmatpush1.bf16.msra.mxu0 0
        %678 = vmatprep.subr.bf16.mxu0 0
        %679 = vmatpush1.bf16.msra.mxu0 0
        %680 = vmatprep.subr.bf16.mxu0 0
        %681 = vmatpush1.bf16.msra.mxu0 0
        %682 = vmatprep.subr.bf16.mxu0 0
        %683 = vmatpush1.bf16.msra.mxu0 0
        %684 = vmatprep.subr.bf16.mxu0 0
        %685 = vmatpush1.bf16.msra.mxu0 0
        %686 = vmatprep.subr.bf16.mxu0 0
        %687 = vmatpush1.bf16.msra.mxu0 0
        %688 = vmatprep.subr.bf16.mxu0 0
        %689 = vmatpush1.bf16.msra.mxu0 0
        %690 = vmatprep.mubr.bf16.mxu0 0
        %691 = vmatmul.mubr.bf16.gmra.mrb[0].mxu0 %v656
        %v692 = vpop.f32.mrb[0].mxu0
        %v693 = vadd.f32 %v642, %v692
        %v694 = vpop.f32.mrb[0].mxu0
        %v695 = vpop.f32.mrb[0].mxu0
        %v696 = vadd.f32 %v642, %v695
        %v697 = vpop.f32.mrb[0].mxu0
        %698 = vdwg.mxu0
        %v699 = vmul.f32 %v693, %v468
        %v700 = vmul.f32 %v696, %v468
        %v701 = vmul.f32 %v693, %v473
        %v702 = vmul.f32 %v696, %v473
        %v703 = vmul.f32 %v693, %v478
        %v704 = vmul.f32 %v696, %v478
        %v705 = vmul.f32 %v693, %v483
        %v706 = vmul.f32 %v696, %v483
        %v707 = vpack.c.bf16 %v700, %v699
        %v708 = vpack.c.bf16 %v702, %v701
        %v709 = vpack.c.bf16 %v704, %v703
        %v710 = vpack.c.bf16 %v706, %v705
        %v711 = vpack.c.bf16 %v696, %v693
        %713 = vrot.lane.b32.xlu0 %v711, 96
        %v714 = vpop.permute.xlu0 %713
        %v716 = vsel %vm528, %v707, 0
        %v719 = vsel %vm528, %v708, 0
        %v722 = vsel %vm528, %v709, 0
        %v725 = vsel %vm528, %v710, 0
        %v728 = vsel %vm528, %v714, 0
        %730 = vmatprep.subr.bf16.mxu0 0
        %731 = vmatpush1.bf16.xpose.msra.mxu0 %v728
        %732 = vmatprep.subr.bf16.mxu0 0
        %733 = vmatpush1.bf16.xpose.msra.mxu0 0
        %734 = vmatprep.subr.bf16.mxu0 0
        %735 = vmatpush1.bf16.xpose.msra.mxu0 0
        %736 = vmatprep.subr.bf16.mxu0 0
        %737 = vmatpush1.bf16.xpose.msra.mxu0 0
        %738 = vmatprep.subr.bf16.mxu0 0
        %739 = vmatpush1.bf16.xpose.msra.mxu0 0
        %740 = vmatprep.subr.bf16.mxu0 0
        %741 = vmatpush1.bf16.xpose.msra.mxu0 0
        %742 = vmatprep.subr.bf16.mxu0 0
        %743 = vmatpush1.bf16.xpose.msra.mxu0 0
        %744 = vmatprep.subr.bf16.mxu0 0
        %745 = vmatpush1.bf16.xpose.msra.mxu0 0
        %746 = vmatprep.subr.bf16.mxu0 0
        %747 = vmatpush1.bf16.xpose.msra.mxu0 0
        %748 = vmatprep.subr.bf16.mxu0 0
        %749 = vmatpush1.bf16.xpose.msra.mxu0 0
        %750 = vmatprep.subr.bf16.mxu0 0
        %751 = vmatpush1.bf16.xpose.msra.mxu0 0
        %752 = vmatprep.subr.bf16.mxu0 0
        %753 = vmatpush1.bf16.xpose.msra.mxu0 0
        %754 = vmatprep.subr.bf16.mxu0 0
        %755 = vmatpush1.bf16.xpose.msra.mxu0 0
        %756 = vmatprep.subr.bf16.mxu0 0
        %757 = vmatpush1.bf16.xpose.msra.mxu0 0
        %758 = vmatprep.subr.bf16.mxu0 0
        %759 = vmatpush1.bf16.xpose.msra.mxu0 0
        %760 = vmatprep.subr.bf16.mxu0 0
        %761 = vmatpush1.bf16.xpose.msra.mxu0 0
        %762 = vmatprep.mubr.bf16.mxu0 0
        %763 = vmatmul.mubr.bf16.gmra.mrb[0].mxu0 %v716
        %v764 = vpop.f32.mrb[0].mxu0
        %v765 = vadd.f32 0.0, %v764
        %v766 = vpop.f32.mrb[0].mxu0
        %v767 = vpop.f32.mrb[0].mxu0
        %v768 = vadd.f32 0.0, %v767
        %v769 = vpop.f32.mrb[0].mxu0
        %770 = vmatprep.mubr.bf16.mxu0 0
        %771 = vmatmul.mubr.bf16.gmra.mrb[0].mxu0 %v719
        %v772 = vpop.f32.mrb[0].mxu0
        %v773 = vadd.f32 0.0, %v772
        %v774 = vpop.f32.mrb[0].mxu0
        %v775 = vpop.f32.mrb[0].mxu0
        %v776 = vadd.f32 0.0, %v775
        %v777 = vpop.f32.mrb[0].mxu0
        %778 = vmatprep.mubr.bf16.mxu0 0
        %779 = vmatmul.mubr.bf16.gmra.mrb[0].mxu0 %v722
        %v780 = vpop.f32.mrb[0].mxu0
        %v781 = vadd.f32 0.0, %v780
        %v782 = vpop.f32.mrb[0].mxu0
        %v783 = vpop.f32.mrb[0].mxu0
        %v784 = vadd.f32 0.0, %v783
        %v785 = vpop.f32.mrb[0].mxu0
        %786 = vmatprep.mubr.bf16.mxu0 0
        %787 = vmatmul.mubr.bf16.gmra.mrb[0].mxu0 %v725
        %v788 = vpop.f32.mrb[0].mxu0
        %v789 = vadd.f32 0.0, %v788
        %v790 = vpop.f32.mrb[0].mxu0
        %v791 = vpop.f32.mrb[0].mxu0
        %v792 = vadd.f32 0.0, %v791
        %v793 = vpop.f32.mrb[0].mxu0
        %794 = vdwg.mxu0
        %v795 = vsel %vm456, %v765, -1e+30
        %v796 = vsel %vm457, %v768, -1e+30
        %v797 = vsel %vm458, %v773, -1e+30
        %v798 = vsel %vm459, %v776, -1e+30
        %v799 = vsel %vm460, %v781, -1e+30
        %v800 = vsel %vm461, %v784, -1e+30
        %v801 = vsel %vm462, %v789, -1e+30
        %v802 = vsel %vm463, %v792, -1e+30
        %vm803 = vcmask 130048
        %v804 = vsel %vm803, %v795, -inf
        %805 = vmax.xlane.f32.xlu0 %v804
        %v806 = vpop.xlane.xlu0 %805
        %v807 = vsel %vm803, %v796, -inf
        %808 = vmax.xlane.f32.xlu0 %v807
        %v809 = vpop.xlane.xlu0 %808
        %v810 = vsel %vm803, %v797, -inf
        %811 = vmax.xlane.f32.xlu0 %v810
        %v812 = vpop.xlane.xlu0 %811
        %v813 = vsel %vm803, %v798, -inf
        %814 = vmax.xlane.f32.xlu0 %v813
        %v815 = vpop.xlane.xlu0 %814
        %v816 = vsel %vm803, %v799, -inf
        %817 = vmax.xlane.f32.xlu0 %v816
        %v818 = vpop.xlane.xlu0 %817
        %v819 = vsel %vm803, %v800, -inf
        %820 = vmax.xlane.f32.xlu0 %v819
        %v821 = vpop.xlane.xlu0 %820
        %v822 = vsel %vm803, %v801, -inf
        %823 = vmax.xlane.f32.xlu0 %v822
        %v824 = vpop.xlane.xlu0 %823
        %v825 = vsel %vm803, %v802, -inf
        %826 = vmax.xlane.f32.xlu0 %v825
        %v827 = vpop.xlane.xlu0 %826
        %v828 = vsub.f32 %v795, %v806
        %v829 = vsub.f32 %v796, %v809
        %v830 = vsub.f32 %v797, %v812
        %v831 = vsub.f32 %v798, %v815
        %v832 = vsub.f32 %v799, %v818
        %v833 = vsub.f32 %v800, %v821
        %v834 = vsub.f32 %v801, %v824
        %v835 = vsub.f32 %v802, %v827
        %v836 = vmul.f32 %v828, 1.442695
        %v837 = vpow.pop %v836
        %v838 = vmul.f32 %v829, 1.442695
        %v839 = vpow.pop %v838
        %v840 = vmul.f32 %v830, 1.442695
        %v841 = vpow.pop %v840
        %v842 = vmul.f32 %v831, 1.442695
        %v843 = vpow.pop %v842
        %v844 = vmul.f32 %v832, 1.442695
        %v845 = vpow.pop %v844
        %v846 = vmul.f32 %v833, 1.442695
        %v847 = vpow.pop %v846
        %v848 = vmul.f32 %v834, 1.442695
        %v849 = vpow.pop %v848
        %v850 = vmul.f32 %v835, 1.442695
        %v851 = vpow.pop %v850
        %v852 = vsel %vm803, %v837, 0.0
        %853 = vadd.xlane.f32.xlu0 %v852
        %v854 = vpop.xlane.xlu0 %853
        %v855 = vsel %vm803, %v839, 0.0
        %856 = vadd.xlane.f32.xlu0 %v855
        %v857 = vpop.xlane.xlu0 %856
        %v858 = vsel %vm803, %v841, 0.0
        %859 = vadd.xlane.f32.xlu0 %v858
        %v860 = vpop.xlane.xlu0 %859
        %v861 = vsel %vm803, %v843, 0.0
        %862 = vadd.xlane.f32.xlu0 %v861
        %v863 = vpop.xlane.xlu0 %862
        %v864 = vsel %vm803, %v845, 0.0
        %865 = vadd.xlane.f32.xlu0 %v864
        %v866 = vpop.xlane.xlu0 %865
        %v867 = vsel %vm803, %v847, 0.0
        %868 = vadd.xlane.f32.xlu0 %v867
        %v869 = vpop.xlane.xlu0 %868
        %v870 = vsel %vm803, %v849, 0.0
        %871 = vadd.xlane.f32.xlu0 %v870
        %v872 = vpop.xlane.xlu0 %871
        %v873 = vsel %vm803, %v851, 0.0
        %874 = vadd.xlane.f32.xlu0 %v873
        %v875 = vpop.xlane.xlu0 %874
        %v876 = vrcp.pop %v854
        %v877 = vrcp.pop %v857
        %v878 = vrcp.pop %v860
        %v879 = vrcp.pop %v863
        %v880 = vrcp.pop %v866
        %v881 = vrcp.pop %v869
        %v882 = vrcp.pop %v872
        %v883 = vrcp.pop %v875
        %v884 = vmul.f32 %v837, %v876
        %v885 = vmul.f32 %v839, %v877
        %v886 = vmul.f32 %v841, %v878
        %v887 = vmul.f32 %v843, %v879
        %v888 = vmul.f32 %v845, %v880
        %v889 = vmul.f32 %v847, %v881
        %v890 = vmul.f32 %v849, %v882
        %v891 = vmul.f32 %v851, %v883
        %v892 = vpack.c.bf16 %v885, %v884
        %v893 = vpack.c.bf16 %v887, %v886
        %v894 = vpack.c.bf16 %v889, %v888
        %v895 = vpack.c.bf16 %v891, %v890
        %896 = vrot.lane.b32.xlu0 %v711, 64
        %v897 = vpop.permute.xlu0 %896
        %v900 = vsel %vm803, %v892, 0
        %v903 = vsel %vm803, %v893, 0
        %v906 = vsel %vm803, %v894, 0
        %v909 = vsel %vm803, %v895, 0
        %911 = vmatprep.subr.bf16.mxu0 0
        %912 = vmatpush1.bf16.msra.mxu0 %v897
        %913 = vmatprep.subr.bf16.mxu0 0
        %914 = vmatpush1.bf16.msra.mxu0 0
        %915 = vmatprep.subr.bf16.mxu0 0
        %916 = vmatpush1.bf16.msra.mxu0 0
        %917 = vmatprep.subr.bf16.mxu0 0
        %918 = vmatpush1.bf16.msra.mxu0 0
        %919 = vmatprep.subr.bf16.mxu0 0
        %920 = vmatpush1.bf16.msra.mxu0 0
        %921 = vmatprep.subr.bf16.mxu0 0
        %922 = vmatpush1.bf16.msra.mxu0 0
        %923 = vmatprep.subr.bf16.mxu0 0
        %924 = vmatpush1.bf16.msra.mxu0 0
        %925 = vmatprep.subr.bf16.mxu0 0
        %926 = vmatpush1.bf16.msra.mxu0 0
        %927 = vmatprep.subr.bf16.mxu0 0
        %928 = vmatpush1.bf16.msra.mxu0 0
        %929 = vmatprep.subr.bf16.mxu0 0
        %930 = vmatpush1.bf16.msra.mxu0 0
        %931 = vmatprep.subr.bf16.mxu0 0
        %932 = vmatpush1.bf16.msra.mxu0 0
        %933 = vmatprep.subr.bf16.mxu0 0
        %934 = vmatpush1.bf16.msra.mxu0 0
        %935 = vmatprep.subr.bf16.mxu0 0
        %936 = vmatpush1.bf16.msra.mxu0 0
        %937 = vmatprep.subr.bf16.mxu0 0
        %938 = vmatpush1.bf16.msra.mxu0 0
        %939 = vmatprep.subr.bf16.mxu0 0
        %940 = vmatpush1.bf16.msra.mxu0 0
        %941 = vmatprep.subr.bf16.mxu0 0
        %942 = vmatpush1.bf16.msra.mxu0 0
        %943 = vmatprep.mubr.bf16.mxu0 0
        %944 = vmatmul.mubr.bf16.gmra.mrb[0].mxu0 %v900
        %v945 = vpop.f32.mrb[0].mxu0
        %v946 = vadd.f32 0.0, %v945
        %v947 = vpop.f32.mrb[0].mxu0
        %v948 = vpop.f32.mrb[0].mxu0
        %v949 = vadd.f32 0.0, %v948
        %v950 = vpop.f32.mrb[0].mxu0
        %951 = vmatprep.mubr.bf16.mxu0 0
        %952 = vmatmul.mubr.bf16.gmra.mrb[0].mxu0 %v903
        %v953 = vpop.f32.mrb[0].mxu0
        %v954 = vadd.f32 0.0, %v953
        %v955 = vpop.f32.mrb[0].mxu0
        %v956 = vpop.f32.mrb[0].mxu0
        %v957 = vadd.f32 0.0, %v956
        %v958 = vpop.f32.mrb[0].mxu0
        %959 = vmatprep.mubr.bf16.mxu0 0
        %960 = vmatmul.mubr.bf16.gmra.mrb[0].mxu0 %v906
        %v961 = vpop.f32.mrb[0].mxu0
        %v962 = vadd.f32 0.0, %v961
        %v963 = vpop.f32.mrb[0].mxu0
        %v964 = vpop.f32.mrb[0].mxu0
        %v965 = vadd.f32 0.0, %v964
        %v966 = vpop.f32.mrb[0].mxu0
        %967 = vmatprep.mubr.bf16.mxu0 0
        %968 = vmatmul.mubr.bf16.gmra.mrb[0].mxu0 %v909
        %v969 = vpop.f32.mrb[0].mxu0
        %v970 = vadd.f32 0.0, %v969
        %v971 = vpop.f32.mrb[0].mxu0
        %v972 = vpop.f32.mrb[0].mxu0
        %v973 = vadd.f32 0.0, %v972
        %v974 = vpop.f32.mrb[0].mxu0
        %975 = vdwg.mxu0
        %v976 = vmul.f32 %v946, %v468
        %v977 = vmul.f32 %v949, %v468
        %v978 = vadd.f32 %v976, 0.0
        %v979 = vadd.f32 %v977, 0.0
        %v980 = vmul.f32 %v954, %v473
        %v981 = vmul.f32 %v957, %v473
        %v982 = vadd.f32 %v978, %v980
        %v983 = vadd.f32 %v979, %v981
        %v984 = vmul.f32 %v962, %v478
        %v985 = vmul.f32 %v965, %v478
        %v986 = vadd.f32 %v982, %v984
        %v987 = vadd.f32 %v983, %v985
        %v988 = vmul.f32 %v970, %v483
        %v989 = vmul.f32 %v973, %v483
        %v990 = vadd.f32 %v986, %v988
        %v991 = vadd.f32 %v987, %v989
        %v992 = vpack.c.bf16 %v991, %v990
        %993 = vrot.lane.b32.xlu0 %v651, 32
        %v994 = vpop.permute.xlu0 %993
        %995 = vrot.lane.b32.xlu0 %v652, 32
        %v996 = vpop.permute.xlu0 %995
        %v1000 = vsel %vm528, %v992, 0
        %1002 = vmatprep.subr.bf16.mxu0 0
        %1003 = vmatpush1.bf16.msra.mxu0 %v994
        %1004 = vmatprep.subr.bf16.mxu0 0
        %1005 = vmatpush1.bf16.msra.mxu0 %v996
        %1006 = vmatprep.subr.bf16.mxu0 0
        %1007 = vmatpush1.bf16.msra.mxu0 0
        %1008 = vmatprep.subr.bf16.mxu0 0
        %1009 = vmatpush1.bf16.msra.mxu0 0
        %1010 = vmatprep.subr.bf16.mxu0 0
        %1011 = vmatpush1.bf16.msra.mxu0 0
        %1012 = vmatprep.subr.bf16.mxu0 0
        %1013 = vmatpush1.bf16.msra.mxu0 0
        %1014 = vmatprep.subr.bf16.mxu0 0
        %1015 = vmatpush1.bf16.msra.mxu0 0
        %1016 = vmatprep.subr.bf16.mxu0 0
        %1017 = vmatpush1.bf16.msra.mxu0 0
        %1018 = vmatprep.subr.bf16.mxu0 0
        %1019 = vmatpush1.bf16.msra.mxu0 0
        %1020 = vmatprep.subr.bf16.mxu0 0
        %1021 = vmatpush1.bf16.msra.mxu0 0
        %1022 = vmatprep.subr.bf16.mxu0 0
        %1023 = vmatpush1.bf16.msra.mxu0 0
        %1024 = vmatprep.subr.bf16.mxu0 0
        %1025 = vmatpush1.bf16.msra.mxu0 0
        %1026 = vmatprep.subr.bf16.mxu0 0
        %1027 = vmatpush1.bf16.msra.mxu0 0
        %1028 = vmatprep.subr.bf16.mxu0 0
        %1029 = vmatpush1.bf16.msra.mxu0 0
        %1030 = vmatprep.subr.bf16.mxu0 0
        %1031 = vmatpush1.bf16.msra.mxu0 0
        %1032 = vmatprep.subr.bf16.mxu0 0
        %1033 = vmatpush1.bf16.msra.mxu0 0
        %1034 = vmatprep.mubr.bf16.mxu0 0
        %1035 = vmatmul.mubr.bf16.gmra.mrb[0].mxu0 %v1000
        %v1036 = vpop.f32.mrb[0].mxu0
        %v1037 = vadd.f32 0.0, %v1036
        %v1038 = vpop.f32.mrb[0].mxu0
        %v1039 = vpop.f32.mrb[0].mxu0
        %v1040 = vadd.f32 0.0, %v1039
        %v1041 = vpop.f32.mrb[0].mxu0
        %1042 = vdwg.mxu0
        %v1043 = vadd.f32 %v567, %v1037
        %v1044 = vadd.f32 %v570, %v1040
        %v1045 = vlaneseq
        %v1046 = vshrl.u32 %v1045, 7
        %v1047 = vsub.s32 4, %v1046
        %v1048 = vrot.slane %v573, %v1047
        %v1049 = vadd.f32 %v1043, %v1048
        %v1050 = vadd.f32 %v1044, %v1048
        %v1051 = vsel %vm528, %v1049, 0.0
        %1052 = vadd.xlane.f32.xlu0 %v1051
        %v1053 = vpop.xlane.xlu0 %1052
        %v1054 = vsel %vm528, %v1050, 0.0
        %1055 = vadd.xlane.f32.xlu0 %v1054
        %v1056 = vpop.xlane.xlu0 %1055
        %v1057 = vmul.f32 %v1053, %v605
        %v1058 = vmul.f32 %v1056, %v605
        %v1059 = vsub.f32 %v1049, %v1057
        %v1060 = vsub.f32 %v1050, %v1058
        %v1061 = vmul.f32 %v1059, %v1059
        %v1062 = vmul.f32 %v1060, %v1060
        %v1063 = vsel %vm528, %v1061, 0.0
        %1064 = vadd.xlane.f32.xlu0 %v1063
        %v1065 = vpop.xlane.xlu0 %1064
        %v1066 = vsel %vm528, %v1062, 0.0
        %1067 = vadd.xlane.f32.xlu0 %v1066
        %v1068 = vpop.xlane.xlu0 %1067
        %v1069 = vmul.f32 %v1065, %v605
        %v1070 = vmul.f32 %v1068, %v605
        %v1071 = vadd.f32 %v1069, 1e-05
        %v1072 = vadd.f32 %v1070, 1e-05
        %v1073 = vrsqrt.pop %v1071
        %v1074 = vrsqrt.pop %v1072
        %v1075 = vmul.f32 %v1059, %v1073
        %v1076 = vmul.f32 %v1060, %v1074
        %v1077 = vlaneseq
        %v1078 = vshrl.u32 %v1077, 7
        %v1079 = vsub.s32 2, %v1078
        %v1080 = vrot.slane %v573, %v1079
        %v1081 = vmul.f32 %v1075, %v1080
        %v1082 = vmul.f32 %v1076, %v1080
        %v1083 = vlaneseq
        %v1084 = vshrl.u32 %v1083, 7
        %v1085 = vsub.s32 3, %v1084
        %v1086 = vrot.slane %v573, %v1085
        %v1087 = vadd.f32 %v1081, %v1086
        %v1088 = vadd.f32 %v1082, %v1086
        %v1089 = vpack.c.bf16 %v1088, %v1087
        %v1090 = vlaneseq
        %v1091 = vshrl.u32 %v1090, 7
        %v1092 = vsub.s32 1, %v1091
        %v1093 = vrot.slane %v574, %v1092
        %v1098 = vunpack.c.l.b16 %v579
        %v1099 = vunpack.c.l.b16 %v580
        %v1100 = vunpack.c.l.b16 %v581
        %v1101 = vunpack.c.l.b16 %v582
        %v1102 = vpack.c.b16 %v1099, %v1098
        %v1103 = vpack.c.b16 %v1101, %v1100
        %v1107 = vsel %vm528, %v1089, 0
        %1109 = vmatprep.subr.bf16.mxu0 0
        %1110 = vmatpush1.bf16.msra.mxu0 %v1102
        %1111 = vmatprep.subr.bf16.mxu0 0
        %1112 = vmatpush1.bf16.msra.mxu0 %v1103
        %1113 = vmatprep.subr.bf16.mxu0 0
        %1114 = vmatpush1.bf16.msra.mxu0 0
        %1115 = vmatprep.subr.bf16.mxu0 0
        %1116 = vmatpush1.bf16.msra.mxu0 0
        %1117 = vmatprep.subr.bf16.mxu0 0
        %1118 = vmatpush1.bf16.msra.mxu0 0
        %1119 = vmatprep.subr.bf16.mxu0 0
        %1120 = vmatpush1.bf16.msra.mxu0 0
        %1121 = vmatprep.subr.bf16.mxu0 0
        %1122 = vmatpush1.bf16.msra.mxu0 0
        %1123 = vmatprep.subr.bf16.mxu0 0
        %1124 = vmatpush1.bf16.msra.mxu0 0
        %1125 = vmatprep.subr.bf16.mxu0 0
        %1126 = vmatpush1.bf16.msra.mxu0 0
        %1127 = vmatprep.subr.bf16.mxu0 0
        %1128 = vmatpush1.bf16.msra.mxu0 0
        %1129 = vmatprep.subr.bf16.mxu0 0
        %1130 = vmatpush1.bf16.msra.mxu0 0
        %1131 = vmatprep.subr.bf16.mxu0 0
        %1132 = vmatpush1.bf16.msra.mxu0 0
        %1133 = vmatprep.subr.bf16.mxu0 0
        %1134 = vmatpush1.bf16.msra.mxu0 0
        %1135 = vmatprep.subr.bf16.mxu0 0
        %1136 = vmatpush1.bf16.msra.mxu0 0
        %1137 = vmatprep.subr.bf16.mxu0 0
        %1138 = vmatpush1.bf16.msra.mxu0 0
        %1139 = vmatprep.subr.bf16.mxu0 0
        %1140 = vmatpush1.bf16.msra.mxu0 0
        %1141 = vmatprep.mubr.bf16.mxu0 0
        %1142 = vmatmul.mubr.bf16.gmra.mrb[0].mxu0 %v1107
        %v1143 = vpop.f32.mrb[0].mxu0
        %v1144 = vadd.f32 %v1093, %v1143
        %v1145 = vpop.f32.mrb[0].mxu0
        %v1146 = vpop.f32.mrb[0].mxu0
        %v1147 = vadd.f32 %v1093, %v1146
        %v1148 = vpop.f32.mrb[0].mxu0
        %1149 = vdwg.mxu0
        %v1150 = vmul.f32 %v1144, %v1144
        %v1151 = vmul.f32 %v1147, %v1147
        %v1152 = vmul.f32 %v1144, %v1150
        %v1153 = vmul.f32 %v1147, %v1151
        %v1154 = vmul.f32 %v1152, 0.044715
        %v1155 = vmul.f32 %v1153, 0.044715
        %v1156 = vadd.f32 %v1144, %v1154
        %v1157 = vadd.f32 %v1147, %v1155
        %v1158 = vmul.f32 %v1156, 0.7978846
        %v1159 = vmul.f32 %v1157, 0.7978846
        %v1160 = vtanh.pop %v1158
        %v1161 = vtanh.pop %v1159
        %v1162 = vadd.f32 %v1160, 1.0
        %v1163 = vadd.f32 %v1161, 1.0
        %v1164 = vmul.f32 %v1162, 0.5
        %v1165 = vmul.f32 %v1163, 0.5
        %v1166 = vmul.f32 %v1144, %v1164
        %v1167 = vmul.f32 %v1147, %v1165
        %v1168 = vpack.c.bf16 %v1167, %v1166
        %v1185 = vunpack.c.l.b16 %v583
        %v1186 = vunpack.c.l.b16 %v584
        %v1187 = vunpack.c.l.b16 %v585
        %v1188 = vunpack.c.l.b16 %v586
        %v1189 = vunpack.c.l.b16 %v587
        %v1190 = vunpack.c.l.b16 %v588
        %v1191 = vunpack.c.l.b16 %v589
        %v1192 = vunpack.c.l.b16 %v590
        %v1193 = vunpack.c.l.b16 %v591
        %v1194 = vunpack.c.l.b16 %v592
        %v1195 = vunpack.c.l.b16 %v593
        %v1196 = vunpack.c.l.b16 %v594
        %v1197 = vunpack.c.l.b16 %v595
        %v1198 = vunpack.c.l.b16 %v596
        %v1199 = vunpack.c.l.b16 %v597
        %v1200 = vunpack.c.l.b16 %v598
        %v1201 = vpack.c.b16 %v1186, %v1185
        %v1202 = vpack.c.b16 %v1188, %v1187
        %v1203 = vpack.c.b16 %v1190, %v1189
        %v1204 = vpack.c.b16 %v1192, %v1191
        %v1205 = vpack.c.b16 %v1194, %v1193
        %v1206 = vpack.c.b16 %v1196, %v1195
        %v1207 = vpack.c.b16 %v1198, %v1197
        %v1208 = vpack.c.b16 %v1200, %v1199
        %1217 = vmatprep.subr.bf16.mxu0 0
        %1218 = vmatpush1.bf16.msra.mxu0 %v1201
        %1219 = vmatprep.subr.bf16.mxu0 0
        %1220 = vmatpush1.bf16.msra.mxu0 %v1202
        %1221 = vmatprep.subr.bf16.mxu0 0
        %1222 = vmatpush1.bf16.msra.mxu0 %v1203
        %1223 = vmatprep.subr.bf16.mxu0 0
        %1224 = vmatpush1.bf16.msra.mxu0 %v1204
        %1225 = vmatprep.subr.bf16.mxu0 0
        %1226 = vmatpush1.bf16.msra.mxu0 %v1205
        %1227 = vmatprep.subr.bf16.mxu0 0
        %1228 = vmatpush1.bf16.msra.mxu0 %v1206
        %1229 = vmatprep.subr.bf16.mxu0 0
        %1230 = vmatpush1.bf16.msra.mxu0 %v1207
        %1231 = vmatprep.subr.bf16.mxu0 0
        %1232 = vmatpush1.bf16.msra.mxu0 %v1208
        %1233 = vmatprep.subr.bf16.mxu0 0
        %1234 = vmatpush1.bf16.msra.mxu0 0
        %1235 = vmatprep.subr.bf16.mxu0 0
        %1236 = vmatpush1.bf16.msra.mxu0 0
        %1237 = vmatprep.subr.bf16.mxu0 0
        %1238 = vmatpush1.bf16.msra.mxu0 0
        %1239 = vmatprep.subr.bf16.mxu0 0
        %1240 = vmatpush1.bf16.msra.mxu0 0
        %1241 = vmatprep.subr.bf16.mxu0 0
        %1242 = vmatpush1.bf16.msra.mxu0 0
        %1243 = vmatprep.subr.bf16.mxu0 0
        %1244 = vmatpush1.bf16.msra.mxu0 0
        %1245 = vmatprep.subr.bf16.mxu0 0
        %1246 = vmatpush1.bf16.msra.mxu0 0
        %1247 = vmatprep.subr.bf16.mxu0 0
        %1248 = vmatpush1.bf16.msra.mxu0 0
        %1249 = vmatprep.mubr.bf16.mxu0 0
        %1250 = vmatmul.mubr.bf16.gmra.mrb[0].mxu0 %v1168
        %v1251 = vpop.f32.mrb[0].mxu0
        %v1252 = vadd.f32 0.0, %v1251
        %v1253 = vpop.f32.mrb[0].mxu0
        %v1254 = vpop.f32.mrb[0].mxu0
        %v1255 = vadd.f32 0.0, %v1254
        %v1256 = vpop.f32.mrb[0].mxu0
        %1257 = vdwg.mxu0
        %v1258 = vadd.f32 %v1049, %v1252
        %v1259 = vadd.f32 %v1050, %v1255
        %v1260 = vlaneseq
        %v1261 = vshrl.u32 %v1260, 7
        %v1262 = vsub.s32 5, %v1261
        %v1263 = vrot.slane %v573, %v1262
        %v1264 = vadd.f32 %v1258, %v1263
        %v1265 = vadd.f32 %v1259, %v1263
        %v1266 = vpack.c.bf16 %v1265, %v1264
        %v1268 = vsel %vm803, %v488, 0
        %1270 = vmatprep.subr.bf16.mxu0 0
        %1271 = vmatpush1.bf16.msra.mxu0 %v1266
        %1272 = vmatprep.subr.bf16.mxu0 0
        %1273 = vmatpush1.bf16.msra.mxu0 0
        %1274 = vmatprep.subr.bf16.mxu0 0
        %1275 = vmatpush1.bf16.msra.mxu0 0
        %1276 = vmatprep.subr.bf16.mxu0 0
        %1277 = vmatpush1.bf16.msra.mxu0 0
        %1278 = vmatprep.subr.bf16.mxu0 0
        %1279 = vmatpush1.bf16.msra.mxu0 0
        %1280 = vmatprep.subr.bf16.mxu0 0
        %1281 = vmatpush1.bf16.msra.mxu0 0
        %1282 = vmatprep.subr.bf16.mxu0 0
        %1283 = vmatpush1.bf16.msra.mxu0 0
        %1284 = vmatprep.subr.bf16.mxu0 0
        %1285 = vmatpush1.bf16.msra.mxu0 0
        %1286 = vmatprep.subr.bf16.mxu0 0
        %1287 = vmatpush1.bf16.msra.mxu0 0
        %1288 = vmatprep.subr.bf16.mxu0 0
        %1289 = vmatpush1.bf16.msra.mxu0 0
        %1290 = vmatprep.subr.bf16.mxu0 0
        %1291 = vmatpush1.bf16.msra.mxu0 0
        %1292 = vmatprep.subr.bf16.mxu0 0
        %1293 = vmatpush1.bf16.msra.mxu0 0
        %1294 = vmatprep.subr.bf16.mxu0 0
        %1295 = vmatpush1.bf16.msra.mxu0 0
        %1296 = vmatprep.subr.bf16.mxu0 0
        %1297 = vmatpush1.bf16.msra.mxu0 0
        %1298 = vmatprep.subr.bf16.mxu0 0
        %1299 = vmatpush1.bf16.msra.mxu0 0
        %1300 = vmatprep.subr.bf16.mxu0 0
        %1301 = vmatpush1.bf16.msra.mxu0 0
        %1302 = vmatprep.mubr.bf16.mxu0 0
        %1303 = vmatmul.mubr.bf16.gmra.mrb[0].mxu0 %v1268
        %v1304 = vpop.f32.mrb[0].mxu0
        %v1305 = vadd.f32 0.0, %v1304
        %v1306 = vpop.f32.mrb[0].mxu0
        %v1307 = vpop.f32.mrb[0].mxu0
        %v1308 = vpop.f32.mrb[0].mxu0
        %1309 = vdwg.mxu0
        %v1311 = vsel %vm803, %v493, 0
        %1313 = vmatprep.subr.bf16.mxu0 0
        %1314 = vmatpush1.bf16.msra.mxu0 %v1266
        %1315 = vmatprep.subr.bf16.mxu0 0
        %1316 = vmatpush1.bf16.msra.mxu0 0
        %1317 = vmatprep.subr.bf16.mxu0 0
        %1318 = vmatpush1.bf16.msra.mxu0 0
        %1319 = vmatprep.subr.bf16.mxu0 0
        %1320 = vmatpush1.bf16.msra.mxu0 0
        %1321 = vmatprep.subr.bf16.mxu0 0
        %1322 = vmatpush1.bf16.msra.mxu0 0
        %1323 = vmatprep.subr.bf16.mxu0 0
        %1324 = vmatpush1.bf16.msra.mxu0 0
        %1325 = vmatprep.subr.bf16.mxu0 0
        %1326 = vmatpush1.bf16.msra.mxu0 0
        %1327 = vmatprep.subr.bf16.mxu0 0
        %1328 = vmatpush1.bf16.msra.mxu0 0
        %1329 = vmatprep.subr.bf16.mxu0 0
        %1330 = vmatpush1.bf16.msra.mxu0 0
        %1331 = vmatprep.subr.bf16.mxu0 0
        %1332 = vmatpush1.bf16.msra.mxu0 0
        %1333 = vmatprep.subr.bf16.mxu0 0
        %1334 = vmatpush1.bf16.msra.mxu0 0
        %1335 = vmatprep.subr.bf16.mxu0 0
        %1336 = vmatpush1.bf16.msra.mxu0 0
        %1337 = vmatprep.subr.bf16.mxu0 0
        %1338 = vmatpush1.bf16.msra.mxu0 0
        %1339 = vmatprep.subr.bf16.mxu0 0
        %1340 = vmatpush1.bf16.msra.mxu0 0
        %1341 = vmatprep.subr.bf16.mxu0 0
        %1342 = vmatpush1.bf16.msra.mxu0 0
        %1343 = vmatprep.subr.bf16.mxu0 0
        %1344 = vmatpush1.bf16.msra.mxu0 0
        %1345 = vmatprep.mubr.bf16.mxu0 0
        %1346 = vmatmul.mubr.bf16.gmra.mrb[0].mxu0 %v1311
        %v1347 = vpop.f32.mrb[0].mxu0
        %v1348 = vadd.f32 0.0, %v1347
        %v1349 = vpop.f32.mrb[0].mxu0
        %v1350 = vpop.f32.mrb[0].mxu0
        %v1351 = vpop.f32.mrb[0].mxu0
        %1352 = vdwg.mxu0
        %v1353 = vpack.c.bf16 %v1305, %v1305
        %v1354 = vpack.c.bf16 %v1348, %v1348
        %v1359 = vunpack.c.l.b16 %v502
        %v1360 = vunpack.c.l.b16 %v503
        %v1361 = vunpack.c.l.b16 %v504
        %v1362 = vunpack.c.l.b16 %v505
        %v1363 = vpack.c.b16 %v1360, %v1359
        %v1364 = vpack.c.b16 %v1362, %v1361
        %v1368 = vsel %vm528, %v1354, 0
        %1370 = vmatprep.subr.bf16.mxu0 0
        %1371 = vmatpush1.bf16.msra.mxu0 %v1363
        %1372 = vmatprep.subr.bf16.mxu0 0
        %1373 = vmatpush1.bf16.msra.mxu0 %v1364
        %1374 = vmatprep.subr.bf16.mxu0 0
        %1375 = vmatpush1.bf16.msra.mxu0 0
        %1376 = vmatprep.subr.bf16.mxu0 0
        %1377 = vmatpush1.bf16.msra.mxu0 0
        %1378 = vmatprep.subr.bf16.mxu0 0
        %1379 = vmatpush1.bf16.msra.mxu0 0
        %1380 = vmatprep.subr.bf16.mxu0 0
        %1381 = vmatpush1.bf16.msra.mxu0 0
        %1382 = vmatprep.subr.bf16.mxu0 0
        %1383 = vmatpush1.bf16.msra.mxu0 0
        %1384 = vmatprep.subr.bf16.mxu0 0
        %1385 = vmatpush1.bf16.msra.mxu0 0
        %1386 = vmatprep.subr.bf16.mxu0 0
        %1387 = vmatpush1.bf16.msra.mxu0 0
        %1388 = vmatprep.subr.bf16.mxu0 0
        %1389 = vmatpush1.bf16.msra.mxu0 0
        %1390 = vmatprep.subr.bf16.mxu0 0
        %1391 = vmatpush1.bf16.msra.mxu0 0
        %1392 = vmatprep.subr.bf16.mxu0 0
        %1393 = vmatpush1.bf16.msra.mxu0 0
        %1394 = vmatprep.subr.bf16.mxu0 0
        %1395 = vmatpush1.bf16.msra.mxu0 0
        %1396 = vmatprep.subr.bf16.mxu0 0
        %1397 = vmatpush1.bf16.msra.mxu0 0
        %1398 = vmatprep.subr.bf16.mxu0 0
        %1399 = vmatpush1.bf16.msra.mxu0 0
        %1400 = vmatprep.subr.bf16.mxu0 0
        %1401 = vmatpush1.bf16.msra.mxu0 0
        %1402 = vmatprep.mubr.bf16.mxu0 0
        %1403 = vmatmul.mubr.bf16.gmra.mrb[0].mxu0 %v1368
        %v1404 = vpop.f32.mrb[0].mxu0
        %v1405 = vadd.f32 0.0, %v1404
        %v1406 = vpop.f32.mrb[0].mxu0
        %v1407 = vpop.f32.mrb[0].mxu0
        %v1408 = vpop.f32.mrb[0].mxu0
        %1409 = vdwg.mxu0
        %v1414 = vunpack.c.l.b16 %v498
        %v1415 = vunpack.c.l.b16 %v499
        %v1416 = vunpack.c.l.b16 %v500
        %v1417 = vunpack.c.l.b16 %v501
        %v1418 = vpack.c.b16 %v1415, %v1414
        %v1419 = vpack.c.b16 %v1417, %v1416
        %v1423 = vsel %vm528, %v1353, 0
        %1425 = vmatprep.subr.bf16.mxu0 0
        %1426 = vmatpush1.bf16.msra.mxu0 %v1418
        %1427 = vmatprep.subr.bf16.mxu0 0
        %1428 = vmatpush1.bf16.msra.mxu0 %v1419
        %1429 = vmatprep.subr.bf16.mxu0 0
        %1430 = vmatpush1.bf16.msra.mxu0 0
        %1431 = vmatprep.subr.bf16.mxu0 0
        %1432 = vmatpush1.bf16.msra.mxu0 0
        %1433 = vmatprep.subr.bf16.mxu0 0
        %1434 = vmatpush1.bf16.msra.mxu0 0
        %1435 = vmatprep.subr.bf16.mxu0 0
        %1436 = vmatpush1.bf16.msra.mxu0 0
        %1437 = vmatprep.subr.bf16.mxu0 0
        %1438 = vmatpush1.bf16.msra.mxu0 0
        %1439 = vmatprep.subr.bf16.mxu0 0
        %1440 = vmatpush1.bf16.msra.mxu0 0
        %1441 = vmatprep.subr.bf16.mxu0 0
        %1442 = vmatpush1.bf16.msra.mxu0 0
        %1443 = vmatprep.subr.bf16.mxu0 0
        %1444 = vmatpush1.bf16.msra.mxu0 0
        %1445 = vmatprep.subr.bf16.mxu0 0
        %1446 = vmatpush1.bf16.msra.mxu0 0
        %1447 = vmatprep.subr.bf16.mxu0 0
        %1448 = vmatpush1.bf16.msra.mxu0 0
        %1449 = vmatprep.subr.bf16.mxu0 0
        %1450 = vmatpush1.bf16.msra.mxu0 0
        %1451 = vmatprep.subr.bf16.mxu0 0
        %1452 = vmatpush1.bf16.msra.mxu0 0
        %1453 = vmatprep.subr.bf16.mxu0 0
        %1454 = vmatpush1.bf16.msra.mxu0 0
        %1455 = vmatprep.subr.bf16.mxu0 0
        %1456 = vmatpush1.bf16.msra.mxu0 0
        %1457 = vmatprep.mubr.bf16.mxu0 0
        %1458 = vmatmul.mubr.bf16.gmra.mrb[0].mxu0 %v1423
        %v1459 = vpop.f32.mrb[0].mxu0
        %v1460 = vadd.f32 %v1405, %v1459
        %v1461 = vpop.f32.mrb[0].mxu0
        %v1462 = vpop.f32.mrb[0].mxu0
        %v1463 = vpop.f32.mrb[0].mxu0
        %1464 = vdwg.mxu0
        %1465 = vrot.lane.b32.xlu0 %v514, 96
        %v1466 = vpop.permute.xlu0 %1465
        %v1468 = vadd.f32 %v1460, %v1466
        %v1469 = vsel %vm528, %v1468, 0.0
        %1470 = vadd.xlane.f32.xlu0 %v1469
        %v1471 = vpop.xlane.xlu0 %1470
        %v1472 = vrot.slane %v1471, 4
        %v1473 = vadd.f32 %v1471, %v1472
        %v1474 = vrot.slane %v1473, 2
        %v1475 = vadd.f32 %v1473, %v1474
        %v1476 = vrot.slane %v1475, 1
        %v1477 = vadd.f32 %v1475, %v1476
        %s1478 = vtos %v1477
        %v1479 = vstv %s1478
        %v1480 = vrcp.pop 256.0
        %v1481 = vmul.f32 %v1479, %v1480
        %v1482 = vsub.f32 %v1468, %v1481
        %v1483 = vmul.f32 %v1482, %v1482
        %v1484 = vsel %vm528, %v1483, 0.0
        %1485 = vadd.xlane.f32.xlu0 %v1484
        %v1486 = vpop.xlane.xlu0 %1485
        %v1487 = vrot.slane %v1486, 4
        %v1488 = vadd.f32 %v1486, %v1487
        %v1489 = vrot.slane %v1488, 2
        %v1490 = vadd.f32 %v1488, %v1489
        %v1491 = vrot.slane %v1490, 1
        %v1492 = vadd.f32 %v1490, %v1491
        %s1493 = vtos %v1492
        %v1494 = vstv %s1493
        %v1495 = vmul.f32 %v1494, %v1480
        %v1496 = vadd.f32 %v1495, 1e-05
        %v1497 = vrsqrt.pop %v1496
        %v1498 = vmul.f32 %v506, %v1497
        %v1500 = vlaneseq
        %v1501 = vshrl.u32 %v1500, 7
        %v1502 = vsub.s32 0, %v1501
        %v1503 = vrot.slane %v1498, %v1502
        %1504 = vset.pattern.permute.xlu0 64
        %1505 = vperm.xlu0 %1504, %v1503
        %v1506 = vpop.permute.xlu0 %1505
        %v1508 = vmul.f32 %v1482, %v1506
        %v1509 = vadd.f32 %v1508, 0.0
        %s1510 = scalar_lea.vmem [#allocation7], 8
        %v1511 = vld [vmem:[%s1510] sm:$0x3f]
        %s1512 = scalar_lea.vmem %s6, 2
        %v1513 = vld [vmem:[%s1512] sm:$0x3]
        %s1514 = scalar_lea.vmem %s2, 16
        %v1515 = vld [vmem:[%s1514] sm:$0xf]
        %v1516 = vld [vmem:[%s1514 + $0x4] sm:$0xf]
        %v1517 = vld [vmem:[%s1514 + $0x8] sm:$0xf]
        %v1518 = vld [vmem:[%s1514 + $0xc] sm:$0xf]
        %s1519 = scalar_lea.vmem [#allocation2], 16
        %v1520 = vld [vmem:[%s1519] sm:$0xf]
        %v1521 = vld [vmem:[%s1519 + $0x4] sm:$0xf]
        %v1522 = vld [vmem:[%s1519 + $0x8] sm:$0xf]
        %v1523 = vld [vmem:[%s1519 + $0xc] sm:$0xf]
        %s1524 = scalar_lea.vmem [#allocation5], 64
        %v1525 = vld [vmem:[%s1524] sm:$0xf]
        %v1526 = vld [vmem:[%s1524 + $0x4] sm:$0xf]
        %v1527 = vld [vmem:[%s1524 + $0x8] sm:$0xf]
        %v1528 = vld [vmem:[%s1524 + $0xc] sm:$0xf]
        %v1529 = vld [vmem:[%s1524 + $0x10] sm:$0xf]
        %v1530 = vld [vmem:[%s1524 + $0x14] sm:$0xf]
        %v1531 = vld [vmem:[%s1524 + $0x18] sm:$0xf]
        %v1532 = vld [vmem:[%s1524 + $0x1c] sm:$0xf]
        %v1533 = vld [vmem:[%s1524 + $0x20] sm:$0xf]
        %v1534 = vld [vmem:[%s1524 + $0x24] sm:$0xf]
        %v1535 = vld [vmem:[%s1524 + $0x28] sm:$0xf]
        %v1536 = vld [vmem:[%s1524 + $0x2c] sm:$0xf]
        %v1537 = vld [vmem:[%s1524 + $0x30] sm:$0xf]
        %v1538 = vld [vmem:[%s1524 + $0x34] sm:$0xf]
        %v1539 = vld [vmem:[%s1524 + $0x38] sm:$0xf]
        %v1540 = vld [vmem:[%s1524 + $0x3c] sm:$0xf]
        %v1541 = vsel %vm528, %v1264, 0.0
        %1542 = vadd.xlane.f32.xlu0 %v1541
        %v1543 = vpop.xlane.xlu0 %1542
        %v1544 = vsel %vm528, %v1265, 0.0
        %1545 = vadd.xlane.f32.xlu0 %v1544
        %v1546 = vpop.xlane.xlu0 %1545
        %v1547 = vmul.f32 %v1543, %v605
        %v1548 = vmul.f32 %v1546, %v605
        %v1549 = vsub.f32 %v1264, %v1547
        %v1550 = vsub.f32 %v1265, %v1548
        %v1551 = vmul.f32 %v1549, %v1549
        %v1552 = vmul.f32 %v1550, %v1550
        %v1553 = vsel %vm528, %v1551, 0.0
        %1554 = vadd.xlane.f32.xlu0 %v1553
        %v1555 = vpop.xlane.xlu0 %1554
        %v1556 = vsel %vm528, %v1552, 0.0
        %1557 = vadd.xlane.f32.xlu0 %v1556
        %v1558 = vpop.xlane.xlu0 %1557
        %v1559 = vmul.f32 %v1555, %v605
        %v1560 = vmul.f32 %v1558, %v605
        %v1561 = vadd.f32 %v1559, 1e-05
        %v1562 = vadd.f32 %v1560, 1e-05
        %v1563 = vrsqrt.pop %v1561
        %v1564 = vrsqrt.pop %v1562
        %v1565 = vmul.f32 %v1549, %v1563
        %v1566 = vmul.f32 %v1550, %v1564
        %v1567 = vlaneseq
        %v1568 = vshrl.u32 %v1567, 7
        %v1569 = vsub.s32 0, %v1568
        %v1570 = vrot.slane %v1511, %v1569
        %v1571 = vmul.f32 %v1565, %v1570
        %v1572 = vmul.f32 %v1566, %v1570
        %v1573 = vlaneseq
        %v1574 = vshrl.u32 %v1573, 7
        %v1575 = vsub.s32 1, %v1574
        %v1576 = vrot.slane %v1511, %v1575
        %v1577 = vadd.f32 %v1571, %v1576
        %v1578 = vadd.f32 %v1572, %v1576
        %v1579 = vpack.c.bf16 %v1578, %v1577
        %v1580 = vlaneseq
        %v1581 = vshrl.u32 %v1580, 7
        %v1582 = vsub.s32 0, %v1581
        %v1583 = vrot.slane %v1513, %v1582
        %v1588 = vunpack.c.l.b16 %v1515
        %v1589 = vunpack.c.l.b16 %v1516
        %v1590 = vunpack.c.l.b16 %v1517
        %v1591 = vunpack.c.l.b16 %v1518
        %v1592 = vpack.c.b16 %v1589, %v1588
        %v1593 = vpack.c.b16 %v1591, %v1590
        %v1597 = vsel %vm528, %v1579, 0
        %1599 = vmatprep.subr.bf16.mxu0 0
        %1600 = vmatpush1.bf16.msra.mxu0 %v1592
        %1601 = vmatprep.subr.bf16.mxu0 0
        %1602 = vmatpush1.bf16.msra.mxu0 %v1593
        %1603 = vmatprep.subr.bf16.mxu0 0
        %1604 = vmatpush1.bf16.msra.mxu0 0
        %1605 = vmatprep.subr.bf16.mxu0 0
        %1606 = vmatpush1.bf16.msra.mxu0 0
        %1607 = vmatprep.subr.bf16.mxu0 0
        %1608 = vmatpush1.bf16.msra.mxu0 0
        %1609 = vmatprep.subr.bf16.mxu0 0
        %1610 = vmatpush1.bf16.msra.mxu0 0
        %1611 = vmatprep.subr.bf16.mxu0 0
        %1612 = vmatpush1.bf16.msra.mxu0 0
        %1613 = vmatprep.subr.bf16.mxu0 0
        %1614 = vmatpush1.bf16.msra.mxu0 0
        %1615 = vmatprep.subr.bf16.mxu0 0
        %1616 = vmatpush1.bf16.msra.mxu0 0
        %1617 = vmatprep.subr.bf16.mxu0 0
        %1618 = vmatpush1.bf16.msra.mxu0 0
        %1619 = vmatprep.subr.bf16.mxu0 0
        %1620 = vmatpush1.bf16.msra.mxu0 0
        %1621 = vmatprep.subr.bf16.mxu0 0
        %1622 = vmatpush1.bf16.msra.mxu0 0
        %1623 = vmatprep.subr.bf16.mxu0 0
        %1624 = vmatpush1.bf16.msra.mxu0 0
        %1625 = vmatprep.subr.bf16.mxu0 0
        %1626 = vmatpush1.bf16.msra.mxu0 0
        %1627 = vmatprep.subr.bf16.mxu0 0
        %1628 = vmatpush1.bf16.msra.mxu0 0
        %1629 = vmatprep.subr.bf16.mxu0 0
        %1630 = vmatpush1.bf16.msra.mxu0 0
        %1631 = vmatprep.mubr.bf16.mxu0 0
        %1632 = vmatmul.mubr.bf16.gmra.mrb[0].mxu0 %v1597
        %v1633 = vpop.f32.mrb[0].mxu0
        %v1634 = vadd.f32 %v1583, %v1633
        %v1635 = vpop.f32.mrb[0].mxu0
        %v1636 = vpop.f32.mrb[0].mxu0
        %v1637 = vadd.f32 %v1583, %v1636
        %v1638 = vpop.f32.mrb[0].mxu0
        %1639 = vdwg.mxu0
        %v1640 = vmul.f32 %v1634, %v468
        %v1641 = vmul.f32 %v1637, %v468
        %v1642 = vmul.f32 %v1634, %v473
        %v1643 = vmul.f32 %v1637, %v473
        %v1644 = vmul.f32 %v1634, %v478
        %v1645 = vmul.f32 %v1637, %v478
        %v1646 = vmul.f32 %v1634, %v483
        %v1647 = vmul.f32 %v1637, %v483
        %v1648 = vpack.c.bf16 %v1641, %v1640
        %v1649 = vpack.c.bf16 %v1643, %v1642
        %v1650 = vpack.c.bf16 %v1645, %v1644
        %v1651 = vpack.c.bf16 %v1647, %v1646
        %v1652 = vpack.c.bf16 %v1637, %v1634
        %1654 = vrot.lane.b32.xlu0 %v1652, 96
        %v1655 = vpop.permute.xlu0 %1654
        %v1657 = vsel %vm528, %v1648, 0
        %v1660 = vsel %vm528, %v1649, 0
        %v1663 = vsel %vm528, %v1650, 0
        %v1666 = vsel %vm528, %v1651, 0
        %v1669 = vsel %vm528, %v1655, 0
        %1671 = vmatprep.subr.bf16.mxu0 0
        %1672 = vmatpush1.bf16.xpose.msra.mxu0 %v1669
        %1673 = vmatprep.subr.bf16.mxu0 0
        %1674 = vmatpush1.bf16.xpose.msra.mxu0 0
        %1675 = vmatprep.subr.bf16.mxu0 0
        %1676 = vmatpush1.bf16.xpose.msra.mxu0 0
        %1677 = vmatprep.subr.bf16.mxu0 0
        %1678 = vmatpush1.bf16.xpose.msra.mxu0 0
        %1679 = vmatprep.subr.bf16.mxu0 0
        %1680 = vmatpush1.bf16.xpose.msra.mxu0 0
        %1681 = vmatprep.subr.bf16.mxu0 0
        %1682 = vmatpush1.bf16.xpose.msra.mxu0 0
        %1683 = vmatprep.subr.bf16.mxu0 0
        %1684 = vmatpush1.bf16.xpose.msra.mxu0 0
        %1685 = vmatprep.subr.bf16.mxu0 0
        %1686 = vmatpush1.bf16.xpose.msra.mxu0 0
        %1687 = vmatprep.subr.bf16.mxu0 0
        %1688 = vmatpush1.bf16.xpose.msra.mxu0 0
        %1689 = vmatprep.subr.bf16.mxu0 0
        %1690 = vmatpush1.bf16.xpose.msra.mxu0 0
        %1691 = vmatprep.subr.bf16.mxu0 0
        %1692 = vmatpush1.bf16.xpose.msra.mxu0 0
        %1693 = vmatprep.subr.bf16.mxu0 0
        %1694 = vmatpush1.bf16.xpose.msra.mxu0 0
        %1695 = vmatprep.subr.bf16.mxu0 0
        %1696 = vmatpush1.bf16.xpose.msra.mxu0 0
        %1697 = vmatprep.subr.bf16.mxu0 0
        %1698 = vmatpush1.bf16.xpose.msra.mxu0 0
        %1699 = vmatprep.subr.bf16.mxu0 0
        %1700 = vmatpush1.bf16.xpose.msra.mxu0 0
        %1701 = vmatprep.subr.bf16.mxu0 0
        %1702 = vmatpush1.bf16.xpose.msra.mxu0 0
        %1703 = vmatprep.mubr.bf16.mxu0 0
        %1704 = vmatmul.mubr.bf16.gmra.mrb[0].mxu0 %v1657
        %v1705 = vpop.f32.mrb[0].mxu0
        %v1706 = vadd.f32 0.0, %v1705
        %v1707 = vpop.f32.mrb[0].mxu0
        %v1708 = vpop.f32.mrb[0].mxu0
        %v1709 = vadd.f32 0.0, %v1708
        %v1710 = vpop.f32.mrb[0].mxu0
        %1711 = vmatprep.mubr.bf16.mxu0 0
        %1712 = vmatmul.mubr.bf16.gmra.mrb[0].mxu0 %v1660
        %v1713 = vpop.f32.mrb[0].mxu0
        %v1714 = vadd.f32 0.0, %v1713
        %v1715 = vpop.f32.mrb[0].mxu0
        %v1716 = vpop.f32.mrb[0].mxu0
        %v1717 = vadd.f32 0.0, %v1716
        %v1718 = vpop.f32.mrb[0].mxu0
        %1719 = vmatprep.mubr.bf16.mxu0 0
        %1720 = vmatmul.mubr.bf16.gmra.mrb[0].mxu0 %v1663
        %v1721 = vpop.f32.mrb[0].mxu0
        %v1722 = vadd.f32 0.0, %v1721
        %v1723 = vpop.f32.mrb[0].mxu0
        %v1724 = vpop.f32.mrb[0].mxu0
        %v1725 = vadd.f32 0.0, %v1724
        %v1726 = vpop.f32.mrb[0].mxu0
        %1727 = vmatprep.mubr.bf16.mxu0 0
        %1728 = vmatmul.mubr.bf16.gmra.mrb[0].mxu0 %v1666
        %v1729 = vpop.f32.mrb[0].mxu0
        %v1730 = vadd.f32 0.0, %v1729
        %v1731 = vpop.f32.mrb[0].mxu0
        %v1732 = vpop.f32.mrb[0].mxu0
        %v1733 = vadd.f32 0.0, %v1732
        %v1734 = vpop.f32.mrb[0].mxu0
        %1735 = vdwg.mxu0
        %v1736 = vsel %vm456, %v1706, -1e+30
        %v1737 = vsel %vm457, %v1709, -1e+30
        %v1738 = vsel %vm458, %v1714, -1e+30
        %v1739 = vsel %vm459, %v1717, -1e+30
        %v1740 = vsel %vm460, %v1722, -1e+30
        %v1741 = vsel %vm461, %v1725, -1e+30
        %v1742 = vsel %vm462, %v1730, -1e+30
        %v1743 = vsel %vm463, %v1733, -1e+30
        %v1744 = vsel %vm803, %v1736, -inf
        %1745 = vmax.xlane.f32.xlu0 %v1744
        %v1746 = vpop.xlane.xlu0 %1745
        %v1747 = vsel %vm803, %v1737, -inf
        %1748 = vmax.xlane.f32.xlu0 %v1747
        %v1749 = vpop.xlane.xlu0 %1748
        %v1750 = vsel %vm803, %v1738, -inf
        %1751 = vmax.xlane.f32.xlu0 %v1750
        %v1752 = vpop.xlane.xlu0 %1751
        %v1753 = vsel %vm803, %v1739, -inf
        %1754 = vmax.xlane.f32.xlu0 %v1753
        %v1755 = vpop.xlane.xlu0 %1754
        %v1756 = vsel %vm803, %v1740, -inf
        %1757 = vmax.xlane.f32.xlu0 %v1756
        %v1758 = vpop.xlane.xlu0 %1757
        %v1759 = vsel %vm803, %v1741, -inf
        %1760 = vmax.xlane.f32.xlu0 %v1759
        %v1761 = vpop.xlane.xlu0 %1760
        %v1762 = vsel %vm803, %v1742, -inf
        %1763 = vmax.xlane.f32.xlu0 %v1762
        %v1764 = vpop.xlane.xlu0 %1763
        %v1765 = vsel %vm803, %v1743, -inf
        %1766 = vmax.xlane.f32.xlu0 %v1765
        %v1767 = vpop.xlane.xlu0 %1766
        %v1768 = vsub.f32 %v1736, %v1746
        %v1769 = vsub.f32 %v1737, %v1749
        %v1770 = vsub.f32 %v1738, %v1752
        %v1771 = vsub.f32 %v1739, %v1755
        %v1772 = vsub.f32 %v1740, %v1758
        %v1773 = vsub.f32 %v1741, %v1761
        %v1774 = vsub.f32 %v1742, %v1764
        %v1775 = vsub.f32 %v1743, %v1767
        %v1776 = vmul.f32 %v1768, 1.442695
        %v1777 = vpow.pop %v1776
        %v1778 = vmul.f32 %v1769, 1.442695
        %v1779 = vpow.pop %v1778
        %v1780 = vmul.f32 %v1770, 1.442695
        %v1781 = vpow.pop %v1780
        %v1782 = vmul.f32 %v1771, 1.442695
        %v1783 = vpow.pop %v1782
        %v1784 = vmul.f32 %v1772, 1.442695
        %v1785 = vpow.pop %v1784
        %v1786 = vmul.f32 %v1773, 1.442695
        %v1787 = vpow.pop %v1786
        %v1788 = vmul.f32 %v1774, 1.442695
        %v1789 = vpow.pop %v1788
        %v1790 = vmul.f32 %v1775, 1.442695
        %v1791 = vpow.pop %v1790
        %v1792 = vsel %vm803, %v1777, 0.0
        %1793 = vadd.xlane.f32.xlu0 %v1792
        %v1794 = vpop.xlane.xlu0 %1793
        %v1795 = vsel %vm803, %v1779, 0.0
        %1796 = vadd.xlane.f32.xlu0 %v1795
        %v1797 = vpop.xlane.xlu0 %1796
        %v1798 = vsel %vm803, %v1781, 0.0
        %1799 = vadd.xlane.f32.xlu0 %v1798
        %v1800 = vpop.xlane.xlu0 %1799
        %v1801 = vsel %vm803, %v1783, 0.0
        %1802 = vadd.xlane.f32.xlu0 %v1801
        %v1803 = vpop.xlane.xlu0 %1802
        %v1804 = vsel %vm803, %v1785, 0.0
        %1805 = vadd.xlane.f32.xlu0 %v1804
        %v1806 = vpop.xlane.xlu0 %1805
        %v1807 = vsel %vm803, %v1787, 0.0
        %1808 = vadd.xlane.f32.xlu0 %v1807
        %v1809 = vpop.xlane.xlu0 %1808
        %v1810 = vsel %vm803, %v1789, 0.0
        %1811 = vadd.xlane.f32.xlu0 %v1810
        %v1812 = vpop.xlane.xlu0 %1811
        %v1813 = vsel %vm803, %v1791, 0.0
        %1814 = vadd.xlane.f32.xlu0 %v1813
        %v1815 = vpop.xlane.xlu0 %1814
        %v1816 = vrcp.pop %v1794
        %v1817 = vrcp.pop %v1797
        %v1818 = vrcp.pop %v1800
        %v1819 = vrcp.pop %v1803
        %v1820 = vrcp.pop %v1806
        %v1821 = vrcp.pop %v1809
        %v1822 = vrcp.pop %v1812
        %v1823 = vrcp.pop %v1815
        %v1824 = vmul.f32 %v1777, %v1816
        %v1825 = vmul.f32 %v1779, %v1817
        %v1826 = vmul.f32 %v1781, %v1818
        %v1827 = vmul.f32 %v1783, %v1819
        %v1828 = vmul.f32 %v1785, %v1820
        %v1829 = vmul.f32 %v1787, %v1821
        %v1830 = vmul.f32 %v1789, %v1822
        %v1831 = vmul.f32 %v1791, %v1823
        %v1832 = vpack.c.bf16 %v1825, %v1824
        %v1833 = vpack.c.bf16 %v1827, %v1826
        %v1834 = vpack.c.bf16 %v1829, %v1828
        %v1835 = vpack.c.bf16 %v1831, %v1830
        %1836 = vrot.lane.b32.xlu0 %v1652, 64
        %v1837 = vpop.permute.xlu0 %1836
        %v1840 = vsel %vm803, %v1832, 0
        %v1843 = vsel %vm803, %v1833, 0
        %v1846 = vsel %vm803, %v1834, 0
        %v1849 = vsel %vm803, %v1835, 0
        %1851 = vmatprep.subr.bf16.mxu0 0
        %1852 = vmatpush1.bf16.msra.mxu0 %v1837
        %1853 = vmatprep.subr.bf16.mxu0 0
        %1854 = vmatpush1.bf16.msra.mxu0 0
        %1855 = vmatprep.subr.bf16.mxu0 0
        %1856 = vmatpush1.bf16.msra.mxu0 0
        %1857 = vmatprep.subr.bf16.mxu0 0
        %1858 = vmatpush1.bf16.msra.mxu0 0
        %1859 = vmatprep.subr.bf16.mxu0 0
        %1860 = vmatpush1.bf16.msra.mxu0 0
        %1861 = vmatprep.subr.bf16.mxu0 0
        %1862 = vmatpush1.bf16.msra.mxu0 0
        %1863 = vmatprep.subr.bf16.mxu0 0
        %1864 = vmatpush1.bf16.msra.mxu0 0
        %1865 = vmatprep.subr.bf16.mxu0 0
        %1866 = vmatpush1.bf16.msra.mxu0 0
        %1867 = vmatprep.subr.bf16.mxu0 0
        %1868 = vmatpush1.bf16.msra.mxu0 0
        %1869 = vmatprep.subr.bf16.mxu0 0
        %1870 = vmatpush1.bf16.msra.mxu0 0
        %1871 = vmatprep.subr.bf16.mxu0 0
        %1872 = vmatpush1.bf16.msra.mxu0 0
        %1873 = vmatprep.subr.bf16.mxu0 0
        %1874 = vmatpush1.bf16.msra.mxu0 0
        %1875 = vmatprep.subr.bf16.mxu0 0
        %1876 = vmatpush1.bf16.msra.mxu0 0
        %1877 = vmatprep.subr.bf16.mxu0 0
        %1878 = vmatpush1.bf16.msra.mxu0 0
        %1879 = vmatprep.subr.bf16.mxu0 0
        %1880 = vmatpush1.bf16.msra.mxu0 0
        %1881 = vmatprep.subr.bf16.mxu0 0
        %1882 = vmatpush1.bf16.msra.mxu0 0
        %1883 = vmatprep.mubr.bf16.mxu0 0
        %1884 = vmatmul.mubr.bf16.gmra.mrb[0].mxu0 %v1840
        %v1885 = vpop.f32.mrb[0].mxu0
        %v1886 = vadd.f32 0.0, %v1885
        %v1887 = vpop.f32.mrb[0].mxu0
        %v1888 = vpop.f32.mrb[0].mxu0
        %v1889 = vadd.f32 0.0, %v1888
        %v1890 = vpop.f32.mrb[0].mxu0
        %1891 = vmatprep.mubr.bf16.mxu0 0
        %1892 = vmatmul.mubr.bf16.gmra.mrb[0].mxu0 %v1843
        %v1893 = vpop.f32.mrb[0].mxu0
        %v1894 = vadd.f32 0.0, %v1893
        %v1895 = vpop.f32.mrb[0].mxu0
        %v1896 = vpop.f32.mrb[0].mxu0
        %v1897 = vadd.f32 0.0, %v1896
        %v1898 = vpop.f32.mrb[0].mxu0
        %1899 = vmatprep.mubr.bf16.mxu0 0
        %1900 = vmatmul.mubr.bf16.gmra.mrb[0].mxu0 %v1846
        %v1901 = vpop.f32.mrb[0].mxu0
        %v1902 = vadd.f32 0.0, %v1901
        %v1903 = vpop.f32.mrb[0].mxu0
        %v1904 = vpop.f32.mrb[0].mxu0
        %v1905 = vadd.f32 0.0, %v1904
        %v1906 = vpop.f32.mrb[0].mxu0
        %1907 = vmatprep.mubr.bf16.mxu0 0
        %1908 = vmatmul.mubr.bf16.gmra.mrb[0].mxu0 %v1849
        %v1909 = vpop.f32.mrb[0].mxu0
        %v1910 = vadd.f32 0.0, %v1909
        %v1911 = vpop.f32.mrb[0].mxu0
        %v1912 = vpop.f32.mrb[0].mxu0
        %v1913 = vadd.f32 0.0, %v1912
        %v1914 = vpop.f32.mrb[0].mxu0
        %1915 = vdwg.mxu0
        %v1916 = vmul.f32 %v1886, %v468
        %v1917 = vmul.f32 %v1889, %v468
        %v1918 = vadd.f32 %v1916, 0.0
        %v1919 = vadd.f32 %v1917, 0.0
        %v1920 = vmul.f32 %v1894, %v473
        %v1921 = vmul.f32 %v1897, %v473
        %v1922 = vadd.f32 %v1918, %v1920
        %v1923 = vadd.f32 %v1919, %v1921
        %v1924 = vmul.f32 %v1902, %v478
        %v1925 = vmul.f32 %v1905, %v478
        %v1926 = vadd.f32 %v1922, %v1924
        %v1927 = vadd.f32 %v1923, %v1925
        %v1928 = vmul.f32 %v1910, %v483
        %v1929 = vmul.f32 %v1913, %v483
        %v1930 = vadd.f32 %v1926, %v1928
        %v1931 = vadd.f32 %v1927, %v1929
        %v1932 = vpack.c.bf16 %v1931, %v1930
        %1933 = vrot.lane.b32.xlu0 %v1592, 32
        %v1934 = vpop.permute.xlu0 %1933
        %1935 = vrot.lane.b32.xlu0 %v1593, 32
        %v1936 = vpop.permute.xlu0 %1935
        %v1940 = vsel %vm528, %v1932, 0
        %1942 = vmatprep.subr.bf16.mxu0 0
        %1943 = vmatpush1.bf16.msra.mxu0 %v1934
        %1944 = vmatprep.subr.bf16.mxu0 0
        %1945 = vmatpush1.bf16.msra.mxu0 %v1936
        %1946 = vmatprep.subr.bf16.mxu0 0
        %1947 = vmatpush1.bf16.msra.mxu0 0
        %1948 = vmatprep.subr.bf16.mxu0 0
        %1949 = vmatpush1.bf16.msra.mxu0 0
        %1950 = vmatprep.subr.bf16.mxu0 0
        %1951 = vmatpush1.bf16.msra.mxu0 0
        %1952 = vmatprep.subr.bf16.mxu0 0
        %1953 = vmatpush1.bf16.msra.mxu0 0
        %1954 = vmatprep.subr.bf16.mxu0 0
        %1955 = vmatpush1.bf16.msra.mxu0 0
        %1956 = vmatprep.subr.bf16.mxu0 0
        %1957 = vmatpush1.bf16.msra.mxu0 0
        %1958 = vmatprep.subr.bf16.mxu0 0
        %1959 = vmatpush1.bf16.msra.mxu0 0
        %1960 = vmatprep.subr.bf16.mxu0 0
        %1961 = vmatpush1.bf16.msra.mxu0 0
        %1962 = vmatprep.subr.bf16.mxu0 0
        %1963 = vmatpush1.bf16.msra.mxu0 0
        %1964 = vmatprep.subr.bf16.mxu0 0
        %1965 = vmatpush1.bf16.msra.mxu0 0
        %1966 = vmatprep.subr.bf16.mxu0 0
        %1967 = vmatpush1.bf16.msra.mxu0 0
        %1968 = vmatprep.subr.bf16.mxu0 0
        %1969 = vmatpush1.bf16.msra.mxu0 0
        %1970 = vmatprep.subr.bf16.mxu0 0
        %1971 = vmatpush1.bf16.msra.mxu0 0
        %1972 = vmatprep.subr.bf16.mxu0 0
        %1973 = vmatpush1.bf16.msra.mxu0 0
        %1974 = vmatprep.mubr.bf16.mxu0 0
        %1975 = vmatmul.mubr.bf16.gmra.mrb[0].mxu0 %v1940
        %v1976 = vpop.f32.mrb[0].mxu0
        %v1977 = vadd.f32 0.0, %v1976
        %v1978 = vpop.f32.mrb[0].mxu0
        %v1979 = vpop.f32.mrb[0].mxu0
        %v1980 = vadd.f32 0.0, %v1979
        %v1981 = vpop.f32.mrb[0].mxu0
        %1982 = vdwg.mxu0
        %v1983 = vadd.f32 %v1264, %v1977
        %v1984 = vadd.f32 %v1265, %v1980
        %v1985 = vlaneseq
        %v1986 = vshrl.u32 %v1985, 7
        %v1987 = vsub.s32 4, %v1986
        %v1988 = vrot.slane %v1511, %v1987
        %v1989 = vadd.f32 %v1983, %v1988
        %v1990 = vadd.f32 %v1984, %v1988
        %v1991 = vsel %vm528, %v1989, 0.0
        %1992 = vadd.xlane.f32.xlu0 %v1991
        %v1993 = vpop.xlane.xlu0 %1992
        %v1994 = vsel %vm528, %v1990, 0.0
        %1995 = vadd.xlane.f32.xlu0 %v1994
        %v1996 = vpop.xlane.xlu0 %1995
        %v1997 = vmul.f32 %v1993, %v605
        %v1998 = vmul.f32 %v1996, %v605
        %v1999 = vsub.f32 %v1989, %v1997
        %v2000 = vsub.f32 %v1990, %v1998
        %v2001 = vmul.f32 %v1999, %v1999
        %v2002 = vmul.f32 %v2000, %v2000
        %v2003 = vsel %vm528, %v2001, 0.0
        %2004 = vadd.xlane.f32.xlu0 %v2003
        %v2005 = vpop.xlane.xlu0 %2004
        %v2006 = vsel %vm528, %v2002, 0.0
        %2007 = vadd.xlane.f32.xlu0 %v2006
        %v2008 = vpop.xlane.xlu0 %2007
        %v2009 = vmul.f32 %v2005, %v605
        %v2010 = vmul.f32 %v2008, %v605
        %v2011 = vadd.f32 %v2009, 1e-05
        %v2012 = vadd.f32 %v2010, 1e-05
        %v2013 = vrsqrt.pop %v2011
        %v2014 = vrsqrt.pop %v2012
        %v2015 = vmul.f32 %v1999, %v2013
        %v2016 = vmul.f32 %v2000, %v2014
        %v2017 = vlaneseq
        %v2018 = vshrl.u32 %v2017, 7
        %v2019 = vsub.s32 2, %v2018
        %v2020 = vrot.slane %v1511, %v2019
        %v2021 = vmul.f32 %v2015, %v2020
        %v2022 = vmul.f32 %v2016, %v2020
        %v2023 = vlaneseq
        %v2024 = vshrl.u32 %v2023, 7
        %v2025 = vsub.s32 3, %v2024
        %v2026 = vrot.slane %v1511, %v2025
        %v2027 = vadd.f32 %v2021, %v2026
        %v2028 = vadd.f32 %v2022, %v2026
        %v2029 = vpack.c.bf16 %v2028, %v2027
        %v2030 = vlaneseq
        %v2031 = vshrl.u32 %v2030, 7
        %v2032 = vsub.s32 1, %v2031
        %v2033 = vrot.slane %v1513, %v2032
        %v2038 = vunpack.c.l.b16 %v1520
        %v2039 = vunpack.c.l.b16 %v1521
        %v2040 = vunpack.c.l.b16 %v1522
        %v2041 = vunpack.c.l.b16 %v1523
        %v2042 = vpack.c.b16 %v2039, %v2038
        %v2043 = vpack.c.b16 %v2041, %v2040
        %v2047 = vsel %vm528, %v2029, 0
        %2049 = vmatprep.subr.bf16.mxu0 0
        %2050 = vmatpush1.bf16.msra.mxu0 %v2042
        %2051 = vmatprep.subr.bf16.mxu0 0
        %2052 = vmatpush1.bf16.msra.mxu0 %v2043
        %2053 = vmatprep.subr.bf16.mxu0 0
        %2054 = vmatpush1.bf16.msra.mxu0 0
        %2055 = vmatprep.subr.bf16.mxu0 0
        %2056 = vmatpush1.bf16.msra.mxu0 0
        %2057 = vmatprep.subr.bf16.mxu0 0
        %2058 = vmatpush1.bf16.msra.mxu0 0
        %2059 = vmatprep.subr.bf16.mxu0 0
        %2060 = vmatpush1.bf16.msra.mxu0 0
        %2061 = vmatprep.subr.bf16.mxu0 0
        %2062 = vmatpush1.bf16.msra.mxu0 0
        %2063 = vmatprep.subr.bf16.mxu0 0
        %2064 = vmatpush1.bf16.msra.mxu0 0
        %2065 = vmatprep.subr.bf16.mxu0 0
        %2066 = vmatpush1.bf16.msra.mxu0 0
        %2067 = vmatprep.subr.bf16.mxu0 0
        %2068 = vmatpush1.bf16.msra.mxu0 0
        %2069 = vmatprep.subr.bf16.mxu0 0
        %2070 = vmatpush1.bf16.msra.mxu0 0
        %2071 = vmatprep.subr.bf16.mxu0 0
        %2072 = vmatpush1.bf16.msra.mxu0 0
        %2073 = vmatprep.subr.bf16.mxu0 0
        %2074 = vmatpush1.bf16.msra.mxu0 0
        %2075 = vmatprep.subr.bf16.mxu0 0
        %2076 = vmatpush1.bf16.msra.mxu0 0
        %2077 = vmatprep.subr.bf16.mxu0 0
        %2078 = vmatpush1.bf16.msra.mxu0 0
        %2079 = vmatprep.subr.bf16.mxu0 0
        %2080 = vmatpush1.bf16.msra.mxu0 0
        %2081 = vmatprep.mubr.bf16.mxu0 0
        %2082 = vmatmul.mubr.bf16.gmra.mrb[0].mxu0 %v2047
        %v2083 = vpop.f32.mrb[0].mxu0
        %v2084 = vadd.f32 %v2033, %v2083
        %v2085 = vpop.f32.mrb[0].mxu0
        %v2086 = vpop.f32.mrb[0].mxu0
        %v2087 = vadd.f32 %v2033, %v2086
        %v2088 = vpop.f32.mrb[0].mxu0
        %2089 = vdwg.mxu0
        %v2090 = vmul.f32 %v2084, %v2084
        %v2091 = vmul.f32 %v2087, %v2087
        %v2092 = vmul.f32 %v2084, %v2090
        %v2093 = vmul.f32 %v2087, %v2091
        %v2094 = vmul.f32 %v2092, 0.044715
        %v2095 = vmul.f32 %v2093, 0.044715
        %v2096 = vadd.f32 %v2084, %v2094
        %v2097 = vadd.f32 %v2087, %v2095
        %v2098 = vmul.f32 %v2096, 0.7978846
        %v2099 = vmul.f32 %v2097, 0.7978846
        %v2100 = vtanh.pop %v2098
        %v2101 = vtanh.pop %v2099
        %v2102 = vadd.f32 %v2100, 1.0
        %v2103 = vadd.f32 %v2101, 1.0
        %v2104 = vmul.f32 %v2102, 0.5
        %v2105 = vmul.f32 %v2103, 0.5
        %v2106 = vmul.f32 %v2084, %v2104
        %v2107 = vmul.f32 %v2087, %v2105
        %v2108 = vpack.c.bf16 %v2107, %v2106
        %v2125 = vunpack.c.l.b16 %v1525
        %v2126 = vunpack.c.l.b16 %v1526
        %v2127 = vunpack.c.l.b16 %v1527
        %v2128 = vunpack.c.l.b16 %v1528
        %v2129 = vunpack.c.l.b16 %v1529
        %v2130 = vunpack.c.l.b16 %v1530
        %v2131 = vunpack.c.l.b16 %v1531
        %v2132 = vunpack.c.l.b16 %v1532
        %v2133 = vunpack.c.l.b16 %v1533
        %v2134 = vunpack.c.l.b16 %v1534
        %v2135 = vunpack.c.l.b16 %v1535
        %v2136 = vunpack.c.l.b16 %v1536
        %v2137 = vunpack.c.l.b16 %v1537
        %v2138 = vunpack.c.l.b16 %v1538
        %v2139 = vunpack.c.l.b16 %v1539
        %v2140 = vunpack.c.l.b16 %v1540
        %v2141 = vpack.c.b16 %v2126, %v2125
        %v2142 = vpack.c.b16 %v2128, %v2127
        %v2143 = vpack.c.b16 %v2130, %v2129
        %v2144 = vpack.c.b16 %v2132, %v2131
        %v2145 = vpack.c.b16 %v2134, %v2133
        %v2146 = vpack.c.b16 %v2136, %v2135
        %v2147 = vpack.c.b16 %v2138, %v2137
        %v2148 = vpack.c.b16 %v2140, %v2139
        %2157 = vmatprep.subr.bf16.mxu0 0
        %2158 = vmatpush1.bf16.msra.mxu0 %v2141
        %2159 = vmatprep.subr.bf16.mxu0 0
        %2160 = vmatpush1.bf16.msra.mxu0 %v2142
        %2161 = vmatprep.subr.bf16.mxu0 0
        %2162 = vmatpush1.bf16.msra.mxu0 %v2143
        %2163 = vmatprep.subr.bf16.mxu0 0
        %2164 = vmatpush1.bf16.msra.mxu0 %v2144
        %2165 = vmatprep.subr.bf16.mxu0 0
        %2166 = vmatpush1.bf16.msra.mxu0 %v2145
        %2167 = vmatprep.subr.bf16.mxu0 0
        %2168 = vmatpush1.bf16.msra.mxu0 %v2146
        %2169 = vmatprep.subr.bf16.mxu0 0
        %2170 = vmatpush1.bf16.msra.mxu0 %v2147
        %2171 = vmatprep.subr.bf16.mxu0 0
        %2172 = vmatpush1.bf16.msra.mxu0 %v2148
        %2173 = vmatprep.subr.bf16.mxu0 0
        %2174 = vmatpush1.bf16.msra.mxu0 0
        %2175 = vmatprep.subr.bf16.mxu0 0
        %2176 = vmatpush1.bf16.msra.mxu0 0
        %2177 = vmatprep.subr.bf16.mxu0 0
        %2178 = vmatpush1.bf16.msra.mxu0 0
        %2179 = vmatprep.subr.bf16.mxu0 0
        %2180 = vmatpush1.bf16.msra.mxu0 0
        %2181 = vmatprep.subr.bf16.mxu0 0
        %2182 = vmatpush1.bf16.msra.mxu0 0
        %2183 = vmatprep.subr.bf16.mxu0 0
        %2184 = vmatpush1.bf16.msra.mxu0 0
        %2185 = vmatprep.subr.bf16.mxu0 0
        %2186 = vmatpush1.bf16.msra.mxu0 0
        %2187 = vmatprep.subr.bf16.mxu0 0
        %2188 = vmatpush1.bf16.msra.mxu0 0
        %2189 = vmatprep.mubr.bf16.mxu0 0
        %2190 = vmatmul.mubr.bf16.gmra.mrb[0].mxu0 %v2108
        %v2191 = vpop.f32.mrb[0].mxu0
        %v2192 = vadd.f32 0.0, %v2191
        %v2193 = vpop.f32.mrb[0].mxu0
        %v2194 = vpop.f32.mrb[0].mxu0
        %v2195 = vadd.f32 0.0, %v2194
        %v2196 = vpop.f32.mrb[0].mxu0
        %2197 = vdwg.mxu0
        %v2198 = vadd.f32 %v1989, %v2192
        %v2199 = vadd.f32 %v1990, %v2195
        %v2200 = vlaneseq
        %v2201 = vshrl.u32 %v2200, 7
        %v2202 = vsub.s32 5, %v2201
        %v2203 = vrot.slane %v1511, %v2202
        %v2204 = vadd.f32 %v2198, %v2203
        %v2205 = vadd.f32 %v2199, %v2203
        %v2206 = vpack.c.bf16 %v2205, %v2204
        %2207 = vmatprep.subr.bf16.mxu0 0
        %2208 = vmatpush1.bf16.msra.mxu0 %v2206
        %2209 = vmatprep.subr.bf16.mxu0 0
        %2210 = vmatpush1.bf16.msra.mxu0 0
        %2211 = vmatprep.subr.bf16.mxu0 0
        %2212 = vmatpush1.bf16.msra.mxu0 0
        %2213 = vmatprep.subr.bf16.mxu0 0
        %2214 = vmatpush1.bf16.msra.mxu0 0
        %2215 = vmatprep.subr.bf16.mxu0 0
        %2216 = vmatpush1.bf16.msra.mxu0 0
        %2217 = vmatprep.subr.bf16.mxu0 0
        %2218 = vmatpush1.bf16.msra.mxu0 0
        %2219 = vmatprep.subr.bf16.mxu0 0
        %2220 = vmatpush1.bf16.msra.mxu0 0
        %2221 = vmatprep.subr.bf16.mxu0 0
        %2222 = vmatpush1.bf16.msra.mxu0 0
        %2223 = vmatprep.subr.bf16.mxu0 0
        %2224 = vmatpush1.bf16.msra.mxu0 0
        %2225 = vmatprep.subr.bf16.mxu0 0
        %2226 = vmatpush1.bf16.msra.mxu0 0
        %2227 = vmatprep.subr.bf16.mxu0 0
        %2228 = vmatpush1.bf16.msra.mxu0 0
        %2229 = vmatprep.subr.bf16.mxu0 0
        %2230 = vmatpush1.bf16.msra.mxu0 0
        %2231 = vmatprep.subr.bf16.mxu0 0
        %2232 = vmatpush1.bf16.msra.mxu0 0
        %2233 = vmatprep.subr.bf16.mxu0 0
        %2234 = vmatpush1.bf16.msra.mxu0 0
        %2235 = vmatprep.subr.bf16.mxu0 0
        %2236 = vmatpush1.bf16.msra.mxu0 0
        %2237 = vmatprep.subr.bf16.mxu0 0
        %2238 = vmatpush1.bf16.msra.mxu0 0
        %2239 = vmatprep.mubr.bf16.mxu0 0
        %2240 = vmatmul.mubr.bf16.gmra.mrb[0].mxu0 %v1268
        %v2241 = vpop.f32.mrb[0].mxu0
        %v2242 = vadd.f32 0.0, %v2241
        %v2243 = vpop.f32.mrb[0].mxu0
        %v2244 = vpop.f32.mrb[0].mxu0
        %v2245 = vpop.f32.mrb[0].mxu0
        %2246 = vdwg.mxu0
        %2247 = vmatprep.subr.bf16.mxu0 0
        %2248 = vmatpush1.bf16.msra.mxu0 %v2206
        %2249 = vmatprep.subr.bf16.mxu0 0
        %2250 = vmatpush1.bf16.msra.mxu0 0
        %2251 = vmatprep.subr.bf16.mxu0 0
        %2252 = vmatpush1.bf16.msra.mxu0 0
        %2253 = vmatprep.subr.bf16.mxu0 0
        %2254 = vmatpush1.bf16.msra.mxu0 0
        %2255 = vmatprep.subr.bf16.mxu0 0
        %2256 = vmatpush1.bf16.msra.mxu0 0
        %2257 = vmatprep.subr.bf16.mxu0 0
        %2258 = vmatpush1.bf16.msra.mxu0 0
        %2259 = vmatprep.subr.bf16.mxu0 0
        %2260 = vmatpush1.bf16.msra.mxu0 0
        %2261 = vmatprep.subr.bf16.mxu0 0
        %2262 = vmatpush1.bf16.msra.mxu0 0
        %2263 = vmatprep.subr.bf16.mxu0 0
        %2264 = vmatpush1.bf16.msra.mxu0 0
        %2265 = vmatprep.subr.bf16.mxu0 0
        %2266 = vmatpush1.bf16.msra.mxu0 0
        %2267 = vmatprep.subr.bf16.mxu0 0
        %2268 = vmatpush1.bf16.msra.mxu0 0
        %2269 = vmatprep.subr.bf16.mxu0 0
        %2270 = vmatpush1.bf16.msra.mxu0 0
        %2271 = vmatprep.subr.bf16.mxu0 0
        %2272 = vmatpush1.bf16.msra.mxu0 0
        %2273 = vmatprep.subr.bf16.mxu0 0
        %2274 = vmatpush1.bf16.msra.mxu0 0
        %2275 = vmatprep.subr.bf16.mxu0 0
        %2276 = vmatpush1.bf16.msra.mxu0 0
        %2277 = vmatprep.subr.bf16.mxu0 0
        %2278 = vmatpush1.bf16.msra.mxu0 0
        %2279 = vmatprep.mubr.bf16.mxu0 0
        %2280 = vmatmul.mubr.bf16.gmra.mrb[0].mxu0 %v1311
        %v2281 = vpop.f32.mrb[0].mxu0
        %v2282 = vadd.f32 0.0, %v2281
        %v2283 = vpop.f32.mrb[0].mxu0
        %v2284 = vpop.f32.mrb[0].mxu0
        %v2285 = vpop.f32.mrb[0].mxu0
        %2286 = vdwg.mxu0
        %v2287 = vpack.c.bf16 %v2242, %v2242
        %v2288 = vpack.c.bf16 %v2282, %v2282
        %v2290 = vsel %vm528, %v2288, 0
        %2292 = vmatprep.subr.bf16.mxu0 0
        %2293 = vmatpush1.bf16.msra.mxu0 %v1363
        %2294 = vmatprep.subr.bf16.mxu0 0
        %2295 = vmatpush1.bf16.msra.mxu0 %v1364
        %2296 = vmatprep.subr.bf16.mxu0 0
        %2297 = vmatpush1.bf16.msra.mxu0 0
        %2298 = vmatprep.subr.bf16.mxu0 0
        %2299 = vmatpush1.bf16.msra.mxu0 0
        %2300 = vmatprep.subr.bf16.mxu0 0
        %2301 = vmatpush1.bf16.msra.mxu0 0
        %2302 = vmatprep.subr.bf16.mxu0 0
        %2303 = vmatpush1.bf16.msra.mxu0 0
        %2304 = vmatprep.subr.bf16.mxu0 0
        %2305 = vmatpush1.bf16.msra.mxu0 0
        %2306 = vmatprep.subr.bf16.mxu0 0
        %2307 = vmatpush1.bf16.msra.mxu0 0
        %2308 = vmatprep.subr.bf16.mxu0 0
        %2309 = vmatpush1.bf16.msra.mxu0 0
        %2310 = vmatprep.subr.bf16.mxu0 0
        %2311 = vmatpush1.bf16.msra.mxu0 0
        %2312 = vmatprep.subr.bf16.mxu0 0
        %2313 = vmatpush1.bf16.msra.mxu0 0
        %2314 = vmatprep.subr.bf16.mxu0 0
        %2315 = vmatpush1.bf16.msra.mxu0 0
        %2316 = vmatprep.subr.bf16.mxu0 0
        %2317 = vmatpush1.bf16.msra.mxu0 0
        %2318 = vmatprep.subr.bf16.mxu0 0
        %2319 = vmatpush1.bf16.msra.mxu0 0
        %2320 = vmatprep.subr.bf16.mxu0 0
        %2321 = vmatpush1.bf16.msra.mxu0 0
        %2322 = vmatprep.subr.bf16.mxu0 0
        %2323 = vmatpush1.bf16.msra.mxu0 0
        %2324 = vmatprep.mubr.bf16.mxu0 0
        %2325 = vmatmul.mubr.bf16.gmra.mrb[0].mxu0 %v2290
        %v2326 = vpop.f32.mrb[0].mxu0
        %v2327 = vadd.f32 0.0, %v2326
        %v2328 = vpop.f32.mrb[0].mxu0
        %v2329 = vpop.f32.mrb[0].mxu0
        %v2330 = vpop.f32.mrb[0].mxu0
        %2331 = vdwg.mxu0
        %v2333 = vsel %vm528, %v2287, 0
        %2335 = vmatprep.subr.bf16.mxu0 0
        %2336 = vmatpush1.bf16.msra.mxu0 %v1418
        %2337 = vmatprep.subr.bf16.mxu0 0
        %2338 = vmatpush1.bf16.msra.mxu0 %v1419
        %2339 = vmatprep.subr.bf16.mxu0 0
        %2340 = vmatpush1.bf16.msra.mxu0 0
        %2341 = vmatprep.subr.bf16.mxu0 0
        %2342 = vmatpush1.bf16.msra.mxu0 0
        %2343 = vmatprep.subr.bf16.mxu0 0
        %2344 = vmatpush1.bf16.msra.mxu0 0
        %2345 = vmatprep.subr.bf16.mxu0 0
        %2346 = vmatpush1.bf16.msra.mxu0 0
        %2347 = vmatprep.subr.bf16.mxu0 0
        %2348 = vmatpush1.bf16.msra.mxu0 0
        %2349 = vmatprep.subr.bf16.mxu0 0
        %2350 = vmatpush1.bf16.msra.mxu0 0
        %2351 = vmatprep.subr.bf16.mxu0 0
        %2352 = vmatpush1.bf16.msra.mxu0 0
        %2353 = vmatprep.subr.bf16.mxu0 0
        %2354 = vmatpush1.bf16.msra.mxu0 0
        %2355 = vmatprep.subr.bf16.mxu0 0
        %2356 = vmatpush1.bf16.msra.mxu0 0
        %2357 = vmatprep.subr.bf16.mxu0 0
        %2358 = vmatpush1.bf16.msra.mxu0 0
        %2359 = vmatprep.subr.bf16.mxu0 0
        %2360 = vmatpush1.bf16.msra.mxu0 0
        %2361 = vmatprep.subr.bf16.mxu0 0
        %2362 = vmatpush1.bf16.msra.mxu0 0
        %2363 = vmatprep.subr.bf16.mxu0 0
        %2364 = vmatpush1.bf16.msra.mxu0 0
        %2365 = vmatprep.subr.bf16.mxu0 0
        %2366 = vmatpush1.bf16.msra.mxu0 0
        %2367 = vmatprep.mubr.bf16.mxu0 0
        %2368 = vmatmul.mubr.bf16.gmra.mrb[0].mxu0 %v2333
        %v2369 = vpop.f32.mrb[0].mxu0
        %v2370 = vadd.f32 %v2327, %v2369
        %v2371 = vpop.f32.mrb[0].mxu0
        %v2372 = vpop.f32.mrb[0].mxu0
        %v2373 = vpop.f32.mrb[0].mxu0
        %2374 = vdwg.mxu0
        %v2375 = vadd.f32 %v2370, %v1466
        %v2376 = vsel %vm528, %v2375, 0.0
        %2377 = vadd.xlane.f32.xlu0 %v2376
        %v2378 = vpop.xlane.xlu0 %2377
        %v2379 = vrot.slane %v2378, 4
        %v2380 = vadd.f32 %v2378, %v2379
        %v2381 = vrot.slane %v2380, 2
        %v2382 = vadd.f32 %v2380, %v2381
        %v2383 = vrot.slane %v2382, 1
        %v2384 = vadd.f32 %v2382, %v2383
        %s2385 = vtos %v2384
        %v2386 = vstv %s2385
        %v2387 = vmul.f32 %v2386, %v1480
        %v2388 = vsub.f32 %v2375, %v2387
        %v2389 = vmul.f32 %v2388, %v2388
        %v2390 = vsel %vm528, %v2389, 0.0
        %2391 = vadd.xlane.f32.xlu0 %v2390
        %v2392 = vpop.xlane.xlu0 %2391
        %v2393 = vrot.slane %v2392, 4
        %v2394 = vadd.f32 %v2392, %v2393
        %v2395 = vrot.slane %v2394, 2
        %v2396 = vadd.f32 %v2394, %v2395
        %v2397 = vrot.slane %v2396, 1
        %v2398 = vadd.f32 %v2396, %v2397
        %s2399 = vtos %v2398
        %v2400 = vstv %s2399
        %v2401 = vmul.f32 %v2400, %v1480
        %v2402 = vadd.f32 %v2401, 1e-05
        %v2403 = vrsqrt.pop %v2402
        %v2404 = vmul.f32 %v506, %v2403
        %v2406 = vlaneseq
        %v2407 = vshrl.u32 %v2406, 7
        %v2408 = vsub.s32 0, %v2407
        %v2409 = vrot.slane %v2404, %v2408
        %2410 = vset.pattern.permute.xlu0 65
        %2411 = vperm.xlu0 %2410, %v2409
        %v2412 = vpop.permute.xlu0 %2411
        %v2414 = vmul.f32 %v2388, %v2412
        %v2415 = vadd.f32 %v1509, %v2414
        %s2416 = scalar_lea.vmem [#allocation7], 16
        %v2417 = vld [vmem:[%s2416] sm:$0x3f]
        %s2418 = scalar_lea.vmem %s6, 4
        %v2419 = vld [vmem:[%s2418] sm:$0x3]
        %s2420 = scalar_lea.vmem %s2, 32
        %v2421 = vld [vmem:[%s2420] sm:$0xf]
        %v2422 = vld [vmem:[%s2420 + $0x4] sm:$0xf]
        %v2423 = vld [vmem:[%s2420 + $0x8] sm:$0xf]
        %v2424 = vld [vmem:[%s2420 + $0xc] sm:$0xf]
        %s2425 = scalar_lea.vmem [#allocation2], 32
        %v2426 = vld [vmem:[%s2425] sm:$0xf]
        %v2427 = vld [vmem:[%s2425 + $0x4] sm:$0xf]
        %v2428 = vld [vmem:[%s2425 + $0x8] sm:$0xf]
        %v2429 = vld [vmem:[%s2425 + $0xc] sm:$0xf]
        %s2430 = scalar_lea.vmem [#allocation5], 128
        %v2431 = vld [vmem:[%s2430] sm:$0xf]
        %v2432 = vld [vmem:[%s2430 + $0x4] sm:$0xf]
        %v2433 = vld [vmem:[%s2430 + $0x8] sm:$0xf]
        %v2434 = vld [vmem:[%s2430 + $0xc] sm:$0xf]
        %v2435 = vld [vmem:[%s2430 + $0x10] sm:$0xf]
        %v2436 = vld [vmem:[%s2430 + $0x14] sm:$0xf]
        %v2437 = vld [vmem:[%s2430 + $0x18] sm:$0xf]
        %v2438 = vld [vmem:[%s2430 + $0x1c] sm:$0xf]
        %v2439 = vld [vmem:[%s2430 + $0x20] sm:$0xf]
        %v2440 = vld [vmem:[%s2430 + $0x24] sm:$0xf]
        %v2441 = vld [vmem:[%s2430 + $0x28] sm:$0xf]
        %v2442 = vld [vmem:[%s2430 + $0x2c] sm:$0xf]
        %v2443 = vld [vmem:[%s2430 + $0x30] sm:$0xf]
        %v2444 = vld [vmem:[%s2430 + $0x34] sm:$0xf]
        %v2445 = vld [vmem:[%s2430 + $0x38] sm:$0xf]
        %v2446 = vld [vmem:[%s2430 + $0x3c] sm:$0xf]
        %v2447 = vsel %vm528, %v2204, 0.0
        %2448 = vadd.xlane.f32.xlu0 %v2447
        %v2449 = vpop.xlane.xlu0 %2448
        %v2450 = vsel %vm528, %v2205, 0.0
        %2451 = vadd.xlane.f32.xlu0 %v2450
        %v2452 = vpop.xlane.xlu0 %2451
        %v2453 = vmul.f32 %v2449, %v605
        %v2454 = vmul.f32 %v2452, %v605
        %v2455 = vsub.f32 %v2204, %v2453
        %v2456 = vsub.f32 %v2205, %v2454
        %v2457 = vmul.f32 %v2455, %v2455
        %v2458 = vmul.f32 %v2456, %v2456
        %v2459 = vsel %vm528, %v2457, 0.0
        %2460 = vadd.xlane.f32.xlu0 %v2459
        %v2461 = vpop.xlane.xlu0 %2460
        %v2462 = vsel %vm528, %v2458, 0.0
        %2463 = vadd.xlane.f32.xlu0 %v2462
        %v2464 = vpop.xlane.xlu0 %2463
        %v2465 = vmul.f32 %v2461, %v605
        %v2466 = vmul.f32 %v2464, %v605
        %v2467 = vadd.f32 %v2465, 1e-05
        %v2468 = vadd.f32 %v2466, 1e-05
        %v2469 = vrsqrt.pop %v2467
        %v2470 = vrsqrt.pop %v2468
        %v2471 = vmul.f32 %v2455, %v2469
        %v2472 = vmul.f32 %v2456, %v2470
        %v2473 = vlaneseq
        %v2474 = vshrl.u32 %v2473, 7
        %v2475 = vsub.s32 0, %v2474
        %v2476 = vrot.slane %v2417, %v2475
        %v2477 = vmul.f32 %v2471, %v2476
        %v2478 = vmul.f32 %v2472, %v2476
        %v2479 = vlaneseq
        %v2480 = vshrl.u32 %v2479, 7
        %v2481 = vsub.s32 1, %v2480
        %v2482 = vrot.slane %v2417, %v2481
        %v2483 = vadd.f32 %v2477, %v2482
        %v2484 = vadd.f32 %v2478, %v2482
        %v2485 = vpack.c.bf16 %v2484, %v2483
        %v2486 = vlaneseq
        %v2487 = vshrl.u32 %v2486, 7
        %v2488 = vsub.s32 0, %v2487
        %v2489 = vrot.slane %v2419, %v2488
        %v2494 = vunpack.c.l.b16 %v2421
        %v2495 = vunpack.c.l.b16 %v2422
        %v2496 = vunpack.c.l.b16 %v2423
        %v2497 = vunpack.c.l.b16 %v2424
        %v2498 = vpack.c.b16 %v2495, %v2494
        %v2499 = vpack.c.b16 %v2497, %v2496
        %v2503 = vsel %vm528, %v2485, 0
        %2505 = vmatprep.subr.bf16.mxu0 0
        %2506 = vmatpush1.bf16.msra.mxu0 %v2498
        %2507 = vmatprep.subr.bf16.mxu0 0
        %2508 = vmatpush1.bf16.msra.mxu0 %v2499
        %2509 = vmatprep.subr.bf16.mxu0 0
        %2510 = vmatpush1.bf16.msra.mxu0 0
        %2511 = vmatprep.subr.bf16.mxu0 0
        %2512 = vmatpush1.bf16.msra.mxu0 0
        %2513 = vmatprep.subr.bf16.mxu0 0
        %2514 = vmatpush1.bf16.msra.mxu0 0
        %2515 = vmatprep.subr.bf16.mxu0 0
        %2516 = vmatpush1.bf16.msra.mxu0 0
        %2517 = vmatprep.subr.bf16.mxu0 0
        %2518 = vmatpush1.bf16.msra.mxu0 0
        %2519 = vmatprep.subr.bf16.mxu0 0
        %2520 = vmatpush1.bf16.msra.mxu0 0
        %2521 = vmatprep.subr.bf16.mxu0 0
        %2522 = vmatpush1.bf16.msra.mxu0 0
        %2523 = vmatprep.subr.bf16.mxu0 0
        %2524 = vmatpush1.bf16.msra.mxu0 0
        %2525 = vmatprep.subr.bf16.mxu0 0
        %2526 = vmatpush1.bf16.msra.mxu0 0
        %2527 = vmatprep.subr.bf16.mxu0 0
        %2528 = vmatpush1.bf16.msra.mxu0 0
        %2529 = vmatprep.subr.bf16.mxu0 0
        %2530 = vmatpush1.bf16.msra.mxu0 0
        %2531 = vmatprep.subr.bf16.mxu0 0
        %2532 = vmatpush1.bf16.msra.mxu0 0
        %2533 = vmatprep.subr.bf16.mxu0 0
        %2534 = vmatpush1.bf16.msra.mxu0 0
        %2535 = vmatprep.subr.bf16.mxu0 0
        %2536 = vmatpush1.bf16.msra.mxu0 0
        %2537 = vmatprep.mubr.bf16.mxu0 0
        %2538 = vmatmul.mubr.bf16.gmra.mrb[0].mxu0 %v2503
        %v2539 = vpop.f32.mrb[0].mxu0
        %v2540 = vadd.f32 %v2489, %v2539
        %v2541 = vpop.f32.mrb[0].mxu0
        %v2542 = vpop.f32.mrb[0].mxu0
        %v2543 = vadd.f32 %v2489, %v2542
        %v2544 = vpop.f32.mrb[0].mxu0
        %2545 = vdwg.mxu0
        %v2546 = vmul.f32 %v2540, %v468
        %v2547 = vmul.f32 %v2543, %v468
        %v2548 = vmul.f32 %v2540, %v473
        %v2549 = vmul.f32 %v2543, %v473
        %v2550 = vmul.f32 %v2540, %v478
        %v2551 = vmul.f32 %v2543, %v478
        %v2552 = vmul.f32 %v2540, %v483
        %v2553 = vmul.f32 %v2543, %v483
        %v2554 = vpack.c.bf16 %v2547, %v2546
        %v2555 = vpack.c.bf16 %v2549, %v2548
        %v2556 = vpack.c.bf16 %v2551, %v2550
        %v2557 = vpack.c.bf16 %v2553, %v2552
        %v2558 = vpack.c.bf16 %v2543, %v2540
        %2560 = vrot.lane.b32.xlu0 %v2558, 96
        %v2561 = vpop.permute.xlu0 %2560
        %v2563 = vsel %vm528, %v2554, 0
        %v2566 = vsel %vm528, %v2555, 0
        %v2569 = vsel %vm528, %v2556, 0
        %v2572 = vsel %vm528, %v2557, 0
        %v2575 = vsel %vm528, %v2561, 0
        %2577 = vmatprep.subr.bf16.mxu0 0
        %2578 = vmatpush1.bf16.xpose.msra.mxu0 %v2575
        %2579 = vmatprep.subr.bf16.mxu0 0
        %2580 = vmatpush1.bf16.xpose.msra.mxu0 0
        %2581 = vmatprep.subr.bf16.mxu0 0
        %2582 = vmatpush1.bf16.xpose.msra.mxu0 0
        %2583 = vmatprep.subr.bf16.mxu0 0
        %2584 = vmatpush1.bf16.xpose.msra.mxu0 0
        %2585 = vmatprep.subr.bf16.mxu0 0
        %2586 = vmatpush1.bf16.xpose.msra.mxu0 0
        %2587 = vmatprep.subr.bf16.mxu0 0
        %2588 = vmatpush1.bf16.xpose.msra.mxu0 0
        %2589 = vmatprep.subr.bf16.mxu0 0
        %2590 = vmatpush1.bf16.xpose.msra.mxu0 0
        %2591 = vmatprep.subr.bf16.mxu0 0
        %2592 = vmatpush1.bf16.xpose.msra.mxu0 0
        %2593 = vmatprep.subr.bf16.mxu0 0
        %2594 = vmatpush1.bf16.xpose.msra.mxu0 0
        %2595 = vmatprep.subr.bf16.mxu0 0
        %2596 = vmatpush1.bf16.xpose.msra.mxu0 0
        %2597 = vmatprep.subr.bf16.mxu0 0
        %2598 = vmatpush1.bf16.xpose.msra.mxu0 0
        %2599 = vmatprep.subr.bf16.mxu0 0
        %2600 = vmatpush1.bf16.xpose.msra.mxu0 0
        %2601 = vmatprep.subr.bf16.mxu0 0
        %2602 = vmatpush1.bf16.xpose.msra.mxu0 0
        %2603 = vmatprep.subr.bf16.mxu0 0
        %2604 = vmatpush1.bf16.xpose.msra.mxu0 0
        %2605 = vmatprep.subr.bf16.mxu0 0
        %2606 = vmatpush1.bf16.xpose.msra.mxu0 0
        %2607 = vmatprep.subr.bf16.mxu0 0
        %2608 = vmatpush1.bf16.xpose.msra.mxu0 0
        %2609 = vmatprep.mubr.bf16.mxu0 0
        %2610 = vmatmul.mubr.bf16.gmra.mrb[0].mxu0 %v2563
        %v2611 = vpop.f32.mrb[0].mxu0
        %v2612 = vadd.f32 0.0, %v2611
        %v2613 = vpop.f32.mrb[0].mxu0
        %v2614 = vpop.f32.mrb[0].mxu0
        %v2615 = vadd.f32 0.0, %v2614
        %v2616 = vpop.f32.mrb[0].mxu0
        %2617 = vmatprep.mubr.bf16.mxu0 0
        %2618 = vmatmul.mubr.bf16.gmra.mrb[0].mxu0 %v2566
        %v2619 = vpop.f32.mrb[0].mxu0
        %v2620 = vadd.f32 0.0, %v2619
        %v2621 = vpop.f32.mrb[0].mxu0
        %v2622 = vpop.f32.mrb[0].mxu0
        %v2623 = vadd.f32 0.0, %v2622
        %v2624 = vpop.f32.mrb[0].mxu0
        %2625 = vmatprep.mubr.bf16.mxu0 0
        %2626 = vmatmul.mubr.bf16.gmra.mrb[0].mxu0 %v2569
        %v2627 = vpop.f32.mrb[0].mxu0
        %v2628 = vadd.f32 0.0, %v2627
        %v2629 = vpop.f32.mrb[0].mxu0
        %v2630 = vpop.f32.mrb[0].mxu0
        %v2631 = vadd.f32 0.0, %v2630
        %v2632 = vpop.f32.mrb[0].mxu0
        %2633 = vmatprep.mubr.bf16.mxu0 0
        %2634 = vmatmul.mubr.bf16.gmra.mrb[0].mxu0 %v2572
        %v2635 = vpop.f32.mrb[0].mxu0
        %v2636 = vadd.f32 0.0, %v2635
        %v2637 = vpop.f32.mrb[0].mxu0
        %v2638 = vpop.f32.mrb[0].mxu0
        %v2639 = vadd.f32 0.0, %v2638
        %v2640 = vpop.f32.mrb[0].mxu0
        %2641 = vdwg.mxu0
        %v2642 = vsel %vm456, %v2612, -1e+30
        %v2643 = vsel %vm457, %v2615, -1e+30
        %v2644 = vsel %vm458, %v2620, -1e+30
        %v2645 = vsel %vm459, %v2623, -1e+30
        %v2646 = vsel %vm460, %v2628, -1e+30
        %v2647 = vsel %vm461, %v2631, -1e+30
        %v2648 = vsel %vm462, %v2636, -1e+30
        %v2649 = vsel %vm463, %v2639, -1e+30
        %v2650 = vsel %vm803, %v2642, -inf
        %2651 = vmax.xlane.f32.xlu0 %v2650
        %v2652 = vpop.xlane.xlu0 %2651
        %v2653 = vsel %vm803, %v2643, -inf
        %2654 = vmax.xlane.f32.xlu0 %v2653
        %v2655 = vpop.xlane.xlu0 %2654
        %v2656 = vsel %vm803, %v2644, -inf
        %2657 = vmax.xlane.f32.xlu0 %v2656
        %v2658 = vpop.xlane.xlu0 %2657
        %v2659 = vsel %vm803, %v2645, -inf
        %2660 = vmax.xlane.f32.xlu0 %v2659
        %v2661 = vpop.xlane.xlu0 %2660
        %v2662 = vsel %vm803, %v2646, -inf
        %2663 = vmax.xlane.f32.xlu0 %v2662
        %v2664 = vpop.xlane.xlu0 %2663
        %v2665 = vsel %vm803, %v2647, -inf
        %2666 = vmax.xlane.f32.xlu0 %v2665
        %v2667 = vpop.xlane.xlu0 %2666
        %v2668 = vsel %vm803, %v2648, -inf
        %2669 = vmax.xlane.f32.xlu0 %v2668
        %v2670 = vpop.xlane.xlu0 %2669
        %v2671 = vsel %vm803, %v2649, -inf
        %2672 = vmax.xlane.f32.xlu0 %v2671
        %v2673 = vpop.xlane.xlu0 %2672
        %v2674 = vsub.f32 %v2642, %v2652
        %v2675 = vsub.f32 %v2643, %v2655
        %v2676 = vsub.f32 %v2644, %v2658
        %v2677 = vsub.f32 %v2645, %v2661
        %v2678 = vsub.f32 %v2646, %v2664
        %v2679 = vsub.f32 %v2647, %v2667
        %v2680 = vsub.f32 %v2648, %v2670
        %v2681 = vsub.f32 %v2649, %v2673
        %v2682 = vmul.f32 %v2674, 1.442695
        %v2683 = vpow.pop %v2682
        %v2684 = vmul.f32 %v2675, 1.442695
        %v2685 = vpow.pop %v2684
        %v2686 = vmul.f32 %v2676, 1.442695
        %v2687 = vpow.pop %v2686
        %v2688 = vmul.f32 %v2677, 1.442695
        %v2689 = vpow.pop %v2688
        %v2690 = vmul.f32 %v2678, 1.442695
        %v2691 = vpow.pop %v2690
        %v2692 = vmul.f32 %v2679, 1.442695
        %v2693 = vpow.pop %v2692
        %v2694 = vmul.f32 %v2680, 1.442695
        %v2695 = vpow.pop %v2694
        %v2696 = vmul.f32 %v2681, 1.442695
        %v2697 = vpow.pop %v2696
        %v2698 = vsel %vm803, %v2683, 0.0
        %2699 = vadd.xlane.f32.xlu0 %v2698
        %v2700 = vpop.xlane.xlu0 %2699
        %v2701 = vsel %vm803, %v2685, 0.0
        %2702 = vadd.xlane.f32.xlu0 %v2701
        %v2703 = vpop.xlane.xlu0 %2702
        %v2704 = vsel %vm803, %v2687, 0.0
        %2705 = vadd.xlane.f32.xlu0 %v2704
        %v2706 = vpop.xlane.xlu0 %2705
        %v2707 = vsel %vm803, %v2689, 0.0
        %2708 = vadd.xlane.f32.xlu0 %v2707
        %v2709 = vpop.xlane.xlu0 %2708
        %v2710 = vsel %vm803, %v2691, 0.0
        %2711 = vadd.xlane.f32.xlu0 %v2710
        %v2712 = vpop.xlane.xlu0 %2711
        %v2713 = vsel %vm803, %v2693, 0.0
        %2714 = vadd.xlane.f32.xlu0 %v2713
        %v2715 = vpop.xlane.xlu0 %2714
        %v2716 = vsel %vm803, %v2695, 0.0
        %2717 = vadd.xlane.f32.xlu0 %v2716
        %v2718 = vpop.xlane.xlu0 %2717
        %v2719 = vsel %vm803, %v2697, 0.0
        %2720 = vadd.xlane.f32.xlu0 %v2719
        %v2721 = vpop.xlane.xlu0 %2720
        %v2722 = vrcp.pop %v2700
        %v2723 = vrcp.pop %v2703
        %v2724 = vrcp.pop %v2706
        %v2725 = vrcp.pop %v2709
        %v2726 = vrcp.pop %v2712
        %v2727 = vrcp.pop %v2715
        %v2728 = vrcp.pop %v2718
        %v2729 = vrcp.pop %v2721
        %v2730 = vmul.f32 %v2683, %v2722
        %v2731 = vmul.f32 %v2685, %v2723
        %v2732 = vmul.f32 %v2687, %v2724
        %v2733 = vmul.f32 %v2689, %v2725
        %v2734 = vmul.f32 %v2691, %v2726
        %v2735 = vmul.f32 %v2693, %v2727
        %v2736 = vmul.f32 %v2695, %v2728
        %v2737 = vmul.f32 %v2697, %v2729
        %v2738 = vpack.c.bf16 %v2731, %v2730
        %v2739 = vpack.c.bf16 %v2733, %v2732
        %v2740 = vpack.c.bf16 %v2735, %v2734
        %v2741 = vpack.c.bf16 %v2737, %v2736
        %2742 = vrot.lane.b32.xlu0 %v2558, 64
        %v2743 = vpop.permute.xlu0 %2742
        %v2746 = vsel %vm803, %v2738, 0
        %v2749 = vsel %vm803, %v2739, 0
        %v2752 = vsel %vm803, %v2740, 0
        %v2755 = vsel %vm803, %v2741, 0
        %2757 = vmatprep.subr.bf16.mxu0 0
        %2758 = vmatpush1.bf16.msra.mxu0 %v2743
        %2759 = vmatprep.subr.bf16.mxu0 0
        %2760 = vmatpush1.bf16.msra.mxu0 0
        %2761 = vmatprep.subr.bf16.mxu0 0
        %2762 = vmatpush1.bf16.msra.mxu0 0
        %2763 = vmatprep.subr.bf16.mxu0 0
        %2764 = vmatpush1.bf16.msra.mxu0 0
        %2765 = vmatprep.subr.bf16.mxu0 0
        %2766 = vmatpush1.bf16.msra.mxu0 0
        %2767 = vmatprep.subr.bf16.mxu0 0
        %2768 = vmatpush1.bf16.msra.mxu0 0
        %2769 = vmatprep.subr.bf16.mxu0 0
        %2770 = vmatpush1.bf16.msra.mxu0 0
        %2771 = vmatprep.subr.bf16.mxu0 0
        %2772 = vmatpush1.bf16.msra.mxu0 0
        %2773 = vmatprep.subr.bf16.mxu0 0
        %2774 = vmatpush1.bf16.msra.mxu0 0
        %2775 = vmatprep.subr.bf16.mxu0 0
        %2776 = vmatpush1.bf16.msra.mxu0 0
        %2777 = vmatprep.subr.bf16.mxu0 0
        %2778 = vmatpush1.bf16.msra.mxu0 0
        %2779 = vmatprep.subr.bf16.mxu0 0
        %2780 = vmatpush1.bf16.msra.mxu0 0
        %2781 = vmatprep.subr.bf16.mxu0 0
        %2782 = vmatpush1.bf16.msra.mxu0 0
        %2783 = vmatprep.subr.bf16.mxu0 0
        %2784 = vmatpush1.bf16.msra.mxu0 0
        %2785 = vmatprep.subr.bf16.mxu0 0
        %2786 = vmatpush1.bf16.msra.mxu0 0
        %2787 = vmatprep.subr.bf16.mxu0 0
        %2788 = vmatpush1.bf16.msra.mxu0 0
        %2789 = vmatprep.mubr.bf16.mxu0 0
        %2790 = vmatmul.mubr.bf16.gmra.mrb[0].mxu0 %v2746
        %v2791 = vpop.f32.mrb[0].mxu0
        %v2792 = vadd.f32 0.0, %v2791
        %v2793 = vpop.f32.mrb[0].mxu0
        %v2794 = vpop.f32.mrb[0].mxu0
        %v2795 = vadd.f32 0.0, %v2794
        %v2796 = vpop.f32.mrb[0].mxu0
        %2797 = vmatprep.mubr.bf16.mxu0 0
        %2798 = vmatmul.mubr.bf16.gmra.mrb[0].mxu0 %v2749
        %v2799 = vpop.f32.mrb[0].mxu0
        %v2800 = vadd.f32 0.0, %v2799
        %v2801 = vpop.f32.mrb[0].mxu0
        %v2802 = vpop.f32.mrb[0].mxu0
        %v2803 = vadd.f32 0.0, %v2802
        %v2804 = vpop.f32.mrb[0].mxu0
        %2805 = vmatprep.mubr.bf16.mxu0 0
        %2806 = vmatmul.mubr.bf16.gmra.mrb[0].mxu0 %v2752
        %v2807 = vpop.f32.mrb[0].mxu0
        %v2808 = vadd.f32 0.0, %v2807
        %v2809 = vpop.f32.mrb[0].mxu0
        %v2810 = vpop.f32.mrb[0].mxu0
        %v2811 = vadd.f32 0.0, %v2810
        %v2812 = vpop.f32.mrb[0].mxu0
        %2813 = vmatprep.mubr.bf16.mxu0 0
        %2814 = vmatmul.mubr.bf16.gmra.mrb[0].mxu0 %v2755
        %v2815 = vpop.f32.mrb[0].mxu0
        %v2816 = vadd.f32 0.0, %v2815
        %v2817 = vpop.f32.mrb[0].mxu0
        %v2818 = vpop.f32.mrb[0].mxu0
        %v2819 = vadd.f32 0.0, %v2818
        %v2820 = vpop.f32.mrb[0].mxu0
        %2821 = vdwg.mxu0
        %v2822 = vmul.f32 %v2792, %v468
        %v2823 = vmul.f32 %v2795, %v468
        %v2824 = vadd.f32 %v2822, 0.0
        %v2825 = vadd.f32 %v2823, 0.0
        %v2826 = vmul.f32 %v2800, %v473
        %v2827 = vmul.f32 %v2803, %v473
        %v2828 = vadd.f32 %v2824, %v2826
        %v2829 = vadd.f32 %v2825, %v2827
        %v2830 = vmul.f32 %v2808, %v478
        %v2831 = vmul.f32 %v2811, %v478
        %v2832 = vadd.f32 %v2828, %v2830
        %v2833 = vadd.f32 %v2829, %v2831
        %v2834 = vmul.f32 %v2816, %v483
        %v2835 = vmul.f32 %v2819, %v483
        %v2836 = vadd.f32 %v2832, %v2834
        %v2837 = vadd.f32 %v2833, %v2835
        %v2838 = vpack.c.bf16 %v2837, %v2836
        %2839 = vrot.lane.b32.xlu0 %v2498, 32
        %v2840 = vpop.permute.xlu0 %2839
        %2841 = vrot.lane.b32.xlu0 %v2499, 32
        %v2842 = vpop.permute.xlu0 %2841
        %v2846 = vsel %vm528, %v2838, 0
        %2848 = vmatprep.subr.bf16.mxu0 0
        %2849 = vmatpush1.bf16.msra.mxu0 %v2840
        %2850 = vmatprep.subr.bf16.mxu0 0
        %2851 = vmatpush1.bf16.msra.mxu0 %v2842
        %2852 = vmatprep.subr.bf16.mxu0 0
        %2853 = vmatpush1.bf16.msra.mxu0 0
        %2854 = vmatprep.subr.bf16.mxu0 0
        %2855 = vmatpush1.bf16.msra.mxu0 0
        %2856 = vmatprep.subr.bf16.mxu0 0
        %2857 = vmatpush1.bf16.msra.mxu0 0
        %2858 = vmatprep.subr.bf16.mxu0 0
        %2859 = vmatpush1.bf16.msra.mxu0 0
        %2860 = vmatprep.subr.bf16.mxu0 0
        %2861 = vmatpush1.bf16.msra.mxu0 0
        %2862 = vmatprep.subr.bf16.mxu0 0
        %2863 = vmatpush1.bf16.msra.mxu0 0
        %2864 = vmatprep.subr.bf16.mxu0 0
        %2865 = vmatpush1.bf16.msra.mxu0 0
        %2866 = vmatprep.subr.bf16.mxu0 0
        %2867 = vmatpush1.bf16.msra.mxu0 0
        %2868 = vmatprep.subr.bf16.mxu0 0
        %2869 = vmatpush1.bf16.msra.mxu0 0
        %2870 = vmatprep.subr.bf16.mxu0 0
        %2871 = vmatpush1.bf16.msra.mxu0 0
        %2872 = vmatprep.subr.bf16.mxu0 0
        %2873 = vmatpush1.bf16.msra.mxu0 0
        %2874 = vmatprep.subr.bf16.mxu0 0
        %2875 = vmatpush1.bf16.msra.mxu0 0
        %2876 = vmatprep.subr.bf16.mxu0 0
        %2877 = vmatpush1.bf16.msra.mxu0 0
        %2878 = vmatprep.subr.bf16.mxu0 0
        %2879 = vmatpush1.bf16.msra.mxu0 0
        %2880 = vmatprep.mubr.bf16.mxu0 0
        %2881 = vmatmul.mubr.bf16.gmra.mrb[0].mxu0 %v2846
        %v2882 = vpop.f32.mrb[0].mxu0
        %v2883 = vadd.f32 0.0, %v2882
        %v2884 = vpop.f32.mrb[0].mxu0
        %v2885 = vpop.f32.mrb[0].mxu0
        %v2886 = vadd.f32 0.0, %v2885
        %v2887 = vpop.f32.mrb[0].mxu0
        %2888 = vdwg.mxu0
        %v2889 = vadd.f32 %v2204, %v2883
        %v2890 = vadd.f32 %v2205, %v2886
        %v2891 = vlaneseq
        %v2892 = vshrl.u32 %v2891, 7
        %v2893 = vsub.s32 4, %v2892
        %v2894 = vrot.slane %v2417, %v2893
        %v2895 = vadd.f32 %v2889, %v2894
        %v2896 = vadd.f32 %v2890, %v2894
        %v2897 = vsel %vm528, %v2895, 0.0
        %2898 = vadd.xlane.f32.xlu0 %v2897
        %v2899 = vpop.xlane.xlu0 %2898
        %v2900 = vsel %vm528, %v2896, 0.0
        %2901 = vadd.xlane.f32.xlu0 %v2900
        %v2902 = vpop.xlane.xlu0 %2901
        %v2903 = vmul.f32 %v2899, %v605
        %v2904 = vmul.f32 %v2902, %v605
        %v2905 = vsub.f32 %v2895, %v2903
        %v2906 = vsub.f32 %v2896, %v2904
        %v2907 = vmul.f32 %v2905, %v2905
        %v2908 = vmul.f32 %v2906, %v2906
        %v2909 = vsel %vm528, %v2907, 0.0
        %2910 = vadd.xlane.f32.xlu0 %v2909
        %v2911 = vpop.xlane.xlu0 %2910
        %v2912 = vsel %vm528, %v2908, 0.0
        %2913 = vadd.xlane.f32.xlu0 %v2912
        %v2914 = vpop.xlane.xlu0 %2913
        %v2915 = vmul.f32 %v2911, %v605
        %v2916 = vmul.f32 %v2914, %v605
        %v2917 = vadd.f32 %v2915, 1e-05
        %v2918 = vadd.f32 %v2916, 1e-05
        %v2919 = vrsqrt.pop %v2917
        %v2920 = vrsqrt.pop %v2918
        %v2921 = vmul.f32 %v2905, %v2919
        %v2922 = vmul.f32 %v2906, %v2920
        %v2923 = vlaneseq
        %v2924 = vshrl.u32 %v2923, 7
        %v2925 = vsub.s32 2, %v2924
        %v2926 = vrot.slane %v2417, %v2925
        %v2927 = vmul.f32 %v2921, %v2926
        %v2928 = vmul.f32 %v2922, %v2926
        %v2929 = vlaneseq
        %v2930 = vshrl.u32 %v2929, 7
        %v2931 = vsub.s32 3, %v2930
        %v2932 = vrot.slane %v2417, %v2931
        %v2933 = vadd.f32 %v2927, %v2932
        %v2934 = vadd.f32 %v2928, %v2932
        %v2935 = vpack.c.bf16 %v2934, %v2933
        %v2936 = vlaneseq
        %v2937 = vshrl.u32 %v2936, 7
        %v2938 = vsub.s32 1, %v2937
        %v2939 = vrot.slane %v2419, %v2938
        %v2944 = vunpack.c.l.b16 %v2426
        %v2945 = vunpack.c.l.b16 %v2427
        %v2946 = vunpack.c.l.b16 %v2428
        %v2947 = vunpack.c.l.b16 %v2429
        %v2948 = vpack.c.b16 %v2945, %v2944
        %v2949 = vpack.c.b16 %v2947, %v2946
        %v2953 = vsel %vm528, %v2935, 0
        %2955 = vmatprep.subr.bf16.mxu0 0
        %2956 = vmatpush1.bf16.msra.mxu0 %v2948
        %2957 = vmatprep.subr.bf16.mxu0 0
        %2958 = vmatpush1.bf16.msra.mxu0 %v2949
        %2959 = vmatprep.subr.bf16.mxu0 0
        %2960 = vmatpush1.bf16.msra.mxu0 0
        %2961 = vmatprep.subr.bf16.mxu0 0
        %2962 = vmatpush1.bf16.msra.mxu0 0
        %2963 = vmatprep.subr.bf16.mxu0 0
        %2964 = vmatpush1.bf16.msra.mxu0 0
        %2965 = vmatprep.subr.bf16.mxu0 0
        %2966 = vmatpush1.bf16.msra.mxu0 0
        %2967 = vmatprep.subr.bf16.mxu0 0
        %2968 = vmatpush1.bf16.msra.mxu0 0
        %2969 = vmatprep.subr.bf16.mxu0 0
        %2970 = vmatpush1.bf16.msra.mxu0 0
        %2971 = vmatprep.subr.bf16.mxu0 0
        %2972 = vmatpush1.bf16.msra.mxu0 0
        %2973 = vmatprep.subr.bf16.mxu0 0
        %2974 = vmatpush1.bf16.msra.mxu0 0
        %2975 = vmatprep.subr.bf16.mxu0 0
        %2976 = vmatpush1.bf16.msra.mxu0 0
        %2977 = vmatprep.subr.bf16.mxu0 0
        %2978 = vmatpush1.bf16.msra.mxu0 0
        %2979 = vmatprep.subr.bf16.mxu0 0
        %2980 = vmatpush1.bf16.msra.mxu0 0
        %2981 = vmatprep.subr.bf16.mxu0 0
        %2982 = vmatpush1.bf16.msra.mxu0 0
        %2983 = vmatprep.subr.bf16.mxu0 0
        %2984 = vmatpush1.bf16.msra.mxu0 0
        %2985 = vmatprep.subr.bf16.mxu0 0
        %2986 = vmatpush1.bf16.msra.mxu0 0
        %2987 = vmatprep.mubr.bf16.mxu0 0
        %2988 = vmatmul.mubr.bf16.gmra.mrb[0].mxu0 %v2953
        %v2989 = vpop.f32.mrb[0].mxu0
        %v2990 = vadd.f32 %v2939, %v2989
        %v2991 = vpop.f32.mrb[0].mxu0
        %v2992 = vpop.f32.mrb[0].mxu0
        %v2993 = vadd.f32 %v2939, %v2992
        %v2994 = vpop.f32.mrb[0].mxu0
        %2995 = vdwg.mxu0
        %v2996 = vmul.f32 %v2990, %v2990
        %v2997 = vmul.f32 %v2993, %v2993
        %v2998 = vmul.f32 %v2990, %v2996
        %v2999 = vmul.f32 %v2993, %v2997
        %v3000 = vmul.f32 %v2998, 0.044715
        %v3001 = vmul.f32 %v2999, 0.044715
        %v3002 = vadd.f32 %v2990, %v3000
        %v3003 = vadd.f32 %v2993, %v3001
        %v3004 = vmul.f32 %v3002, 0.7978846
        %v3005 = vmul.f32 %v3003, 0.7978846
        %v3006 = vtanh.pop %v3004
        %v3007 = vtanh.pop %v3005
        %v3008 = vadd.f32 %v3006, 1.0
        %v3009 = vadd.f32 %v3007, 1.0
        %v3010 = vmul.f32 %v3008, 0.5
        %v3011 = vmul.f32 %v3009, 0.5
        %v3012 = vmul.f32 %v2990, %v3010
        %v3013 = vmul.f32 %v2993, %v3011
        %v3014 = vpack.c.bf16 %v3013, %v3012
        %v3031 = vunpack.c.l.b16 %v2431
        %v3032 = vunpack.c.l.b16 %v2432
        %v3033 = vunpack.c.l.b16 %v2433
        %v3034 = vunpack.c.l.b16 %v2434
        %v3035 = vunpack.c.l.b16 %v2435
        %v3036 = vunpack.c.l.b16 %v2436
        %v3037 = vunpack.c.l.b16 %v2437
        %v3038 = vunpack.c.l.b16 %v2438
        %v3039 = vunpack.c.l.b16 %v2439
        %v3040 = vunpack.c.l.b16 %v2440
        %v3041 = vunpack.c.l.b16 %v2441
        %v3042 = vunpack.c.l.b16 %v2442
        %v3043 = vunpack.c.l.b16 %v2443
        %v3044 = vunpack.c.l.b16 %v2444
        %v3045 = vunpack.c.l.b16 %v2445
        %v3046 = vunpack.c.l.b16 %v2446
        %v3047 = vpack.c.b16 %v3032, %v3031
        %v3048 = vpack.c.b16 %v3034, %v3033
        %v3049 = vpack.c.b16 %v3036, %v3035
        %v3050 = vpack.c.b16 %v3038, %v3037
        %v3051 = vpack.c.b16 %v3040, %v3039
        %v3052 = vpack.c.b16 %v3042, %v3041
        %v3053 = vpack.c.b16 %v3044, %v3043
        %v3054 = vpack.c.b16 %v3046, %v3045
        %3063 = vmatprep.subr.bf16.mxu0 0
        %3064 = vmatpush1.bf16.msra.mxu0 %v3047
        %3065 = vmatprep.subr.bf16.mxu0 0
        %3066 = vmatpush1.bf16.msra.mxu0 %v3048
        %3067 = vmatprep.subr.bf16.mxu0 0
        %3068 = vmatpush1.bf16.msra.mxu0 %v3049
        %3069 = vmatprep.subr.bf16.mxu0 0
        %3070 = vmatpush1.bf16.msra.mxu0 %v3050
        %3071 = vmatprep.subr.bf16.mxu0 0
        %3072 = vmatpush1.bf16.msra.mxu0 %v3051
        %3073 = vmatprep.subr.bf16.mxu0 0
        %3074 = vmatpush1.bf16.msra.mxu0 %v3052
        %3075 = vmatprep.subr.bf16.mxu0 0
        %3076 = vmatpush1.bf16.msra.mxu0 %v3053
        %3077 = vmatprep.subr.bf16.mxu0 0
        %3078 = vmatpush1.bf16.msra.mxu0 %v3054
        %3079 = vmatprep.subr.bf16.mxu0 0
        %3080 = vmatpush1.bf16.msra.mxu0 0
        %3081 = vmatprep.subr.bf16.mxu0 0
        %3082 = vmatpush1.bf16.msra.mxu0 0
        %3083 = vmatprep.subr.bf16.mxu0 0
        %3084 = vmatpush1.bf16.msra.mxu0 0
        %3085 = vmatprep.subr.bf16.mxu0 0
        %3086 = vmatpush1.bf16.msra.mxu0 0
        %3087 = vmatprep.subr.bf16.mxu0 0
        %3088 = vmatpush1.bf16.msra.mxu0 0
        %3089 = vmatprep.subr.bf16.mxu0 0
        %3090 = vmatpush1.bf16.msra.mxu0 0
        %3091 = vmatprep.subr.bf16.mxu0 0
        %3092 = vmatpush1.bf16.msra.mxu0 0
        %3093 = vmatprep.subr.bf16.mxu0 0
        %3094 = vmatpush1.bf16.msra.mxu0 0
        %3095 = vmatprep.mubr.bf16.mxu0 0
        %3096 = vmatmul.mubr.bf16.gmra.mrb[0].mxu0 %v3014
        %v3097 = vpop.f32.mrb[0].mxu0
        %v3098 = vadd.f32 0.0, %v3097
        %v3099 = vpop.f32.mrb[0].mxu0
        %v3100 = vpop.f32.mrb[0].mxu0
        %v3101 = vadd.f32 0.0, %v3100
        %v3102 = vpop.f32.mrb[0].mxu0
        %3103 = vdwg.mxu0
        %v3104 = vadd.f32 %v2895, %v3098
        %v3105 = vadd.f32 %v2896, %v3101
        %v3106 = vlaneseq
        %v3107 = vshrl.u32 %v3106, 7
        %v3108 = vsub.s32 5, %v3107
        %v3109 = vrot.slane %v2417, %v3108
        %v3110 = vadd.f32 %v3104, %v3109
        %v3111 = vadd.f32 %v3105, %v3109
        %v3112 = vpack.c.bf16 %v3111, %v3110
        %3113 = vmatprep.subr.bf16.mxu0 0
        %3114 = vmatpush1.bf16.msra.mxu0 %v3112
        %3115 = vmatprep.subr.bf16.mxu0 0
        %3116 = vmatpush1.bf16.msra.mxu0 0
        %3117 = vmatprep.subr.bf16.mxu0 0
        %3118 = vmatpush1.bf16.msra.mxu0 0
        %3119 = vmatprep.subr.bf16.mxu0 0
        %3120 = vmatpush1.bf16.msra.mxu0 0
        %3121 = vmatprep.subr.bf16.mxu0 0
        %3122 = vmatpush1.bf16.msra.mxu0 0
        %3123 = vmatprep.subr.bf16.mxu0 0
        %3124 = vmatpush1.bf16.msra.mxu0 0
        %3125 = vmatprep.subr.bf16.mxu0 0
        %3126 = vmatpush1.bf16.msra.mxu0 0
        %3127 = vmatprep.subr.bf16.mxu0 0
        %3128 = vmatpush1.bf16.msra.mxu0 0
        %3129 = vmatprep.subr.bf16.mxu0 0
        %3130 = vmatpush1.bf16.msra.mxu0 0
        %3131 = vmatprep.subr.bf16.mxu0 0
        %3132 = vmatpush1.bf16.msra.mxu0 0
        %3133 = vmatprep.subr.bf16.mxu0 0
        %3134 = vmatpush1.bf16.msra.mxu0 0
        %3135 = vmatprep.subr.bf16.mxu0 0
        %3136 = vmatpush1.bf16.msra.mxu0 0
        %3137 = vmatprep.subr.bf16.mxu0 0
        %3138 = vmatpush1.bf16.msra.mxu0 0
        %3139 = vmatprep.subr.bf16.mxu0 0
        %3140 = vmatpush1.bf16.msra.mxu0 0
        %3141 = vmatprep.subr.bf16.mxu0 0
        %3142 = vmatpush1.bf16.msra.mxu0 0
        %3143 = vmatprep.subr.bf16.mxu0 0
        %3144 = vmatpush1.bf16.msra.mxu0 0
        %3145 = vmatprep.mubr.bf16.mxu0 0
        %3146 = vmatmul.mubr.bf16.gmra.mrb[0].mxu0 %v1268
        %v3147 = vpop.f32.mrb[0].mxu0
        %v3148 = vadd.f32 0.0, %v3147
        %v3149 = vpop.f32.mrb[0].mxu0
        %v3150 = vpop.f32.mrb[0].mxu0
        %v3151 = vpop.f32.mrb[0].mxu0
        %3152 = vdwg.mxu0
        %3153 = vmatprep.subr.bf16.mxu0 0
        %3154 = vmatpush1.bf16.msra.mxu0 %v3112
        %3155 = vmatprep.subr.bf16.mxu0 0
        %3156 = vmatpush1.bf16.msra.mxu0 0
        %3157 = vmatprep.subr.bf16.mxu0 0
        %3158 = vmatpush1.bf16.msra.mxu0 0
        %3159 = vmatprep.subr.bf16.mxu0 0
        %3160 = vmatpush1.bf16.msra.mxu0 0
        %3161 = vmatprep.subr.bf16.mxu0 0
        %3162 = vmatpush1.bf16.msra.mxu0 0
        %3163 = vmatprep.subr.bf16.mxu0 0
        %3164 = vmatpush1.bf16.msra.mxu0 0
        %3165 = vmatprep.subr.bf16.mxu0 0
        %3166 = vmatpush1.bf16.msra.mxu0 0
        %3167 = vmatprep.subr.bf16.mxu0 0
        %3168 = vmatpush1.bf16.msra.mxu0 0
        %3169 = vmatprep.subr.bf16.mxu0 0
        %3170 = vmatpush1.bf16.msra.mxu0 0
        %3171 = vmatprep.subr.bf16.mxu0 0
        %3172 = vmatpush1.bf16.msra.mxu0 0
        %3173 = vmatprep.subr.bf16.mxu0 0
        %3174 = vmatpush1.bf16.msra.mxu0 0
        %3175 = vmatprep.subr.bf16.mxu0 0
        %3176 = vmatpush1.bf16.msra.mxu0 0
        %3177 = vmatprep.subr.bf16.mxu0 0
        %3178 = vmatpush1.bf16.msra.mxu0 0
        %3179 = vmatprep.subr.bf16.mxu0 0
        %3180 = vmatpush1.bf16.msra.mxu0 0
        %3181 = vmatprep.subr.bf16.mxu0 0
        %3182 = vmatpush1.bf16.msra.mxu0 0
        %3183 = vmatprep.subr.bf16.mxu0 0
        %3184 = vmatpush1.bf16.msra.mxu0 0
        %3185 = vmatprep.mubr.bf16.mxu0 0
        %3186 = vmatmul.mubr.bf16.gmra.mrb[0].mxu0 %v1311
        %v3187 = vpop.f32.mrb[0].mxu0
        %v3188 = vadd.f32 0.0, %v3187
        %v3189 = vpop.f32.mrb[0].mxu0
        %v3190 = vpop.f32.mrb[0].mxu0
        %v3191 = vpop.f32.mrb[0].mxu0
        %3192 = vdwg.mxu0
        %v3193 = vpack.c.bf16 %v3148, %v3148
        %v3194 = vpack.c.bf16 %v3188, %v3188
        %v3196 = vsel %vm528, %v3194, 0
        %3198 = vmatprep.subr.bf16.mxu0 0
        %3199 = vmatpush1.bf16.msra.mxu0 %v1363
        %3200 = vmatprep.subr.bf16.mxu0 0
        %3201 = vmatpush1.bf16.msra.mxu0 %v1364
        %3202 = vmatprep.subr.bf16.mxu0 0
        %3203 = vmatpush1.bf16.msra.mxu0 0
        %3204 = vmatprep.subr.bf16.mxu0 0
        %3205 = vmatpush1.bf16.msra.mxu0 0
        %3206 = vmatprep.subr.bf16.mxu0 0
        %3207 = vmatpush1.bf16.msra.mxu0 0
        %3208 = vmatprep.subr.bf16.mxu0 0
        %3209 = vmatpush1.bf16.msra.mxu0 0
        %3210 = vmatprep.subr.bf16.mxu0 0
        %3211 = vmatpush1.bf16.msra.mxu0 0
        %3212 = vmatprep.subr.bf16.mxu0 0
        %3213 = vmatpush1.bf16.msra.mxu0 0
        %3214 = vmatprep.subr.bf16.mxu0 0
        %3215 = vmatpush1.bf16.msra.mxu0 0
        %3216 = vmatprep.subr.bf16.mxu0 0
        %3217 = vmatpush1.bf16.msra.mxu0 0
        %3218 = vmatprep.subr.bf16.mxu0 0
        %3219 = vmatpush1.bf16.msra.mxu0 0
        %3220 = vmatprep.subr.bf16.mxu0 0
        %3221 = vmatpush1.bf16.msra.mxu0 0
        %3222 = vmatprep.subr.bf16.mxu0 0
        %3223 = vmatpush1.bf16.msra.mxu0 0
        %3224 = vmatprep.subr.bf16.mxu0 0
        %3225 = vmatpush1.bf16.msra.mxu0 0
        %3226 = vmatprep.subr.bf16.mxu0 0
        %3227 = vmatpush1.bf16.msra.mxu0 0
        %3228 = vmatprep.subr.bf16.mxu0 0
        %3229 = vmatpush1.bf16.msra.mxu0 0
        %3230 = vmatprep.mubr.bf16.mxu0 0
        %3231 = vmatmul.mubr.bf16.gmra.mrb[0].mxu0 %v3196
        %v3232 = vpop.f32.mrb[0].mxu0
        %v3233 = vadd.f32 0.0, %v3232
        %v3234 = vpop.f32.mrb[0].mxu0
        %v3235 = vpop.f32.mrb[0].mxu0
        %v3236 = vpop.f32.mrb[0].mxu0
        %3237 = vdwg.mxu0
        %v3239 = vsel %vm528, %v3193, 0
        %3241 = vmatprep.subr.bf16.mxu0 0
        %3242 = vmatpush1.bf16.msra.mxu0 %v1418
        %3243 = vmatprep.subr.bf16.mxu0 0
        %3244 = vmatpush1.bf16.msra.mxu0 %v1419
        %3245 = vmatprep.subr.bf16.mxu0 0
        %3246 = vmatpush1.bf16.msra.mxu0 0
        %3247 = vmatprep.subr.bf16.mxu0 0
        %3248 = vmatpush1.bf16.msra.mxu0 0
        %3249 = vmatprep.subr.bf16.mxu0 0
        %3250 = vmatpush1.bf16.msra.mxu0 0
        %3251 = vmatprep.subr.bf16.mxu0 0
        %3252 = vmatpush1.bf16.msra.mxu0 0
        %3253 = vmatprep.subr.bf16.mxu0 0
        %3254 = vmatpush1.bf16.msra.mxu0 0
        %3255 = vmatprep.subr.bf16.mxu0 0
        %3256 = vmatpush1.bf16.msra.mxu0 0
        %3257 = vmatprep.subr.bf16.mxu0 0
        %3258 = vmatpush1.bf16.msra.mxu0 0
        %3259 = vmatprep.subr.bf16.mxu0 0
        %3260 = vmatpush1.bf16.msra.mxu0 0
        %3261 = vmatprep.subr.bf16.mxu0 0
        %3262 = vmatpush1.bf16.msra.mxu0 0
        %3263 = vmatprep.subr.bf16.mxu0 0
        %3264 = vmatpush1.bf16.msra.mxu0 0
        %3265 = vmatprep.subr.bf16.mxu0 0
        %3266 = vmatpush1.bf16.msra.mxu0 0
        %3267 = vmatprep.subr.bf16.mxu0 0
        %3268 = vmatpush1.bf16.msra.mxu0 0
        %3269 = vmatprep.subr.bf16.mxu0 0
        %3270 = vmatpush1.bf16.msra.mxu0 0
        %3271 = vmatprep.subr.bf16.mxu0 0
        %3272 = vmatpush1.bf16.msra.mxu0 0
        %3273 = vmatprep.mubr.bf16.mxu0 0
        %3274 = vmatmul.mubr.bf16.gmra.mrb[0].mxu0 %v3239
        %v3275 = vpop.f32.mrb[0].mxu0
        %v3276 = vadd.f32 %v3233, %v3275
        %v3277 = vpop.f32.mrb[0].mxu0
        %v3278 = vpop.f32.mrb[0].mxu0
        %v3279 = vpop.f32.mrb[0].mxu0
        %3280 = vdwg.mxu0
        %v3281 = vadd.f32 %v3276, %v1466
        %v3282 = vsel %vm528, %v3281, 0.0
        %3283 = vadd.xlane.f32.xlu0 %v3282
        %v3284 = vpop.xlane.xlu0 %3283
        %v3285 = vrot.slane %v3284, 4
        %v3286 = vadd.f32 %v3284, %v3285
        %v3287 = vrot.slane %v3286, 2
        %v3288 = vadd.f32 %v3286, %v3287
        %v3289 = vrot.slane %v3288, 1
        %v3290 = vadd.f32 %v3288, %v3289
        %s3291 = vtos %v3290
        %v3292 = vstv %s3291
        %v3293 = vmul.f32 %v3292, %v1480
        %v3294 = vsub.f32 %v3281, %v3293
        %v3295 = vmul.f32 %v3294, %v3294
        %v3296 = vsel %vm528, %v3295, 0.0
        %3297 = vadd.xlane.f32.xlu0 %v3296
        %v3298 = vpop.xlane.xlu0 %3297
        %v3299 = vrot.slane %v3298, 4
        %v3300 = vadd.f32 %v3298, %v3299
        %v3301 = vrot.slane %v3300, 2
        %v3302 = vadd.f32 %v3300, %v3301
        %v3303 = vrot.slane %v3302, 1
        %v3304 = vadd.f32 %v3302, %v3303
        %s3305 = vtos %v3304
        %v3306 = vstv %s3305
        %v3307 = vmul.f32 %v3306, %v1480
        %v3308 = vadd.f32 %v3307, 1e-05
        %v3309 = vrsqrt.pop %v3308
        %v3310 = vmul.f32 %v506, %v3309
        %v3312 = vlaneseq
        %v3313 = vshrl.u32 %v3312, 7
        %v3314 = vsub.s32 0, %v3313
        %v3315 = vrot.slane %v3310, %v3314
        %3316 = vset.pattern.permute.xlu0 66
        %3317 = vperm.xlu0 %3316, %v3315
        %v3318 = vpop.permute.xlu0 %3317
        %v3320 = vmul.f32 %v3294, %v3318
        %v3321 = vadd.f32 %v2415, %v3320
        %s3322 = scalar_lea.vmem [#allocation7], 24
        %v3323 = vld [vmem:[%s3322] sm:$0x3f]
        %s3324 = scalar_lea.vmem %s6, 6
        %v3325 = vld [vmem:[%s3324] sm:$0x3]
        %s3326 = scalar_lea.vmem %s2, 48
        %v3327 = vld [vmem:[%s3326] sm:$0xf]
        %v3328 = vld [vmem:[%s3326 + $0x4] sm:$0xf]
        %v3329 = vld [vmem:[%s3326 + $0x8] sm:$0xf]
        %v3330 = vld [vmem:[%s3326 + $0xc] sm:$0xf]
        %s3331 = scalar_lea.vmem [#allocation2], 48
        %v3332 = vld [vmem:[%s3331] sm:$0xf]
        %v3333 = vld [vmem:[%s3331 + $0x4] sm:$0xf]
        %v3334 = vld [vmem:[%s3331 + $0x8] sm:$0xf]
        %v3335 = vld [vmem:[%s3331 + $0xc] sm:$0xf]
        %s3336 = scalar_lea.vmem [#allocation5], 192
        %v3337 = vld [vmem:[%s3336] sm:$0xf]
        %v3338 = vld [vmem:[%s3336 + $0x4] sm:$0xf]
        %v3339 = vld [vmem:[%s3336 + $0x8] sm:$0xf]
        %v3340 = vld [vmem:[%s3336 + $0xc] sm:$0xf]
        %v3341 = vld [vmem:[%s3336 + $0x10] sm:$0xf]
        %v3342 = vld [vmem:[%s3336 + $0x14] sm:$0xf]
        %v3343 = vld [vmem:[%s3336 + $0x18] sm:$0xf]
        %v3344 = vld [vmem:[%s3336 + $0x1c] sm:$0xf]
        %v3345 = vld [vmem:[%s3336 + $0x20] sm:$0xf]
        %v3346 = vld [vmem:[%s3336 + $0x24] sm:$0xf]
        %v3347 = vld [vmem:[%s3336 + $0x28] sm:$0xf]
        %v3348 = vld [vmem:[%s3336 + $0x2c] sm:$0xf]
        %v3349 = vld [vmem:[%s3336 + $0x30] sm:$0xf]
        %v3350 = vld [vmem:[%s3336 + $0x34] sm:$0xf]
        %v3351 = vld [vmem:[%s3336 + $0x38] sm:$0xf]
        %v3352 = vld [vmem:[%s3336 + $0x3c] sm:$0xf]
        %v3353 = vsel %vm528, %v3110, 0.0
        %3354 = vadd.xlane.f32.xlu0 %v3353
        %v3355 = vpop.xlane.xlu0 %3354
        %v3356 = vsel %vm528, %v3111, 0.0
        %3357 = vadd.xlane.f32.xlu0 %v3356
        %v3358 = vpop.xlane.xlu0 %3357
        %v3359 = vmul.f32 %v3355, %v605
        %v3360 = vmul.f32 %v3358, %v605
        %v3361 = vsub.f32 %v3110, %v3359
        %v3362 = vsub.f32 %v3111, %v3360
        %v3363 = vmul.f32 %v3361, %v3361
        %v3364 = vmul.f32 %v3362, %v3362
        %v3365 = vsel %vm528, %v3363, 0.0
        %3366 = vadd.xlane.f32.xlu0 %v3365
        %v3367 = vpop.xlane.xlu0 %3366
        %v3368 = vsel %vm528, %v3364, 0.0
        %3369 = vadd.xlane.f32.xlu0 %v3368
        %v3370 = vpop.xlane.xlu0 %3369
        %v3371 = vmul.f32 %v3367, %v605
        %v3372 = vmul.f32 %v3370, %v605
        %v3373 = vadd.f32 %v3371, 1e-05
        %v3374 = vadd.f32 %v3372, 1e-05
        %v3375 = vrsqrt.pop %v3373
        %v3376 = vrsqrt.pop %v3374
        %v3377 = vmul.f32 %v3361, %v3375
        %v3378 = vmul.f32 %v3362, %v3376
        %v3379 = vlaneseq
        %v3380 = vshrl.u32 %v3379, 7
        %v3381 = vsub.s32 0, %v3380
        %v3382 = vrot.slane %v3323, %v3381
        %v3383 = vmul.f32 %v3377, %v3382
        %v3384 = vmul.f32 %v3378, %v3382
        %v3385 = vlaneseq
        %v3386 = vshrl.u32 %v3385, 7
        %v3387 = vsub.s32 1, %v3386
        %v3388 = vrot.slane %v3323, %v3387
        %v3389 = vadd.f32 %v3383, %v3388
        %v3390 = vadd.f32 %v3384, %v3388
        %v3391 = vpack.c.bf16 %v3390, %v3389
        %v3392 = vlaneseq
        %v3393 = vshrl.u32 %v3392, 7
        %v3394 = vsub.s32 0, %v3393
        %v3395 = vrot.slane %v3325, %v3394
        %v3400 = vunpack.c.l.b16 %v3327
        %v3401 = vunpack.c.l.b16 %v3328
        %v3402 = vunpack.c.l.b16 %v3329
        %v3403 = vunpack.c.l.b16 %v3330
        %v3404 = vpack.c.b16 %v3401, %v3400
        %v3405 = vpack.c.b16 %v3403, %v3402
        %v3409 = vsel %vm528, %v3391, 0
        %3411 = vmatprep.subr.bf16.mxu0 0
        %3412 = vmatpush1.bf16.msra.mxu0 %v3404
        %3413 = vmatprep.subr.bf16.mxu0 0
        %3414 = vmatpush1.bf16.msra.mxu0 %v3405
        %3415 = vmatprep.subr.bf16.mxu0 0
        %3416 = vmatpush1.bf16.msra.mxu0 0
        %3417 = vmatprep.subr.bf16.mxu0 0
        %3418 = vmatpush1.bf16.msra.mxu0 0
        %3419 = vmatprep.subr.bf16.mxu0 0
        %3420 = vmatpush1.bf16.msra.mxu0 0
        %3421 = vmatprep.subr.bf16.mxu0 0
        %3422 = vmatpush1.bf16.msra.mxu0 0
        %3423 = vmatprep.subr.bf16.mxu0 0
        %3424 = vmatpush1.bf16.msra.mxu0 0
        %3425 = vmatprep.subr.bf16.mxu0 0
        %3426 = vmatpush1.bf16.msra.mxu0 0
        %3427 = vmatprep.subr.bf16.mxu0 0
        %3428 = vmatpush1.bf16.msra.mxu0 0
        %3429 = vmatprep.subr.bf16.mxu0 0
        %3430 = vmatpush1.bf16.msra.mxu0 0
        %3431 = vmatprep.subr.bf16.mxu0 0
        %3432 = vmatpush1.bf16.msra.mxu0 0
        %3433 = vmatprep.subr.bf16.mxu0 0
        %3434 = vmatpush1.bf16.msra.mxu0 0
        %3435 = vmatprep.subr.bf16.mxu0 0
        %3436 = vmatpush1.bf16.msra.mxu0 0
        %3437 = vmatprep.subr.bf16.mxu0 0
        %3438 = vmatpush1.bf16.msra.mxu0 0
        %3439 = vmatprep.subr.bf16.mxu0 0
        %3440 = vmatpush1.bf16.msra.mxu0 0
        %3441 = vmatprep.subr.bf16.mxu0 0
        %3442 = vmatpush1.bf16.msra.mxu0 0
        %3443 = vmatprep.mubr.bf16.mxu0 0
        %3444 = vmatmul.mubr.bf16.gmra.mrb[0].mxu0 %v3409
        %v3445 = vpop.f32.mrb[0].mxu0
        %v3446 = vadd.f32 %v3395, %v3445
        %v3447 = vpop.f32.mrb[0].mxu0
        %v3448 = vpop.f32.mrb[0].mxu0
        %v3449 = vadd.f32 %v3395, %v3448
        %v3450 = vpop.f32.mrb[0].mxu0
        %3451 = vdwg.mxu0
        %v3452 = vmul.f32 %v3446, %v468
        %v3453 = vmul.f32 %v3449, %v468
        %v3454 = vmul.f32 %v3446, %v473
        %v3455 = vmul.f32 %v3449, %v473
        %v3456 = vmul.f32 %v3446, %v478
        %v3457 = vmul.f32 %v3449, %v478
        %v3458 = vmul.f32 %v3446, %v483
        %v3459 = vmul.f32 %v3449, %v483
        %v3460 = vpack.c.bf16 %v3453, %v3452
        %v3461 = vpack.c.bf16 %v3455, %v3454
        %v3462 = vpack.c.bf16 %v3457, %v3456
        %v3463 = vpack.c.bf16 %v3459, %v3458
        %v3464 = vpack.c.bf16 %v3449, %v3446
        %3466 = vrot.lane.b32.xlu0 %v3464, 96
        %v3467 = vpop.permute.xlu0 %3466
        %v3469 = vsel %vm528, %v3460, 0
        %v3472 = vsel %vm528, %v3461, 0
        %v3475 = vsel %vm528, %v3462, 0
        %v3478 = vsel %vm528, %v3463, 0
        %v3481 = vsel %vm528, %v3467, 0
        %3483 = vmatprep.subr.bf16.mxu0 0
        %3484 = vmatpush1.bf16.xpose.msra.mxu0 %v3481
        %3485 = vmatprep.subr.bf16.mxu0 0
        %3486 = vmatpush1.bf16.xpose.msra.mxu0 0
        %3487 = vmatprep.subr.bf16.mxu0 0
        %3488 = vmatpush1.bf16.xpose.msra.mxu0 0
        %3489 = vmatprep.subr.bf16.mxu0 0
        %3490 = vmatpush1.bf16.xpose.msra.mxu0 0
        %3491 = vmatprep.subr.bf16.mxu0 0
        %3492 = vmatpush1.bf16.xpose.msra.mxu0 0
        %3493 = vmatprep.subr.bf16.mxu0 0
        %3494 = vmatpush1.bf16.xpose.msra.mxu0 0
        %3495 = vmatprep.subr.bf16.mxu0 0
        %3496 = vmatpush1.bf16.xpose.msra.mxu0 0
        %3497 = vmatprep.subr.bf16.mxu0 0
        %3498 = vmatpush1.bf16.xpose.msra.mxu0 0
        %3499 = vmatprep.subr.bf16.mxu0 0
        %3500 = vmatpush1.bf16.xpose.msra.mxu0 0
        %3501 = vmatprep.subr.bf16.mxu0 0
        %3502 = vmatpush1.bf16.xpose.msra.mxu0 0
        %3503 = vmatprep.subr.bf16.mxu0 0
        %3504 = vmatpush1.bf16.xpose.msra.mxu0 0
        %3505 = vmatprep.subr.bf16.mxu0 0
        %3506 = vmatpush1.bf16.xpose.msra.mxu0 0
        %3507 = vmatprep.subr.bf16.mxu0 0
        %3508 = vmatpush1.bf16.xpose.msra.mxu0 0
        %3509 = vmatprep.subr.bf16.mxu0 0
        %3510 = vmatpush1.bf16.xpose.msra.mxu0 0
        %3511 = vmatprep.subr.bf16.mxu0 0
        %3512 = vmatpush1.bf16.xpose.msra.mxu0 0
        %3513 = vmatprep.subr.bf16.mxu0 0
        %3514 = vmatpush1.bf16.xpose.msra.mxu0 0
        %3515 = vmatprep.mubr.bf16.mxu0 0
        %3516 = vmatmul.mubr.bf16.gmra.mrb[0].mxu0 %v3469
        %v3517 = vpop.f32.mrb[0].mxu0
        %v3518 = vadd.f32 0.0, %v3517
        %v3519 = vpop.f32.mrb[0].mxu0
        %v3520 = vpop.f32.mrb[0].mxu0
        %v3521 = vadd.f32 0.0, %v3520
        %v3522 = vpop.f32.mrb[0].mxu0
        %3523 = vmatprep.mubr.bf16.mxu0 0
        %3524 = vmatmul.mubr.bf16.gmra.mrb[0].mxu0 %v3472
        %v3525 = vpop.f32.mrb[0].mxu0
        %v3526 = vadd.f32 0.0, %v3525
        %v3527 = vpop.f32.mrb[0].mxu0
        %v3528 = vpop.f32.mrb[0].mxu0
        %v3529 = vadd.f32 0.0, %v3528
        %v3530 = vpop.f32.mrb[0].mxu0
        %3531 = vmatprep.mubr.bf16.mxu0 0
        %3532 = vmatmul.mubr.bf16.gmra.mrb[0].mxu0 %v3475
        %v3533 = vpop.f32.mrb[0].mxu0
        %v3534 = vadd.f32 0.0, %v3533
        %v3535 = vpop.f32.mrb[0].mxu0
        %v3536 = vpop.f32.mrb[0].mxu0
        %v3537 = vadd.f32 0.0, %v3536
        %v3538 = vpop.f32.mrb[0].mxu0
        %3539 = vmatprep.mubr.bf16.mxu0 0
        %3540 = vmatmul.mubr.bf16.gmra.mrb[0].mxu0 %v3478
        %v3541 = vpop.f32.mrb[0].mxu0
        %v3542 = vadd.f32 0.0, %v3541
        %v3543 = vpop.f32.mrb[0].mxu0
        %v3544 = vpop.f32.mrb[0].mxu0
        %v3545 = vadd.f32 0.0, %v3544
        %v3546 = vpop.f32.mrb[0].mxu0
        %3547 = vdwg.mxu0
        %v3548 = vsel %vm456, %v3518, -1e+30
        %v3549 = vsel %vm457, %v3521, -1e+30
        %v3550 = vsel %vm458, %v3526, -1e+30
        %v3551 = vsel %vm459, %v3529, -1e+30
        %v3552 = vsel %vm460, %v3534, -1e+30
        %v3553 = vsel %vm461, %v3537, -1e+30
        %v3554 = vsel %vm462, %v3542, -1e+30
        %v3555 = vsel %vm463, %v3545, -1e+30
        %v3556 = vsel %vm803, %v3548, -inf
        %3557 = vmax.xlane.f32.xlu0 %v3556
        %v3558 = vpop.xlane.xlu0 %3557
        %v3559 = vsel %vm803, %v3549, -inf
        %3560 = vmax.xlane.f32.xlu0 %v3559
        %v3561 = vpop.xlane.xlu0 %3560
        %v3562 = vsel %vm803, %v3550, -inf
        %3563 = vmax.xlane.f32.xlu0 %v3562
        %v3564 = vpop.xlane.xlu0 %3563
        %v3565 = vsel %vm803, %v3551, -inf
        %3566 = vmax.xlane.f32.xlu0 %v3565
        %v3567 = vpop.xlane.xlu0 %3566
        %v3568 = vsel %vm803, %v3552, -inf
        %3569 = vmax.xlane.f32.xlu0 %v3568
        %v3570 = vpop.xlane.xlu0 %3569
        %v3571 = vsel %vm803, %v3553, -inf
        %3572 = vmax.xlane.f32.xlu0 %v3571
        %v3573 = vpop.xlane.xlu0 %3572
        %v3574 = vsel %vm803, %v3554, -inf
        %3575 = vmax.xlane.f32.xlu0 %v3574
        %v3576 = vpop.xlane.xlu0 %3575
        %v3577 = vsel %vm803, %v3555, -inf
        %3578 = vmax.xlane.f32.xlu0 %v3577
        %v3579 = vpop.xlane.xlu0 %3578
        %v3580 = vsub.f32 %v3548, %v3558
        %v3581 = vsub.f32 %v3549, %v3561
        %v3582 = vsub.f32 %v3550, %v3564
        %v3583 = vsub.f32 %v3551, %v3567
        %v3584 = vsub.f32 %v3552, %v3570
        %v3585 = vsub.f32 %v3553, %v3573
        %v3586 = vsub.f32 %v3554, %v3576
        %v3587 = vsub.f32 %v3555, %v3579
        %v3588 = vmul.f32 %v3580, 1.442695
        %v3589 = vpow.pop %v3588
        %v3590 = vmul.f32 %v3581, 1.442695
        %v3591 = vpow.pop %v3590
        %v3592 = vmul.f32 %v3582, 1.442695
        %v3593 = vpow.pop %v3592
        %v3594 = vmul.f32 %v3583, 1.442695
        %v3595 = vpow.pop %v3594
        %v3596 = vmul.f32 %v3584, 1.442695
        %v3597 = vpow.pop %v3596
        %v3598 = vmul.f32 %v3585, 1.442695
        %v3599 = vpow.pop %v3598
        %v3600 = vmul.f32 %v3586, 1.442695
        %v3601 = vpow.pop %v3600
        %v3602 = vmul.f32 %v3587, 1.442695
        %v3603 = vpow.pop %v3602
        %v3604 = vsel %vm803, %v3589, 0.0
        %3605 = vadd.xlane.f32.xlu0 %v3604
        %v3606 = vpop.xlane.xlu0 %3605
        %v3607 = vsel %vm803, %v3591, 0.0
        %3608 = vadd.xlane.f32.xlu0 %v3607
        %v3609 = vpop.xlane.xlu0 %3608
        %v3610 = vsel %vm803, %v3593, 0.0
        %3611 = vadd.xlane.f32.xlu0 %v3610
        %v3612 = vpop.xlane.xlu0 %3611
        %v3613 = vsel %vm803, %v3595, 0.0
        %3614 = vadd.xlane.f32.xlu0 %v3613
        %v3615 = vpop.xlane.xlu0 %3614
        %v3616 = vsel %vm803, %v3597, 0.0
        %3617 = vadd.xlane.f32.xlu0 %v3616
        %v3618 = vpop.xlane.xlu0 %3617
        %v3619 = vsel %vm803, %v3599, 0.0
        %3620 = vadd.xlane.f32.xlu0 %v3619
        %v3621 = vpop.xlane.xlu0 %3620
        %v3622 = vsel %vm803, %v3601, 0.0
        %3623 = vadd.xlane.f32.xlu0 %v3622
        %v3624 = vpop.xlane.xlu0 %3623
        %v3625 = vsel %vm803, %v3603, 0.0
        %3626 = vadd.xlane.f32.xlu0 %v3625
        %v3627 = vpop.xlane.xlu0 %3626
        %v3628 = vrcp.pop %v3606
        %v3629 = vrcp.pop %v3609
        %v3630 = vrcp.pop %v3612
        %v3631 = vrcp.pop %v3615
        %v3632 = vrcp.pop %v3618
        %v3633 = vrcp.pop %v3621
        %v3634 = vrcp.pop %v3624
        %v3635 = vrcp.pop %v3627
        %v3636 = vmul.f32 %v3589, %v3628
        %v3637 = vmul.f32 %v3591, %v3629
        %v3638 = vmul.f32 %v3593, %v3630
        %v3639 = vmul.f32 %v3595, %v3631
        %v3640 = vmul.f32 %v3597, %v3632
        %v3641 = vmul.f32 %v3599, %v3633
        %v3642 = vmul.f32 %v3601, %v3634
        %v3643 = vmul.f32 %v3603, %v3635
        %v3644 = vpack.c.bf16 %v3637, %v3636
        %v3645 = vpack.c.bf16 %v3639, %v3638
        %v3646 = vpack.c.bf16 %v3641, %v3640
        %v3647 = vpack.c.bf16 %v3643, %v3642
        %3648 = vrot.lane.b32.xlu0 %v3464, 64
        %v3649 = vpop.permute.xlu0 %3648
        %v3652 = vsel %vm803, %v3644, 0
        %v3655 = vsel %vm803, %v3645, 0
        %v3658 = vsel %vm803, %v3646, 0
        %v3661 = vsel %vm803, %v3647, 0
        %3663 = vmatprep.subr.bf16.mxu0 0
        %3664 = vmatpush1.bf16.msra.mxu0 %v3649
        %3665 = vmatprep.subr.bf16.mxu0 0
        %3666 = vmatpush1.bf16.msra.mxu0 0
        %3667 = vmatprep.subr.bf16.mxu0 0
        %3668 = vmatpush1.bf16.msra.mxu0 0
        %3669 = vmatprep.subr.bf16.mxu0 0
        %3670 = vmatpush1.bf16.msra.mxu0 0
        %3671 = vmatprep.subr.bf16.mxu0 0
        %3672 = vmatpush1.bf16.msra.mxu0 0
        %3673 = vmatprep.subr.bf16.mxu0 0
        %3674 = vmatpush1.bf16.msra.mxu0 0
        %3675 = vmatprep.subr.bf16.mxu0 0
        %3676 = vmatpush1.bf16.msra.mxu0 0
        %3677 = vmatprep.subr.bf16.mxu0 0
        %3678 = vmatpush1.bf16.msra.mxu0 0
        %3679 = vmatprep.subr.bf16.mxu0 0
        %3680 = vmatpush1.bf16.msra.mxu0 0
        %3681 = vmatprep.subr.bf16.mxu0 0
        %3682 = vmatpush1.bf16.msra.mxu0 0
        %3683 = vmatprep.subr.bf16.mxu0 0
        %3684 = vmatpush1.bf16.msra.mxu0 0
        %3685 = vmatprep.subr.bf16.mxu0 0
        %3686 = vmatpush1.bf16.msra.mxu0 0
        %3687 = vmatprep.subr.bf16.mxu0 0
        %3688 = vmatpush1.bf16.msra.mxu0 0
        %3689 = vmatprep.subr.bf16.mxu0 0
        %3690 = vmatpush1.bf16.msra.mxu0 0
        %3691 = vmatprep.subr.bf16.mxu0 0
        %3692 = vmatpush1.bf16.msra.mxu0 0
        %3693 = vmatprep.subr.bf16.mxu0 0
        %3694 = vmatpush1.bf16.msra.mxu0 0
        %3695 = vmatprep.mubr.bf16.mxu0 0
        %3696 = vmatmul.mubr.bf16.gmra.mrb[0].mxu0 %v3652
        %v3697 = vpop.f32.mrb[0].mxu0
        %v3698 = vadd.f32 0.0, %v3697
        %v3699 = vpop.f32.mrb[0].mxu0
        %v3700 = vpop.f32.mrb[0].mxu0
        %v3701 = vadd.f32 0.0, %v3700
        %v3702 = vpop.f32.mrb[0].mxu0
        %3703 = vmatprep.mubr.bf16.mxu0 0
        %3704 = vmatmul.mubr.bf16.gmra.mrb[0].mxu0 %v3655
        %v3705 = vpop.f32.mrb[0].mxu0
        %v3706 = vadd.f32 0.0, %v3705
        %v3707 = vpop.f32.mrb[0].mxu0
        %v3708 = vpop.f32.mrb[0].mxu0
        %v3709 = vadd.f32 0.0, %v3708
        %v3710 = vpop.f32.mrb[0].mxu0
        %3711 = vmatprep.mubr.bf16.mxu0 0
        %3712 = vmatmul.mubr.bf16.gmra.mrb[0].mxu0 %v3658
        %v3713 = vpop.f32.mrb[0].mxu0
        %v3714 = vadd.f32 0.0, %v3713
        %v3715 = vpop.f32.mrb[0].mxu0
        %v3716 = vpop.f32.mrb[0].mxu0
        %v3717 = vadd.f32 0.0, %v3716
        %v3718 = vpop.f32.mrb[0].mxu0
        %3719 = vmatprep.mubr.bf16.mxu0 0
        %3720 = vmatmul.mubr.bf16.gmra.mrb[0].mxu0 %v3661
        %v3721 = vpop.f32.mrb[0].mxu0
        %v3722 = vadd.f32 0.0, %v3721
        %v3723 = vpop.f32.mrb[0].mxu0
        %v3724 = vpop.f32.mrb[0].mxu0
        %v3725 = vadd.f32 0.0, %v3724
        %v3726 = vpop.f32.mrb[0].mxu0
        %3727 = vdwg.mxu0
        %v3728 = vmul.f32 %v3698, %v468
        %v3729 = vmul.f32 %v3701, %v468
        %v3730 = vadd.f32 %v3728, 0.0
        %v3731 = vadd.f32 %v3729, 0.0
        %v3732 = vmul.f32 %v3706, %v473
        %v3733 = vmul.f32 %v3709, %v473
        %v3734 = vadd.f32 %v3730, %v3732
        %v3735 = vadd.f32 %v3731, %v3733
        %v3736 = vmul.f32 %v3714, %v478
        %v3737 = vmul.f32 %v3717, %v478
        %v3738 = vadd.f32 %v3734, %v3736
        %v3739 = vadd.f32 %v3735, %v3737
        %v3740 = vmul.f32 %v3722, %v483
        %v3741 = vmul.f32 %v3725, %v483
        %v3742 = vadd.f32 %v3738, %v3740
        %v3743 = vadd.f32 %v3739, %v3741
        %v3744 = vpack.c.bf16 %v3743, %v3742
        %3745 = vrot.lane.b32.xlu0 %v3404, 32
        %v3746 = vpop.permute.xlu0 %3745
        %3747 = vrot.lane.b32.xlu0 %v3405, 32
        %v3748 = vpop.permute.xlu0 %3747
        %v3752 = vsel %vm528, %v3744, 0
        %3754 = vmatprep.subr.bf16.mxu0 0
        %3755 = vmatpush1.bf16.msra.mxu0 %v3746
        %3756 = vmatprep.subr.bf16.mxu0 0
        %3757 = vmatpush1.bf16.msra.mxu0 %v3748
        %3758 = vmatprep.subr.bf16.mxu0 0
        %3759 = vmatpush1.bf16.msra.mxu0 0
        %3760 = vmatprep.subr.bf16.mxu0 0
        %3761 = vmatpush1.bf16.msra.mxu0 0
        %3762 = vmatprep.subr.bf16.mxu0 0
        %3763 = vmatpush1.bf16.msra.mxu0 0
        %3764 = vmatprep.subr.bf16.mxu0 0
        %3765 = vmatpush1.bf16.msra.mxu0 0
        %3766 = vmatprep.subr.bf16.mxu0 0
        %3767 = vmatpush1.bf16.msra.mxu0 0
        %3768 = vmatprep.subr.bf16.mxu0 0
        %3769 = vmatpush1.bf16.msra.mxu0 0
        %3770 = vmatprep.subr.bf16.mxu0 0
        %3771 = vmatpush1.bf16.msra.mxu0 0
        %3772 = vmatprep.subr.bf16.mxu0 0
        %3773 = vmatpush1.bf16.msra.mxu0 0
        %3774 = vmatprep.subr.bf16.mxu0 0
        %3775 = vmatpush1.bf16.msra.mxu0 0
        %3776 = vmatprep.subr.bf16.mxu0 0
        %3777 = vmatpush1.bf16.msra.mxu0 0
        %3778 = vmatprep.subr.bf16.mxu0 0
        %3779 = vmatpush1.bf16.msra.mxu0 0
        %3780 = vmatprep.subr.bf16.mxu0 0
        %3781 = vmatpush1.bf16.msra.mxu0 0
        %3782 = vmatprep.subr.bf16.mxu0 0
        %3783 = vmatpush1.bf16.msra.mxu0 0
        %3784 = vmatprep.subr.bf16.mxu0 0
        %3785 = vmatpush1.bf16.msra.mxu0 0
        %3786 = vmatprep.mubr.bf16.mxu0 0
        %3787 = vmatmul.mubr.bf16.gmra.mrb[0].mxu0 %v3752
        %v3788 = vpop.f32.mrb[0].mxu0
        %v3789 = vadd.f32 0.0, %v3788
        %v3790 = vpop.f32.mrb[0].mxu0
        %v3791 = vpop.f32.mrb[0].mxu0
        %v3792 = vadd.f32 0.0, %v3791
        %v3793 = vpop.f32.mrb[0].mxu0
        %3794 = vdwg.mxu0
        %v3795 = vadd.f32 %v3110, %v3789
        %v3796 = vadd.f32 %v3111, %v3792
        %v3797 = vlaneseq
        %v3798 = vshrl.u32 %v3797, 7
        %v3799 = vsub.s32 4, %v3798
        %v3800 = vrot.slane %v3323, %v3799
        %v3801 = vadd.f32 %v3795, %v3800
        %v3802 = vadd.f32 %v3796, %v3800
        %v3803 = vsel %vm528, %v3801, 0.0
        %3804 = vadd.xlane.f32.xlu0 %v3803
        %v3805 = vpop.xlane.xlu0 %3804
        %v3806 = vsel %vm528, %v3802, 0.0
        %3807 = vadd.xlane.f32.xlu0 %v3806
        %v3808 = vpop.xlane.xlu0 %3807
        %v3809 = vmul.f32 %v3805, %v605
        %v3810 = vmul.f32 %v3808, %v605
        %v3811 = vsub.f32 %v3801, %v3809
        %v3812 = vsub.f32 %v3802, %v3810
        %v3813 = vmul.f32 %v3811, %v3811
        %v3814 = vmul.f32 %v3812, %v3812
        %v3815 = vsel %vm528, %v3813, 0.0
        %3816 = vadd.xlane.f32.xlu0 %v3815
        %v3817 = vpop.xlane.xlu0 %3816
        %v3818 = vsel %vm528, %v3814, 0.0
        %3819 = vadd.xlane.f32.xlu0 %v3818
        %v3820 = vpop.xlane.xlu0 %3819
        %v3821 = vmul.f32 %v3817, %v605
        %v3822 = vmul.f32 %v3820, %v605
        %v3823 = vadd.f32 %v3821, 1e-05
        %v3824 = vadd.f32 %v3822, 1e-05
        %v3825 = vrsqrt.pop %v3823
        %v3826 = vrsqrt.pop %v3824
        %v3827 = vmul.f32 %v3811, %v3825
        %v3828 = vmul.f32 %v3812, %v3826
        %v3829 = vlaneseq
        %v3830 = vshrl.u32 %v3829, 7
        %v3831 = vsub.s32 2, %v3830
        %v3832 = vrot.slane %v3323, %v3831
        %v3833 = vmul.f32 %v3827, %v3832
        %v3834 = vmul.f32 %v3828, %v3832
        %v3835 = vlaneseq
        %v3836 = vshrl.u32 %v3835, 7
        %v3837 = vsub.s32 3, %v3836
        %v3838 = vrot.slane %v3323, %v3837
        %v3839 = vadd.f32 %v3833, %v3838
        %v3840 = vadd.f32 %v3834, %v3838
        %v3841 = vpack.c.bf16 %v3840, %v3839
        %v3842 = vlaneseq
        %v3843 = vshrl.u32 %v3842, 7
        %v3844 = vsub.s32 1, %v3843
        %v3845 = vrot.slane %v3325, %v3844
        %v3850 = vunpack.c.l.b16 %v3332
        %v3851 = vunpack.c.l.b16 %v3333
        %v3852 = vunpack.c.l.b16 %v3334
        %v3853 = vunpack.c.l.b16 %v3335
        %v3854 = vpack.c.b16 %v3851, %v3850
        %v3855 = vpack.c.b16 %v3853, %v3852
        %v3859 = vsel %vm528, %v3841, 0
        %3861 = vmatprep.subr.bf16.mxu0 0
        %3862 = vmatpush1.bf16.msra.mxu0 %v3854
        %3863 = vmatprep.subr.bf16.mxu0 0
        %3864 = vmatpush1.bf16.msra.mxu0 %v3855
        %3865 = vmatprep.subr.bf16.mxu0 0
        %3866 = vmatpush1.bf16.msra.mxu0 0
        %3867 = vmatprep.subr.bf16.mxu0 0
        %3868 = vmatpush1.bf16.msra.mxu0 0
        %3869 = vmatprep.subr.bf16.mxu0 0
        %3870 = vmatpush1.bf16.msra.mxu0 0
        %3871 = vmatprep.subr.bf16.mxu0 0
        %3872 = vmatpush1.bf16.msra.mxu0 0
        %3873 = vmatprep.subr.bf16.mxu0 0
        %3874 = vmatpush1.bf16.msra.mxu0 0
        %3875 = vmatprep.subr.bf16.mxu0 0
        %3876 = vmatpush1.bf16.msra.mxu0 0
        %3877 = vmatprep.subr.bf16.mxu0 0
        %3878 = vmatpush1.bf16.msra.mxu0 0
        %3879 = vmatprep.subr.bf16.mxu0 0
        %3880 = vmatpush1.bf16.msra.mxu0 0
        %3881 = vmatprep.subr.bf16.mxu0 0
        %3882 = vmatpush1.bf16.msra.mxu0 0
        %3883 = vmatprep.subr.bf16.mxu0 0
        %3884 = vmatpush1.bf16.msra.mxu0 0
        %3885 = vmatprep.subr.bf16.mxu0 0
        %3886 = vmatpush1.bf16.msra.mxu0 0
        %3887 = vmatprep.subr.bf16.mxu0 0
        %3888 = vmatpush1.bf16.msra.mxu0 0
        %3889 = vmatprep.subr.bf16.mxu0 0
        %3890 = vmatpush1.bf16.msra.mxu0 0
        %3891 = vmatprep.subr.bf16.mxu0 0
        %3892 = vmatpush1.bf16.msra.mxu0 0
        %3893 = vmatprep.mubr.bf16.mxu0 0
        %3894 = vmatmul.mubr.bf16.gmra.mrb[0].mxu0 %v3859
        %v3895 = vpop.f32.mrb[0].mxu0
        %v3896 = vadd.f32 %v3845, %v3895
        %v3897 = vpop.f32.mrb[0].mxu0
        %v3898 = vpop.f32.mrb[0].mxu0
        %v3899 = vadd.f32 %v3845, %v3898
        %v3900 = vpop.f32.mrb[0].mxu0
        %3901 = vdwg.mxu0
        %v3902 = vmul.f32 %v3896, %v3896
        %v3903 = vmul.f32 %v3899, %v3899
        %v3904 = vmul.f32 %v3896, %v3902
        %v3905 = vmul.f32 %v3899, %v3903
        %v3906 = vmul.f32 %v3904, 0.044715
        %v3907 = vmul.f32 %v3905, 0.044715
        %v3908 = vadd.f32 %v3896, %v3906
        %v3909 = vadd.f32 %v3899, %v3907
        %v3910 = vmul.f32 %v3908, 0.7978846
        %v3911 = vmul.f32 %v3909, 0.7978846
        %v3912 = vtanh.pop %v3910
        %v3913 = vtanh.pop %v3911
        %v3914 = vadd.f32 %v3912, 1.0
        %v3915 = vadd.f32 %v3913, 1.0
        %v3916 = vmul.f32 %v3914, 0.5
        %v3917 = vmul.f32 %v3915, 0.5
        %v3918 = vmul.f32 %v3896, %v3916
        %v3919 = vmul.f32 %v3899, %v3917
        %v3920 = vpack.c.bf16 %v3919, %v3918
        %v3937 = vunpack.c.l.b16 %v3337
        %v3938 = vunpack.c.l.b16 %v3338
        %v3939 = vunpack.c.l.b16 %v3339
        %v3940 = vunpack.c.l.b16 %v3340
        %v3941 = vunpack.c.l.b16 %v3341
        %v3942 = vunpack.c.l.b16 %v3342
        %v3943 = vunpack.c.l.b16 %v3343
        %v3944 = vunpack.c.l.b16 %v3344
        %v3945 = vunpack.c.l.b16 %v3345
        %v3946 = vunpack.c.l.b16 %v3346
        %v3947 = vunpack.c.l.b16 %v3347
        %v3948 = vunpack.c.l.b16 %v3348
        %v3949 = vunpack.c.l.b16 %v3349
        %v3950 = vunpack.c.l.b16 %v3350
        %v3951 = vunpack.c.l.b16 %v3351
        %v3952 = vunpack.c.l.b16 %v3352
        %v3953 = vpack.c.b16 %v3938, %v3937
        %v3954 = vpack.c.b16 %v3940, %v3939
        %v3955 = vpack.c.b16 %v3942, %v3941
        %v3956 = vpack.c.b16 %v3944, %v3943
        %v3957 = vpack.c.b16 %v3946, %v3945
        %v3958 = vpack.c.b16 %v3948, %v3947
        %v3959 = vpack.c.b16 %v3950, %v3949
        %v3960 = vpack.c.b16 %v3952, %v3951
        %3969 = vmatprep.subr.bf16.mxu0 0
        %3970 = vmatpush1.bf16.msra.mxu0 %v3953
        %3971 = vmatprep.subr.bf16.mxu0 0
        %3972 = vmatpush1.bf16.msra.mxu0 %v3954
        %3973 = vmatprep.subr.bf16.mxu0 0
        %3974 = vmatpush1.bf16.msra.mxu0 %v3955
        %3975 = vmatprep.subr.bf16.mxu0 0
        %3976 = vmatpush1.bf16.msra.mxu0 %v3956
        %3977 = vmatprep.subr.bf16.mxu0 0
        %3978 = vmatpush1.bf16.msra.mxu0 %v3957
        %3979 = vmatprep.subr.bf16.mxu0 0
        %3980 = vmatpush1.bf16.msra.mxu0 %v3958
        %3981 = vmatprep.subr.bf16.mxu0 0
        %3982 = vmatpush1.bf16.msra.mxu0 %v3959
        %3983 = vmatprep.subr.bf16.mxu0 0
        %3984 = vmatpush1.bf16.msra.mxu0 %v3960
        %3985 = vmatprep.subr.bf16.mxu0 0
        %3986 = vmatpush1.bf16.msra.mxu0 0
        %3987 = vmatprep.subr.bf16.mxu0 0
        %3988 = vmatpush1.bf16.msra.mxu0 0
        %3989 = vmatprep.subr.bf16.mxu0 0
        %3990 = vmatpush1.bf16.msra.mxu0 0
        %3991 = vmatprep.subr.bf16.mxu0 0
        %3992 = vmatpush1.bf16.msra.mxu0 0
        %3993 = vmatprep.subr.bf16.mxu0 0
        %3994 = vmatpush1.bf16.msra.mxu0 0
        %3995 = vmatprep.subr.bf16.mxu0 0
        %3996 = vmatpush1.bf16.msra.mxu0 0
        %3997 = vmatprep.subr.bf16.mxu0 0
        %3998 = vmatpush1.bf16.msra.mxu0 0
        %3999 = vmatprep.subr.bf16.mxu0 0
        %4000 = vmatpush1.bf16.msra.mxu0 0
        %4001 = vmatprep.mubr.bf16.mxu0 0
        %4002 = vmatmul.mubr.bf16.gmra.mrb[0].mxu0 %v3920
        %v4003 = vpop.f32.mrb[0].mxu0
        %v4004 = vadd.f32 0.0, %v4003
        %v4005 = vpop.f32.mrb[0].mxu0
        %v4006 = vpop.f32.mrb[0].mxu0
        %v4007 = vadd.f32 0.0, %v4006
        %v4008 = vpop.f32.mrb[0].mxu0
        %4009 = vdwg.mxu0
        %v4010 = vadd.f32 %v3801, %v4004
        %v4011 = vadd.f32 %v3802, %v4007
        %v4012 = vlaneseq
        %v4013 = vshrl.u32 %v4012, 7
        %v4014 = vsub.s32 5, %v4013
        %v4015 = vrot.slane %v3323, %v4014
        %v4016 = vadd.f32 %v4010, %v4015
        %v4017 = vadd.f32 %v4011, %v4015
        %v4018 = vpack.c.bf16 %v4017, %v4016
        %4019 = vmatprep.subr.bf16.mxu0 0
        %4020 = vmatpush1.bf16.msra.mxu0 %v4018
        %4021 = vmatprep.subr.bf16.mxu0 0
        %4022 = vmatpush1.bf16.msra.mxu0 0
        %4023 = vmatprep.subr.bf16.mxu0 0
        %4024 = vmatpush1.bf16.msra.mxu0 0
        %4025 = vmatprep.subr.bf16.mxu0 0
        %4026 = vmatpush1.bf16.msra.mxu0 0
        %4027 = vmatprep.subr.bf16.mxu0 0
        %4028 = vmatpush1.bf16.msra.mxu0 0
        %4029 = vmatprep.subr.bf16.mxu0 0
        %4030 = vmatpush1.bf16.msra.mxu0 0
        %4031 = vmatprep.subr.bf16.mxu0 0
        %4032 = vmatpush1.bf16.msra.mxu0 0
        %4033 = vmatprep.subr.bf16.mxu0 0
        %4034 = vmatpush1.bf16.msra.mxu0 0
        %4035 = vmatprep.subr.bf16.mxu0 0
        %4036 = vmatpush1.bf16.msra.mxu0 0
        %4037 = vmatprep.subr.bf16.mxu0 0
        %4038 = vmatpush1.bf16.msra.mxu0 0
        %4039 = vmatprep.subr.bf16.mxu0 0
        %4040 = vmatpush1.bf16.msra.mxu0 0
        %4041 = vmatprep.subr.bf16.mxu0 0
        %4042 = vmatpush1.bf16.msra.mxu0 0
        %4043 = vmatprep.subr.bf16.mxu0 0
        %4044 = vmatpush1.bf16.msra.mxu0 0
        %4045 = vmatprep.subr.bf16.mxu0 0
        %4046 = vmatpush1.bf16.msra.mxu0 0
        %4047 = vmatprep.subr.bf16.mxu0 0
        %4048 = vmatpush1.bf16.msra.mxu0 0
        %4049 = vmatprep.subr.bf16.mxu0 0
        %4050 = vmatpush1.bf16.msra.mxu0 0
        %4051 = vmatprep.mubr.bf16.mxu0 0
        %4052 = vmatmul.mubr.bf16.gmra.mrb[0].mxu0 %v1268
        %v4053 = vpop.f32.mrb[0].mxu0
        %v4054 = vadd.f32 0.0, %v4053
        %v4055 = vpop.f32.mrb[0].mxu0
        %v4056 = vpop.f32.mrb[0].mxu0
        %v4057 = vpop.f32.mrb[0].mxu0
        %4058 = vdwg.mxu0
        %4059 = vmatprep.subr.bf16.mxu0 0
        %4060 = vmatpush1.bf16.msra.mxu0 %v4018
        %4061 = vmatprep.subr.bf16.mxu0 0
        %4062 = vmatpush1.bf16.msra.mxu0 0
        %4063 = vmatprep.subr.bf16.mxu0 0
        %4064 = vmatpush1.bf16.msra.mxu0 0
        %4065 = vmatprep.subr.bf16.mxu0 0
        %4066 = vmatpush1.bf16.msra.mxu0 0
        %4067 = vmatprep.subr.bf16.mxu0 0
        %4068 = vmatpush1.bf16.msra.mxu0 0
        %4069 = vmatprep.subr.bf16.mxu0 0
        %4070 = vmatpush1.bf16.msra.mxu0 0
        %4071 = vmatprep.subr.bf16.mxu0 0
        %4072 = vmatpush1.bf16.msra.mxu0 0
        %4073 = vmatprep.subr.bf16.mxu0 0
        %4074 = vmatpush1.bf16.msra.mxu0 0
        %4075 = vmatprep.subr.bf16.mxu0 0
        %4076 = vmatpush1.bf16.msra.mxu0 0
        %4077 = vmatprep.subr.bf16.mxu0 0
        %4078 = vmatpush1.bf16.msra.mxu0 0
        %4079 = vmatprep.subr.bf16.mxu0 0
        %4080 = vmatpush1.bf16.msra.mxu0 0
        %4081 = vmatprep.subr.bf16.mxu0 0
        %4082 = vmatpush1.bf16.msra.mxu0 0
        %4083 = vmatprep.subr.bf16.mxu0 0
        %4084 = vmatpush1.bf16.msra.mxu0 0
        %4085 = vmatprep.subr.bf16.mxu0 0
        %4086 = vmatpush1.bf16.msra.mxu0 0
        %4087 = vmatprep.subr.bf16.mxu0 0
        %4088 = vmatpush1.bf16.msra.mxu0 0
        %4089 = vmatprep.subr.bf16.mxu0 0
        %4090 = vmatpush1.bf16.msra.mxu0 0
        %4091 = vmatprep.mubr.bf16.mxu0 0
        %4092 = vmatmul.mubr.bf16.gmra.mrb[0].mxu0 %v1311
        %v4093 = vpop.f32.mrb[0].mxu0
        %v4094 = vadd.f32 0.0, %v4093
        %v4095 = vpop.f32.mrb[0].mxu0
        %v4096 = vpop.f32.mrb[0].mxu0
        %v4097 = vpop.f32.mrb[0].mxu0
        %4098 = vdwg.mxu0
        %v4099 = vpack.c.bf16 %v4054, %v4054
        %v4100 = vpack.c.bf16 %v4094, %v4094
        %v4102 = vsel %vm528, %v4100, 0
        %4104 = vmatprep.subr.bf16.mxu0 0
        %4105 = vmatpush1.bf16.msra.mxu0 %v1363
        %4106 = vmatprep.subr.bf16.mxu0 0
        %4107 = vmatpush1.bf16.msra.mxu0 %v1364
        %4108 = vmatprep.subr.bf16.mxu0 0
        %4109 = vmatpush1.bf16.msra.mxu0 0
        %4110 = vmatprep.subr.bf16.mxu0 0
        %4111 = vmatpush1.bf16.msra.mxu0 0
        %4112 = vmatprep.subr.bf16.mxu0 0
        %4113 = vmatpush1.bf16.msra.mxu0 0
        %4114 = vmatprep.subr.bf16.mxu0 0
        %4115 = vmatpush1.bf16.msra.mxu0 0
        %4116 = vmatprep.subr.bf16.mxu0 0
        %4117 = vmatpush1.bf16.msra.mxu0 0
        %4118 = vmatprep.subr.bf16.mxu0 0
        %4119 = vmatpush1.bf16.msra.mxu0 0
        %4120 = vmatprep.subr.bf16.mxu0 0
        %4121 = vmatpush1.bf16.msra.mxu0 0
        %4122 = vmatprep.subr.bf16.mxu0 0
        %4123 = vmatpush1.bf16.msra.mxu0 0
        %4124 = vmatprep.subr.bf16.mxu0 0
        %4125 = vmatpush1.bf16.msra.mxu0 0
        %4126 = vmatprep.subr.bf16.mxu0 0
        %4127 = vmatpush1.bf16.msra.mxu0 0
        %4128 = vmatprep.subr.bf16.mxu0 0
        %4129 = vmatpush1.bf16.msra.mxu0 0
        %4130 = vmatprep.subr.bf16.mxu0 0
        %4131 = vmatpush1.bf16.msra.mxu0 0
        %4132 = vmatprep.subr.bf16.mxu0 0
        %4133 = vmatpush1.bf16.msra.mxu0 0
        %4134 = vmatprep.subr.bf16.mxu0 0
        %4135 = vmatpush1.bf16.msra.mxu0 0
        %4136 = vmatprep.mubr.bf16.mxu0 0
        %4137 = vmatmul.mubr.bf16.gmra.mrb[0].mxu0 %v4102
        %v4138 = vpop.f32.mrb[0].mxu0
        %v4139 = vadd.f32 0.0, %v4138
        %v4140 = vpop.f32.mrb[0].mxu0
        %v4141 = vpop.f32.mrb[0].mxu0
        %v4142 = vpop.f32.mrb[0].mxu0
        %4143 = vdwg.mxu0
        %v4145 = vsel %vm528, %v4099, 0
        %4147 = vmatprep.subr.bf16.mxu0 0
        %4148 = vmatpush1.bf16.msra.mxu0 %v1418
        %4149 = vmatprep.subr.bf16.mxu0 0
        %4150 = vmatpush1.bf16.msra.mxu0 %v1419
        %4151 = vmatprep.subr.bf16.mxu0 0
        %4152 = vmatpush1.bf16.msra.mxu0 0
        %4153 = vmatprep.subr.bf16.mxu0 0
        %4154 = vmatpush1.bf16.msra.mxu0 0
        %4155 = vmatprep.subr.bf16.mxu0 0
        %4156 = vmatpush1.bf16.msra.mxu0 0
        %4157 = vmatprep.subr.bf16.mxu0 0
        %4158 = vmatpush1.bf16.msra.mxu0 0
        %4159 = vmatprep.subr.bf16.mxu0 0
        %4160 = vmatpush1.bf16.msra.mxu0 0
        %4161 = vmatprep.subr.bf16.mxu0 0
        %4162 = vmatpush1.bf16.msra.mxu0 0
        %4163 = vmatprep.subr.bf16.mxu0 0
        %4164 = vmatpush1.bf16.msra.mxu0 0
        %4165 = vmatprep.subr.bf16.mxu0 0
        %4166 = vmatpush1.bf16.msra.mxu0 0
        %4167 = vmatprep.subr.bf16.mxu0 0
        %4168 = vmatpush1.bf16.msra.mxu0 0
        %4169 = vmatprep.subr.bf16.mxu0 0
        %4170 = vmatpush1.bf16.msra.mxu0 0
        %4171 = vmatprep.subr.bf16.mxu0 0
        %4172 = vmatpush1.bf16.msra.mxu0 0
        %4173 = vmatprep.subr.bf16.mxu0 0
        %4174 = vmatpush1.bf16.msra.mxu0 0
        %4175 = vmatprep.subr.bf16.mxu0 0
        %4176 = vmatpush1.bf16.msra.mxu0 0
        %4177 = vmatprep.subr.bf16.mxu0 0
        %4178 = vmatpush1.bf16.msra.mxu0 0
        %4179 = vmatprep.mubr.bf16.mxu0 0
        %4180 = vmatmul.mubr.bf16.gmra.mrb[0].mxu0 %v4145
        %v4181 = vpop.f32.mrb[0].mxu0
        %v4182 = vadd.f32 %v4139, %v4181
        %v4183 = vpop.f32.mrb[0].mxu0
        %v4184 = vpop.f32.mrb[0].mxu0
        %v4185 = vpop.f32.mrb[0].mxu0
        %4186 = vdwg.mxu0
        %v4187 = vadd.f32 %v4182, %v1466
        %v4188 = vsel %vm528, %v4187, 0.0
        %4189 = vadd.xlane.f32.xlu0 %v4188
        %v4190 = vpop.xlane.xlu0 %4189
        %v4191 = vrot.slane %v4190, 4
        %v4192 = vadd.f32 %v4190, %v4191
        %v4193 = vrot.slane %v4192, 2
        %v4194 = vadd.f32 %v4192, %v4193
        %v4195 = vrot.slane %v4194, 1
        %v4196 = vadd.f32 %v4194, %v4195
        %s4197 = vtos %v4196
        %v4198 = vstv %s4197
        %v4199 = vmul.f32 %v4198, %v1480
        %v4200 = vsub.f32 %v4187, %v4199
        %v4201 = vmul.f32 %v4200, %v4200
        %v4202 = vsel %vm528, %v4201, 0.0
        %4203 = vadd.xlane.f32.xlu0 %v4202
        %v4204 = vpop.xlane.xlu0 %4203
        %v4205 = vrot.slane %v4204, 4
        %v4206 = vadd.f32 %v4204, %v4205
        %v4207 = vrot.slane %v4206, 2
        %v4208 = vadd.f32 %v4206, %v4207
        %v4209 = vrot.slane %v4208, 1
        %v4210 = vadd.f32 %v4208, %v4209
        %s4211 = vtos %v4210
        %v4212 = vstv %s4211
        %v4213 = vmul.f32 %v4212, %v1480
        %v4214 = vadd.f32 %v4213, 1e-05
        %v4215 = vrsqrt.pop %v4214
        %v4216 = vmul.f32 %v506, %v4215
        %v4218 = vlaneseq
        %v4219 = vshrl.u32 %v4218, 7
        %v4220 = vsub.s32 0, %v4219
        %v4221 = vrot.slane %v4216, %v4220
        %4222 = vset.pattern.permute.xlu0 67
        %4223 = vperm.xlu0 %4222, %v4221
        %v4224 = vpop.permute.xlu0 %4223
        %v4226 = vmul.f32 %v4200, %v4224
        %v4227 = vadd.f32 %v3321, %v4226
        %v4228 = vsel %vm528, %v4227, 0.0
        %4229 = vadd.xlane.f32.xlu0 %v4228
        %v4230 = vpop.xlane.xlu0 %4229
        %v4231 = vrot.slane %v4230, 4
        %v4232 = vadd.f32 %v4230, %v4231
        %v4233 = vrot.slane %v4232, 2
        %v4234 = vadd.f32 %v4232, %v4233
        %v4235 = vrot.slane %v4234, 1
        %v4236 = vadd.f32 %v4234, %v4235
        %s4237 = vtos %v4236
        %v4238 = vstv %s4237
        %v4239 = vmul.f32 %v4238, %v1480
        %v4240 = vsub.f32 %v4227, %v4239
        %v4241 = vmul.f32 %v4240, %v4240
        %v4242 = vsel %vm528, %v4241, 0.0
        %4243 = vadd.xlane.f32.xlu0 %v4242
        %v4244 = vpop.xlane.xlu0 %4243
        %v4245 = vrot.slane %v4244, 4
        %v4246 = vadd.f32 %v4244, %v4245
        %v4247 = vrot.slane %v4246, 2
        %v4248 = vadd.f32 %v4246, %v4247
        %v4249 = vrot.slane %v4248, 1
        %v4250 = vadd.f32 %v4248, %v4249
        %s4251 = vtos %v4250
        %v4252 = vstv %s4251
        %v4253 = vmul.f32 %v4252, %v1480
        %v4254 = vadd.f32 %v4253, 1e-05
        %v4255 = vrsqrt.pop %v4254
        %v4256 = vmul.f32 %v4240, %v4255
        %4257 = vst.msk [vmem:[%s342] sm:$0xff] %vm528, %v4256
        %s4258 = sand.u32 %s205, 1
        %s4259 = scalar_lea.sflag [#allocation4], %s4258
        %s4260 = sand.u32 %s205, 1
        %s4261 = smul.addr %s4260, 8
        %s4262 = scalar_lea.vmem [#allocation8], %s4261
        // Predicated region
        $region65: #{_lambda_.1} parent=51 // pred_check
          %p4263 = pneg %p215
        $region66: #{_lambda_.1} parent=51 // pred_check_branch
          %4265 = sbr.rel (%p4263) target = $region68
        $region67: #{_lambda_.1} parent=51 // pred_region
          %s4267 = ssub.s32 128, 128
          %4268 = vsyncadd %s4259, %s4267
          %s4269 = smul.addr %s24, 128
          %s4270 = scalar_lea.hbm %s8, %s4269
          %s4272 = sshll.u32 %s4262, 4
          %s4273 = int_to_ptr.vmem [resolvable:$true] %s4272
          %4275 = dma.vmem_to_hbm [thread:$0]  %s4273, 128, %s4270, %s4259
        $region68: #{_lambda_.1} parent=51 // pred_fallthru
          _
      $region52: #{_lambda_.1} parent=5 // pred_fallthru
        _
      %p4276 = scmp.le.s32.totalorder 2, %s19
      // Predicated region
      $region69: #{_lambda_.1} parent=5 // pred_check
        %p4277 = pneg %p4276
      $region70: #{_lambda_.1} parent=5 // pred_check_branch
        %4279 = sbr.rel (%p4277) target = $region72
      $region71: #{_lambda_.1} parent=5 // pred_region
        %s4280 = ssub.s32 %s19, 2
        // Predicated region
        $region73: #{_lambda_.1} parent=71 // pred_check
          %p4281 = pneg %p221
        $region74: #{_lambda_.1} parent=71 // pred_check_branch
          %4283 = sbr.rel (%p4281) target = $region76
        $region75: #{_lambda_.1} parent=71 // pred_region
          %s4284 = sand.u32 %s206, 1
          %s4285 = scalar_lea.sflag [#allocation4], %s4284
          %s4286 = sand.u32 %s206, 1
          %s4287 = smul.addr %s4286, 8
          %s4288 = scalar_lea.vmem [#allocation8], %s4287
          %4289 = dma.done %s4285, 128
        $region76: #{_lambda_.1} parent=71 // pred_fallthru
          _
      $region72: #{_lambda_.1} parent=5 // pred_fallthru
        _
    $region6: #{_lambda_.1} parent=1 // loop_footer
      %s23 = sadd.s32 1, %s19
    $region7: #{_lambda_.1} parent=1 // loop_footer_branch
      %18 = sbr.rel target = $region3
    $region8: #{_lambda_.1} parent=1 // loop_exit
      _
    %4290 = vsyncpa [#allocation3], 1
    %s4291 = scalar_lea.sflag [#allocation3], 1
    %4292 = vsyncpa %s4291, 1
    %4293 = vsyncpa [#allocation6], 1
    %4294 = vsyncpa [#allocation4], 1
    %s4295 = scalar_lea.sflag [#allocation4], 1
    %4296 = vsyncpa %s4295, 1

</llo_original>
